<compile_context>
chip_gen: v7x
topology: tpu7x:2x2x1
jax: 0.10.0
libtpu: 0.0.40
codegen_flags: <defaults>
</compile_context>

<pallas_src>
import functools

import jax
import jax.numpy as jnp
from jax.experimental import pallas as pl
from jax.experimental.pallas import tpu as pltpu

C_PAD = 128       # lane-dense channel width
K_ALIGN = 128     # contraction-dim alignment
TILE_M = 1024     # max M-block; keeps every GEMM's VMEM < ~8 MiB (v5e-safe)
POOL_TILE = 256   # max row-block for the maxpool kernel (v5e-safe)


def _cdiv(a, b):
    return (a + b - 1) // b


def _round_up(x, m):
    return _cdiv(x, m) * m


def _apply_act(x, act):
    if act == "relu":
        return jnp.maximum(x, 0.0)
    if act == "sigmoid":
        return jax.nn.sigmoid(x)
    return x


def _m_tiling(M, tile_m=TILE_M, min_split=256):
    """Balanced M tiling: >=2 blocks once M >= min_split (feeds both v7x TCs),
    128-aligned block rows, padding capped well below a full tile."""
    if M < min_split:
        return M, 1, M                      # single full block (launch-bound case)
    grid_m = max(2, _cdiv(M, tile_m))
    bm = _round_up(_cdiv(M, grid_m), 128)
    return bm, grid_m, bm * grid_m


# ----------------------------- Pallas kernels ------------------------------

def _gemm_bias_kernel(a_ref, b_ref, bias_ref, o_ref, *, act):
    acc = jnp.dot(a_ref[...], b_ref[...], preferred_element_type=jnp.float32)
    acc = _apply_act(acc + bias_ref[...], act)
    o_ref[...] = acc.astype(o_ref.dtype)


def _gemm_bias_res_kernel(a_ref, b_ref, bias_ref, res_ref, o_ref, *, act):
    acc = jnp.dot(a_ref[...], b_ref[...], preferred_element_type=jnp.float32)
    acc = acc + bias_ref[...] + res_ref[...].astype(jnp.float32)
    o_ref[...] = _apply_act(acc, act).astype(o_ref.dtype)


def _gemm_dual_kernel(a_ref, b_ref, bias_ref, o1_ref, o2_ref, *, n1):
    # Fused conv1+bn1+relu (lanes [:n1]) and downsample+bn (lanes [n1:]).
    acc = jnp.dot(a_ref[...], b_ref[...], preferred_element_type=jnp.float32)
    acc = acc + bias_ref[...]
    o1_ref[...] = jnp.maximum(acc[:, :n1], 0.0).astype(o1_ref.dtype)
    o2_ref[...] = acc[:, n1:].astype(o2_ref.dtype)


def _maxpool_kernel(x_ref, o_ref):
    # x_ref: (bm, 2, Wo, 2*C) in natural NHWC order (free reshape, no transpose).
    # Row-pair max = chunk-contiguous slices; column-pair max = 128-aligned
    # lane slices of the last dim.
    v = x_ref[...]
    r = jnp.maximum(v[:, 0], v[:, 1])            # (bm, Wo, 2*C)
    c = r.shape[-1] // 2
    o_ref[...] = jnp.maximum(r[..., :c], r[..., c:])


def _fc_combine_kernel(feat_ref, wfc_ref, bfc_ref, ydiff_ref,
                       wc1_ref, wc2_ref, bc_ref, o_ref):
    # fc: Linear(990->10) + ReLU.  Padded cols have zero weights + zero bias,
    # so relu keeps them exactly zero.
    h = jnp.dot(feat_ref[...], wfc_ref[...], preferred_element_type=jnp.float32)
    h = jnp.maximum(h + bfc_ref[...], 0.0)
    # combine_layer: Linear(20->1) + Sigmoid; torch's concat([h, y_hat_diff])
    # becomes a split matvec fused into this epilogue.
    z = jnp.dot(h, wc1_ref[...], preferred_element_type=jnp.float32)
    z = z + jnp.dot(ydiff_ref[...], wc2_ref[...],
                    preferred_element_type=jnp.float32)
    o_ref[...] = jax.nn.sigmoid(z + bc_ref[...])


# ------------------------------ Pallas wrappers -----------------------------

def gemm_bias_act(a, b, bias, *, res=None, act="none", out_dtype=jnp.bfloat16):
    """Fused (M,K)@(K,N) GEMM + per-column bias + optional residual + act.

    K and N are multiples of 128 (caller pads). bf16 operands, f32 accumulation.
    """
    M, K = a.shape
    _, N = b.shape
    a = a.astype(jnp.bfloat16)
    b = b.astype(jnp.bfloat16)
    bias = bias.reshape(1, N).astype(jnp.float32)
    if res is not None:
        res = res.astype(jnp.bfloat16)

    bm, grid_m, Mp = _m_tiling(M)
    if Mp != M:
        a = jnp.pad(a, ((0, Mp - M), (0, 0)))
        if res is not None:
            res = jnp.pad(res, ((0, Mp - M), (0, 0)))

    in_specs = [
        pl.BlockSpec((bm, K), lambda i: (i, 0)),
        pl.BlockSpec((K, N), lambda i: (0, 0)),
        pl.BlockSpec((1, N), lambda i: (0, 0)),
    ]
    args = [a, b, bias]
    if res is None:
        kernel = functools.partial(_gemm_bias_kernel, act=act)
    else:
        kernel = functools.partial(_gemm_bias_res_kernel, act=act)
        in_specs.append(pl.BlockSpec((bm, N), lambda i: (i, 0)))
        args.append(res)

    out = pl.pallas_call(
        kernel,
        out_shape=jax.ShapeDtypeStruct((Mp, N), out_dtype),
        grid=(grid_m,),
        in_specs=in_specs,
        out_specs=pl.BlockSpec((bm, N), lambda i: (i, 0)),
        compiler_params=pltpu.CompilerParams(
            dimension_semantics=("parallel",)),
    )(*args)
    return out[:M] if Mp != M else out


def gemm_dual(a, b, bias, *, out_dtype=jnp.bfloat16):
    """(M,K)@(K,2*C_PAD) GEMM; relu on the first C_PAD lanes, linear on the rest.
    Returns two (M, C_PAD) arrays (conv1 path, identity path)."""
    M, K = a.shape
    _, N = b.shape
    n1 = N // 2
    a = a.astype(jnp.bfloat16)
    b = b.astype(jnp.bfloat16)
    bias = bias.reshape(1, N).astype(jnp.float32)

    bm, grid_m, Mp = _m_tiling(M)
    if Mp != M:
        a = jnp.pad(a, ((0, Mp - M), (0, 0)))

    out1, out2 = pl.pallas_call(
        functools.partial(_gemm_dual_kernel, n1=n1),
        out_shape=(jax.ShapeDtypeStruct((Mp, n1), out_dtype),
                   jax.ShapeDtypeStruct((Mp, n1), out_dtype)),
        grid=(grid_m,),
        in_specs=[
            pl.BlockSpec((bm, K), lambda i: (i, 0)),
            pl.BlockSpec((K, N), lambda i: (0, 0)),
            pl.BlockSpec((1, N), lambda i: (0, 0)),
        ],
        out_specs=(pl.BlockSpec((bm, n1), lambda i: (i, 0)),
                   pl.BlockSpec((bm, n1), lambda i: (i, 0))),
        compiler_params=pltpu.CompilerParams(
            dimension_semantics=("parallel",)),
    )(a, b, bias)
    if Mp != M:
        out1, out2 = out1[:M], out2[:M]
    return out1, out2


def maxpool2x2_nhwc(x):
    """MaxPool2d(kernel=2, stride=2) on NHWC (H, W even, C lane-dense).

    No pre-transpose: the input is only reshaped (contiguous) to
    (B*Ho, 2, Wo, 2*C); the 2x2 reduction happens inside the kernel with
    chunk-/lane-aligned slices, tiled over rows."""
    B, H, W, C = x.shape
    Ho, Wo = H // 2, W // 2
    rows = B * Ho
    xr = x.reshape(rows, 2, Wo, 2 * C)          # free reshape

    if rows <= POOL_TILE:
        bm, grid, rows_p = rows, 1, rows
    else:
        grid = _cdiv(rows, POOL_TILE)
        bm = _round_up(_cdiv(rows, grid), 8)
        rows_p = bm * grid
        if rows_p != rows:
            xr = jnp.pad(xr, ((0, rows_p - rows), (0, 0), (0, 0), (0, 0)))

    out = pl.pallas_call(
        _maxpool_kernel,
        out_shape=jax.ShapeDtypeStruct((rows_p, Wo, C), x.dtype),
        grid=(grid,),
        in_specs=[pl.BlockSpec((bm, 2, Wo, 2 * C), lambda i: (i, 0, 0, 0))],
        out_specs=pl.BlockSpec((bm, Wo, C), lambda i: (i, 0, 0)),
        compiler_params=pltpu.CompilerParams(
            dimension_semantics=("parallel",)),
    )(xr)
    out = out[:rows] if rows_p != rows else out
    return out.reshape(B, Ho, Wo, C)


def fc_combine(feat, y_hat_diff, fc_w, fc_b, comb_w, comb_b):
    """Fused fc(990->10)+ReLU, concat(y_hat_diff), combine(20->1)+Sigmoid."""
    B, F = feat.shape                        # F = 990
    Fp = _round_up(F, K_ALIGN)               # 1024
    N = C_PAD
    n_fc = fc_w.shape[0]                     # 10
    d = y_hat_diff.shape[1]                  # 10

    feat_p = jnp.pad(feat.astype(jnp.bfloat16), ((0, 0), (0, Fp - F)))
    wfc = jnp.pad(fc_w.T.astype(jnp.float32),
                  ((0, Fp - F), (0, N - n_fc))).astype(jnp.bfloat16)
    bfc = jnp.pad(fc_b.astype(jnp.float32), (0, N - n_fc)).reshape(1, N)
    ydiff_p = jnp.pad(y_hat_diff.astype(jnp.float32), ((0, 0), (0, N - d)))

    wc = comb_w.T.astype(jnp.float32)        # (20, 1)
    wc1 = jnp.pad(wc[:n_fc], ((0, N - n_fc), (0, N - 1)))   # (128, 128)
    wc2 = jnp.pad(wc[n_fc:], ((0, N - d), (0, N - 1)))      # (128, 128)
    bc = jnp.pad(comb_b.astype(jnp.float32),
                 (0, N - comb_b.shape[0])).reshape(1, N)

    bm, grid_m, Bp = _m_tiling(B)
    if Bp != B:
        feat_p = jnp.pad(feat_p, ((0, Bp - B), (0, 0)))
        ydiff_p = jnp.pad(ydiff_p, ((0, Bp - B), (0, 0)))

    out = pl.pallas_call(
        _fc_combine_kernel,
        out_shape=jax.ShapeDtypeStruct((Bp, N), jnp.float32),
        grid=(grid_m,),
        in_specs=[
            pl.BlockSpec((bm, Fp), lambda i: (i, 0)),
            pl.BlockSpec((Fp, N), lambda i: (0, 0)),
            pl.BlockSpec((1, N), lambda i: (0, 0)),
            pl.BlockSpec((bm, N), lambda i: (i, 0)),
            pl.BlockSpec((N, N), lambda i: (0, 0)),
            pl.BlockSpec((N, N), lambda i: (0, 0)),
            pl.BlockSpec((1, N), lambda i: (0, 0)),
        ],
        out_specs=pl.BlockSpec((bm, N), lambda i: (i, 0)),
        compiler_params=pltpu.CompilerParams(
            dimension_semantics=("parallel",)),
    )(feat_p, wfc, bfc, ydiff_p, wc1, wc2, bc)
    return out[:B, :1]


# ------------------------------- Conv glue ----------------------------------

def im2col_nhwc(x, k, stride, pad):
    """(B,H,W,C) -> patch matrix (B*Ho*Wo, k*k*C), flattened (kh, kw, C)."""
    B, H, W, C = x.shape
    xp = jnp.pad(x, ((0, 0), (pad, pad), (pad, pad), (0, 0))) if pad else x
    Ho = (H + 2 * pad - k) // stride + 1
    Wo = (W + 2 * pad - k) // stride + 1
    cols = []
    for i in range(k):
        for j in range(k):
            cols.append(xp[:, i:i + stride * (Ho - 1) + 1:stride,
                           j:j + stride * (Wo - 1) + 1:stride, :])
    patches = jnp.concatenate(cols, axis=-1)          # (B, Ho, Wo, k*k*C)
    return patches.reshape(B * Ho * Wo, k * k * C), Ho, Wo


def conv2d(x, w, *, scale, shift, stride, pad, res=None, act="none"):
    """x: NHWC (channels possibly zero-padded to C_PAD); w: torch (Cout,Cin,kh,kw).

    Returns NHWC with the channel dim padded to C_PAD (pad channels are 0).
    BN scale (if any) is folded into the weight; shift is the per-channel bias.
    `res`, if given, is a flat (B*Ho*Wo, C_PAD) residual added before `act`.
    """
    B, H, W, C = x.shape
    Cout, Cin, kh, kw = w.shape

    a, Ho, Wo = im2col_nhwc(x, kh, stride, pad)        # (M, kh*kw*C) bf16

    wt = jnp.transpose(w.astype(jnp.float32), (2, 3, 1, 0))   # (kh,kw,Cin,Cout)
    if scale is not None:
        wt = wt * scale.astype(jnp.float32)            # fold BN scale (trace-time)
    wt = jnp.pad(wt, ((0, 0), (0, 0), (0, C - Cin), (0, C_PAD - Cout)))
    w_mat = wt.reshape(kh * kw * C, C_PAD)

    K = a.shape[1]
    Kp = _round_up(K, K_ALIGN)
    if Kp != K:
        a = jnp.pad(a, ((0, 0), (0, Kp - K)))
        w_mat = jnp.pad(w_mat, ((0, Kp - K), (0, 0)))

    bias = jnp.pad(shift.astype(jnp.float32), (0, C_PAD - Cout))
    out = gemm_bias_act(a, w_mat, bias, res=res, act=act)
    return out.reshape(B, Ho, Wo, C_PAD)


def basic_block(params, x, eps):
    """BasicBlock(20, 20, stride=2) with 1x1 downsample.

    conv1(3x3,s2,p1)+bn1+relu and downsample(1x1,s2)+bn are fused into ONE
    N=256 GEMM: the 1x1 stride-2 pad-0 contraction is exactly the (kh=1,kw=1)
    center-tap slice of the 3x3 stride-2 pad-1 im2col, so its weights occupy
    rows [4*C, 5*C) of the shared weight matrix and extra output lanes.
    """
    B, H, W, C = x.shape                                   # (B, 13, 13, 128)

    # Eval-mode BN folds.
    s1 = params["b_bn1_g"] * jax.lax.rsqrt(params["b_bn1_v"] + eps)
    sh1 = params["b_bn1_b"] - params["b_bn1_m"] * s1
    sd = params["ds_bn_g"] * jax.lax.rsqrt(params["ds_bn_v"] + eps)
    shd = params["ds_bn_b"] - params["ds_bn_m"] * sd
    s2 = params["b_bn2_g"] * jax.lax.rsqrt(params["b_bn2_v"] + eps)
    sh2 = params["b_bn2_b"] - params["b_bn2_m"] * s2

    # Shared im2col for the 3x3 stride-2 pad-1 window.
    a, Ho, Wo = im2col_nhwc(x, 3, 2, 1)                    # (M, 9*C) bf16
    Cout = params["b_conv1_w"].shape[0]                    # 20

    # conv1 weight (Cout,Cin,3,3) -> (3,3,Cin,Cout), BN scale folded, padded.
    w1 = jnp.transpose(params["b_conv1_w"].astype(jnp.float32), (2, 3, 1, 0)) * s1
    w1 = jnp.pad(w1, ((0, 0), (0, 0), (0, C - w1.shape[2]), (0, C_PAD - Cout)))
    w1 = w1.reshape(9 * C, C_PAD)                          # (1152, 128)

    # Downsample 1x1 weight folded onto the center-tap rows only.
    wd = jnp.transpose(params["ds_conv_w"].astype(jnp.float32),
                       (2, 3, 1, 0))[0, 0] * sd            # (Cin, Cout)
    wd = jnp.pad(wd, ((0, C - wd.shape[0]), (0, C_PAD - Cout)))      # (128, 128)
    wd_full = jnp.pad(wd, ((4 * C, 4 * C), (0, 0)))        # rows [4C, 5C) = center tap

    w_fused = jnp.concatenate([w1, wd_full], axis=1)       # (1152, 256)
    bias_fused = jnp.concatenate([jnp.pad(sh1.astype(jnp.float32), (0, C_PAD - Cout)),
                                  jnp.pad(shd.astype(jnp.float32), (0, C_PAD - Cout))])

    out1, identity = gemm_dual(a, w_fused, bias_fused)     # (M,128) relu'd, (M,128) linear

    # conv2(3x3,s1,p1)+bn2 + residual + relu in a second fused GEMM.
    out1 = out1.reshape(B, Ho, Wo, C_PAD)
    out = conv2d(out1, params["b_conv2_w"], scale=s2, shift=sh2,
                 stride=1, pad=1, res=identity, act="relu")
    return out                                              # (B, 7, 7, 128)


# ------------------------------ Parameters ----------------------------------

def init_params(key):
    def nrm(k, shape, s=0.1):
        return s * jax.random.normal(k, shape, jnp.float32)

    keys = jax.random.split(key, 21)
    p = {}
    p["conv0_w"] = nrm(keys[0], (20, 1, 5, 5))
    p["conv0_b"] = nrm(keys[1], (20,))
    # BasicBlock(20, 20, stride=2) with downsample
    p["b_conv1_w"] = nrm(keys[2], (20, 20, 3, 3))
    p["b_bn1_g"] = 1.0 + nrm(keys[3], (20,))
    p["b_bn1_b"] = nrm(keys[4], (20,))
    p["b_bn1_m"] = nrm(keys[5], (20,))
    p["b_bn1_v"] = jnp.abs(nrm(keys[6], (20,))) + 1.0
    p["b_conv2_w"] = nrm(keys[7], (20, 20, 3, 3))
    p["b_bn2_g"] = 1.0 + nrm(keys[8], (20,))
    p["b_bn2_b"] = nrm(keys[9], (20,))
    p["b_bn2_m"] = nrm(keys[10], (20,))
    p["b_bn2_v"] = jnp.abs(nrm(keys[11], (20,))) + 1.0
    p["ds_conv_w"] = nrm(keys[12], (20, 20, 1, 1))
    p["ds_bn_g"] = 1.0 + nrm(keys[13], (20,))
    p["ds_bn_b"] = nrm(keys[14], (20,))
    p["ds_bn_m"] = nrm(keys[15], (20,))
    p["ds_bn_v"] = jnp.abs(nrm(keys[16], (20,))) + 1.0
    p["fc_w"] = nrm(keys[17], (10, 990))
    p["fc_b"] = nrm(keys[18], (10,))
    p["comb_w"] = nrm(keys[19], (1, 20))
    p["comb_b"] = nrm(keys[20], (1,))
    return p


# -------------------------------- Forward -----------------------------------

def forward(params, x_nchw, y, y_hat_diff):
    EPS = 1e-5
    B = x_nchw.shape[0]
    # NCHW -> NHWC, bf16 before any glue (halves im2col HBM traffic).
    x = jnp.transpose(x_nchw, (0, 2, 3, 1)).astype(jnp.bfloat16)   # (B,28,28,1)

    # Conv2d(1, 20, k=5, s=1, p=1) with bias               -> (B, 26, 26, 128)
    x = conv2d(x, params["conv0_w"], scale=None, shift=params["conv0_b"],
               stride=1, pad=1)
    # MaxPool2d(2, 2)                                       -> (B, 13, 13, 128)
    x = maxpool2x2_nhwc(x)

    # BasicBlock(20, 20, stride=2) with 1x1 downsample      -> (B, 7, 7, 128)
    out = basic_block(params, x, EPS)

    # Flatten the 20 real channels in torch NCHW order: (B, 980), cat y -> 990.
    feat = jnp.transpose(out[..., :20], (0, 3, 1, 2)).reshape(B, -1)
    feat = jnp.concatenate([feat.astype(jnp.float32), y.astype(jnp.float32)],
                           axis=1)                          # (B, 990)

    # Fused fc + ReLU + concat(y_hat_diff) + combine_layer + Sigmoid.
    return fc_combine(feat, y_hat_diff.astype(jnp.float32),
                      params["fc_w"], params["fc_b"],
                      params["comb_w"], params["comb_b"])


if __name__ == "__main__":
    key = jax.random.PRNGKey(0)
    kx, ky, kd = jax.random.split(key, 3)
    B = 2
    # MNIST-shaped inputs (28x28 is forced by the hard-coded Linear(990, 10)).
    x = jax.random.normal(kx, (B, 1, 28, 28), jnp.float32)
    y = jax.random.normal(ky, (B, 10), jnp.float32)
    y_hat_diff = jax.random.normal(kd, (B, 10), jnp.float32)

    params = init_params(jax.random.PRNGKey(42))
    fwd = jax.jit(functools.partial(forward, params))
    out = fwd(x, y, y_hat_diff)
    jax.block_until_ready(out)
    assert out.shape == (B, 1)
    assert bool(jnp.all((out >= 0.0) & (out <= 1.0)))
    print("KERNEL_OK")
</pallas_src>

<mosaic_0001>
module attributes {stable_mosaic.version = 11 : i64} {
  func.func @_gemm_bias_kernel(%arg0: i32, %arg1: memref<768x128xbf16, #tpu.memory_space<vmem>>, %arg2: memref<128x128xbf16, #tpu.memory_space<vmem>>, %arg3: memref<1x128xf32, #tpu.memory_space<vmem>>, %arg4: memref<768x128xbf16, #tpu.memory_space<vmem>>) attributes {dimension_semantics = [#tpu.dimension_semantics<parallel>], iteration_bounds = array<i64: 2>, scalar_prefetch = 0 : i64, scratch_operands = 0 : i64, tpu.core_type = #tpu.core_type<tc>, window_params = [{transform_indices = @transform_0, window_bounds = array<i64: 768, 128>}, {pipeline_mode = #tpu.pipeline_mode<synchronous>, transform_indices = @transform_1, window_bounds = array<i64: 128, 128>}, {pipeline_mode = #tpu.pipeline_mode<synchronous>, transform_indices = @transform_2, window_bounds = array<i64: 1, 128>}, {transform_indices = @transform_3, window_bounds = array<i64: 768, 128>}]} {
    %c0 = arith.constant 0 : index
    %c0_0 = arith.constant 0 : index
    %0 = vector.load %arg1[%c0, %c0_0] : memref<768x128xbf16, #tpu.memory_space<vmem>>, vector<768x128xbf16>
    %c0_1 = arith.constant 0 : index
    %c0_2 = arith.constant 0 : index
    %1 = vector.load %arg2[%c0_1, %c0_2] : memref<128x128xbf16, #tpu.memory_space<vmem>>, vector<128x128xbf16>
    %cst = arith.constant dense<0.000000e+00> : vector<768x128xf32>
    %2 = tpu.matmul %0, %1, %cst {dimension_numbers = #tpu.dot_dimension_numbers<[1], [0], [0], [1], [0, 0, 1, 1], [], []>} : vector<768x128xbf16>, vector<128x128xbf16>, vector<768x128xf32> -> vector<768x128xf32>
    %c0_3 = arith.constant 0 : index
    %c0_4 = arith.constant 0 : index
    %3 = vector.load %arg3[%c0_3, %c0_4] : memref<1x128xf32, #tpu.memory_space<vmem>>, vector<1x128xf32>
    %4 = vector.broadcast %3 : vector<1x128xf32> to vector<768x128xf32>
    %5 = arith.addf %2, %4 : vector<768x128xf32>
    %6 = arith.truncf %5 : vector<768x128xf32> to vector<768x128xbf16>
    %c0_5 = arith.constant 0 : index
    %c0_6 = arith.constant 0 : index
    %7 = vector.load %arg4[%c0_5, %c0_6] : memref<768x128xbf16, #tpu.memory_space<vmem>>, vector<768x128xbf16>
    tpu.vector_store %arg4[%c0_5, %c0_6], %6 {strides = array<i32>} : memref<768x128xbf16, #tpu.memory_space<vmem>>, vector<768x128xbf16>,
    return
  }
  func.func @transform_0(%arg0: i32) -> (i32, i32) {
    %c0_i32 = arith.constant 0 : i32
    %c0_i32_0 = arith.constant 0 : i32
    return %arg0, %c0_i32 : i32, i32
  }
  func.func @transform_1(%arg0: i32) -> (i32, i32) {
    %c0_i32 = arith.constant 0 : i32
    %c0_i32_0 = arith.constant 0 : i32
    %c0_i32_1 = arith.constant 0 : i32
    return %c0_i32, %c0_i32_0 : i32, i32
  }
  func.func @transform_2(%arg0: i32) -> (i32, i32) {
    %c0_i32 = arith.constant 0 : i32
    %c0_i32_0 = arith.constant 0 : i32
    %c0_i32_1 = arith.constant 0 : i32
    return %c0_i32, %c0_i32_0 : i32, i32
  }
  func.func @transform_3(%arg0: i32) -> (i32, i32) {
    %c0_i32 = arith.constant 0 : i32
    %c0_i32_0 = arith.constant 0 : i32
    return %arg0, %c0_i32 : i32, i32
  }
}

module attributes {stable_mosaic.version = 11 : i64} {
  func.func @_maxpool_kernel(%arg0: i32, %arg1: memref<26x2x13x256xbf16, #tpu.memory_space<vmem>>, %arg2: memref<26x13x128xbf16, #tpu.memory_space<vmem>>) attributes {dimension_semantics = [#tpu.dimension_semantics<parallel>], iteration_bounds = array<i64: 1>, scalar_prefetch = 0 : i64, scratch_operands = 0 : i64, tpu.core_type = #tpu.core_type<tc>, window_params = [{transform_indices = @transform_0, window_bounds = array<i64: 26, 2, 13, 256>}, {transform_indices = @transform_1, window_bounds = array<i64: 26, 13, 128>}]} {
    %c0 = arith.constant 0 : index
    %c0_0 = arith.constant 0 : index
    %c0_1 = arith.constant 0 : index
    %c0_2 = arith.constant 0 : index
    %0 = vector.load %arg1[%c0, %c0_0, %c0_1, %c0_2] : memref<26x2x13x256xbf16, #tpu.memory_space<vmem>>, vector<26x2x13x256xbf16>
    %1 = vector.extract_strided_slice %0 {offsets = [0, 0, 0, 0], sizes = [26, 1, 13, 256], strides = [1, 1, 1, 1]} : vector<26x2x13x256xbf16> to vector<26x1x13x256xbf16>
    %2 = vector.shape_cast %1 : vector<26x1x13x256xbf16> to vector<26x13x256xbf16>
    %3 = vector.extract_strided_slice %0 {offsets = [0, 1, 0, 0], sizes = [26, 1, 13, 256], strides = [1, 1, 1, 1]} : vector<26x2x13x256xbf16> to vector<26x1x13x256xbf16>
    %4 = vector.shape_cast %3 : vector<26x1x13x256xbf16> to vector<26x13x256xbf16>
    %5 = arith.maximumf %2, %4 : vector<26x13x256xbf16>
    %6 = vector.extract_strided_slice %5 {offsets = [0, 0, 0], sizes = [26, 13, 128], strides = [1, 1, 1]} : vector<26x13x256xbf16> to vector<26x13x128xbf16>
    %7 = vector.extract_strided_slice %5 {offsets = [0, 0, 128], sizes = [26, 13, 128], strides = [1, 1, 1]} : vector<26x13x256xbf16> to vector<26x13x128xbf16>
    %8 = arith.maximumf %6, %7 : vector<26x13x128xbf16>
    %c0_3 = arith.constant 0 : index
    %c0_4 = arith.constant 0 : index
    %c0_5 = arith.constant 0 : index
    %9 = vector.load %arg2[%c0_3, %c0_4, %c0_5] : memref<26x13x128xbf16, #tpu.memory_space<vmem>>, vector<26x13x128xbf16>
    tpu.vector_store %arg2[%c0_3, %c0_4, %c0_5], %8 {strides = array<i32>} : memref<26x13x128xbf16, #tpu.memory_space<vmem>>, vector<26x13x128xbf16>,
    return
  }
  func.func @transform_0(%arg0: i32) -> (i32, i32, i32, i32) {
    %c0_i32 = arith.constant 0 : i32
    %c0_i32_0 = arith.constant 0 : i32
    %c0_i32_1 = arith.constant 0 : i32
    %c0_i32_2 = arith.constant 0 : i32
    return %arg0, %c0_i32, %c0_i32_0, %c0_i32_1 : i32, i32, i32, i32
  }
  func.func @transform_1(%arg0: i32) -> (i32, i32, i32) {
    %c0_i32 = arith.constant 0 : i32
    %c0_i32_0 = arith.constant 0 : i32
    %c0_i32_1 = arith.constant 0 : i32
    return %arg0, %c0_i32, %c0_i32_0 : i32, i32, i32
  }
}

module attributes {stable_mosaic.version = 11 : i64} {
  func.func @_gemm_dual_kernel(%arg0: i32, %arg1: memref<98x1152xbf16, #tpu.memory_space<vmem>>, %arg2: memref<1152x256xbf16, #tpu.memory_space<vmem>>, %arg3: memref<1x256xf32, #tpu.memory_space<vmem>>, %arg4: memref<98x128xbf16, #tpu.memory_space<vmem>>, %arg5: memref<98x128xbf16, #tpu.memory_space<vmem>>) attributes {dimension_semantics = [#tpu.dimension_semantics<parallel>], iteration_bounds = array<i64: 1>, scalar_prefetch = 0 : i64, scratch_operands = 0 : i64, tpu.core_type = #tpu.core_type<tc>, window_params = [{transform_indices = @transform_0, window_bounds = array<i64: 98, 1152>}, {pipeline_mode = #tpu.pipeline_mode<synchronous>, transform_indices = @transform_1, window_bounds = array<i64: 1152, 256>}, {pipeline_mode = #tpu.pipeline_mode<synchronous>, transform_indices = @transform_2, window_bounds = array<i64: 1, 256>}, {transform_indices = @transform_3, window_bounds = array<i64: 98, 128>}, {transform_indices = @transform_4, window_bounds = array<i64: 98, 128>}]} {
    %c0 = arith.constant 0 : index
    %c0_0 = arith.constant 0 : index
    %0 = vector.load %arg1[%c0, %c0_0] : memref<98x1152xbf16, #tpu.memory_space<vmem>>, vector<98x1152xbf16>
    %c0_1 = arith.constant 0 : index
    %c0_2 = arith.constant 0 : index
    %1 = vector.load %arg2[%c0_1, %c0_2] : memref<1152x256xbf16, #tpu.memory_space<vmem>>, vector<1152x256xbf16>
    %cst = arith.constant dense<0.000000e+00> : vector<98x256xf32>
    %2 = tpu.matmul %0, %1, %cst {dimension_numbers = #tpu.dot_dimension_numbers<[1], [0], [0], [1], [0, 0, 1, 1], [], []>} : vector<98x1152xbf16>, vector<1152x256xbf16>, vector<98x256xf32> -> vector<98x256xf32>
    %c0_3 = arith.constant 0 : index
    %c0_4 = arith.constant 0 : index
    %3 = vector.load %arg3[%c0_3, %c0_4] : memref<1x256xf32, #tpu.memory_space<vmem>>, vector<1x256xf32>
    %4 = vector.broadcast %3 : vector<1x256xf32> to vector<98x256xf32>
    %5 = arith.addf %2, %4 : vector<98x256xf32>
    %6 = vector.extract_strided_slice %5 {offsets = [0, 0], sizes = [98, 128], strides = [1, 1]} : vector<98x256xf32> to vector<98x128xf32>
    %cst_5 = arith.constant 0.000000e+00 : f32
    %7 = vector.broadcast %cst_5 : f32 to vector<98x128xf32>
    %8 = arith.maximumf %6, %7 : vector<98x128xf32>
    %9 = arith.truncf %8 : vector<98x128xf32> to vector<98x128xbf16>
    %c0_6 = arith.constant 0 : index
    %c0_7 = arith.constant 0 : index
    %10 = vector.load %arg4[%c0_6, %c0_7] : memref<98x128xbf16, #tpu.memory_space<vmem>>, vector<98x128xbf16>
    tpu.vector_store %arg4[%c0_6, %c0_7], %9 {strides = array<i32>} : memref<98x128xbf16, #tpu.memory_space<vmem>>, vector<98x128xbf16>,
    %11 = vector.extract_strided_slice %5 {offsets = [0, 128], sizes = [98, 128], strides = [1, 1]} : vector<98x256xf32> to vector<98x128xf32>
    %12 = arith.truncf %11 : vector<98x128xf32> to vector<98x128xbf16>
    %c0_8 = arith.constant 0 : index
    %c0_9 = arith.constant 0 : index
    %13 = vector.load %arg5[%c0_8, %c0_9] : memref<98x128xbf16, #tpu.memory_space<vmem>>, vector<98x128xbf16>
    tpu.vector_store %arg5[%c0_8, %c0_9], %12 {strides = array<i32>} : memref<98x128xbf16, #tpu.memory_space<vmem>>, vector<98x128xbf16>,
    return
  }
  func.func @transform_0(%arg0: i32) -> (i32, i32) {
    %c0_i32 = arith.constant 0 : i32
    %c0_i32_0 = arith.constant 0 : i32
    return %arg0, %c0_i32 : i32, i32
  }
  func.func @transform_1(%arg0: i32) -> (i32, i32) {
    %c0_i32 = arith.constant 0 : i32
    %c0_i32_0 = arith.constant 0 : i32
    %c0_i32_1 = arith.constant 0 : i32
    return %c0_i32, %c0_i32_0 : i32, i32
  }
  func.func @transform_2(%arg0: i32) -> (i32, i32) {
    %c0_i32 = arith.constant 0 : i32
    %c0_i32_0 = arith.constant 0 : i32
    %c0_i32_1 = arith.constant 0 : i32
    return %c0_i32, %c0_i32_0 : i32, i32
  }
  func.func @transform_3(%arg0: i32) -> (i32, i32) {
    %c0_i32 = arith.constant 0 : i32
    %c0_i32_0 = arith.constant 0 : i32
    return %arg0, %c0_i32 : i32, i32
  }
  func.func @transform_4(%arg0: i32) -> (i32, i32) {
    %c0_i32 = arith.constant 0 : i32
    %c0_i32_0 = arith.constant 0 : i32
    return %arg0, %c0_i32 : i32, i32
  }
}

module attributes {stable_mosaic.version = 11 : i64} {
  func.func @_gemm_bias_res_kernel(%arg0: i32, %arg1: memref<98x1152xbf16, #tpu.memory_space<vmem>>, %arg2: memref<1152x128xbf16, #tpu.memory_space<vmem>>, %arg3: memref<1x128xf32, #tpu.memory_space<vmem>>, %arg4: memref<98x128xbf16, #tpu.memory_space<vmem>>, %arg5: memref<98x128xbf16, #tpu.memory_space<vmem>>) attributes {dimension_semantics = [#tpu.dimension_semantics<parallel>], iteration_bounds = array<i64: 1>, scalar_prefetch = 0 : i64, scratch_operands = 0 : i64, tpu.core_type = #tpu.core_type<tc>, window_params = [{transform_indices = @transform_0, window_bounds = array<i64: 98, 1152>}, {pipeline_mode = #tpu.pipeline_mode<synchronous>, transform_indices = @transform_1, window_bounds = array<i64: 1152, 128>}, {pipeline_mode = #tpu.pipeline_mode<synchronous>, transform_indices = @transform_2, window_bounds = array<i64: 1, 128>}, {transform_indices = @transform_3, window_bounds = array<i64: 98, 128>}, {transform_indices = @transform_4, window_bounds = array<i64: 98, 128>}]} {
    %c0 = arith.constant 0 : index
    %c0_0 = arith.constant 0 : index
    %0 = vector.load %arg1[%c0, %c0_0] : memref<98x1152xbf16, #tpu.memory_space<vmem>>, vector<98x1152xbf16>
    %c0_1 = arith.constant 0 : index
    %c0_2 = arith.constant 0 : index
    %1 = vector.load %arg2[%c0_1, %c0_2] : memref<1152x128xbf16, #tpu.memory_space<vmem>>, vector<1152x128xbf16>
    %cst = arith.constant dense<0.000000e+00> : vector<98x128xf32>
    %2 = tpu.matmul %0, %1, %cst {dimension_numbers = #tpu.dot_dimension_numbers<[1], [0], [0], [1], [0, 0, 1, 1], [], []>} : vector<98x1152xbf16>, vector<1152x128xbf16>, vector<98x128xf32> -> vector<98x128xf32>
    %c0_3 = arith.constant 0 : index
    %c0_4 = arith.constant 0 : index
    %3 = vector.load %arg3[%c0_3, %c0_4] : memref<1x128xf32, #tpu.memory_space<vmem>>, vector<1x128xf32>
    %4 = vector.broadcast %3 : vector<1x128xf32> to vector<98x128xf32>
    %5 = arith.addf %2, %4 : vector<98x128xf32>
    %c0_5 = arith.constant 0 : index
    %c0_6 = arith.constant 0 : index
    %6 = vector.load %arg4[%c0_5, %c0_6] : memref<98x128xbf16, #tpu.memory_space<vmem>>, vector<98x128xbf16>
    %7 = arith.extf %6 : vector<98x128xbf16> to vector<98x128xf32>
    %8 = arith.addf %5, %7 : vector<98x128xf32>
    %cst_7 = arith.constant 0.000000e+00 : f32
    %9 = vector.broadcast %cst_7 : f32 to vector<98x128xf32>
    %10 = arith.maximumf %8, %9 : vector<98x128xf32>
    %11 = arith.truncf %10 : vector<98x128xf32> to vector<98x128xbf16>
    %c0_8 = arith.constant 0 : index
    %c0_9 = arith.constant 0 : index
    %12 = vector.load %arg5[%c0_8, %c0_9] : memref<98x128xbf16, #tpu.memory_space<vmem>>, vector<98x128xbf16>
    tpu.vector_store %arg5[%c0_8, %c0_9], %11 {strides = array<i32>} : memref<98x128xbf16, #tpu.memory_space<vmem>>, vector<98x128xbf16>,
    return
  }
  func.func @transform_0(%arg0: i32) -> (i32, i32) {
    %c0_i32 = arith.constant 0 : i32
    %c0_i32_0 = arith.constant 0 : i32
    return %arg0, %c0_i32 : i32, i32
  }
  func.func @transform_1(%arg0: i32) -> (i32, i32) {
    %c0_i32 = arith.constant 0 : i32
    %c0_i32_0 = arith.constant 0 : i32
    %c0_i32_1 = arith.constant 0 : i32
    return %c0_i32, %c0_i32_0 : i32, i32
  }
  func.func @transform_2(%arg0: i32) -> (i32, i32) {
    %c0_i32 = arith.constant 0 : i32
    %c0_i32_0 = arith.constant 0 : i32
    %c0_i32_1 = arith.constant 0 : i32
    return %c0_i32, %c0_i32_0 : i32, i32
  }
  func.func @transform_3(%arg0: i32) -> (i32, i32) {
    %c0_i32 = arith.constant 0 : i32
    %c0_i32_0 = arith.constant 0 : i32
    return %arg0, %c0_i32 : i32, i32
  }
  func.func @transform_4(%arg0: i32) -> (i32, i32) {
    %c0_i32 = arith.constant 0 : i32
    %c0_i32_0 = arith.constant 0 : i32
    return %arg0, %c0_i32 : i32, i32
  }
}

module attributes {stable_mosaic.version = 11 : i64} {
  func.func @_fc_combine_kernel(%arg0: i32, %arg1: memref<2x1024xbf16, #tpu.memory_space<vmem>>, %arg2: memref<1024x128xbf16, #tpu.memory_space<vmem>>, %arg3: memref<1x128xf32, #tpu.memory_space<vmem>>, %arg4: memref<2x128xf32, #tpu.memory_space<vmem>>, %arg5: memref<128x128xf32, #tpu.memory_space<vmem>>, %arg6: memref<128x128xf32, #tpu.memory_space<vmem>>, %arg7: memref<1x128xf32, #tpu.memory_space<vmem>>, %arg8: memref<2x128xf32, #tpu.memory_space<vmem>>) attributes {dimension_semantics = [#tpu.dimension_semantics<parallel>], iteration_bounds = array<i64: 1>, scalar_prefetch = 0 : i64, scratch_operands = 0 : i64, tpu.core_type = #tpu.core_type<tc>, window_params = [{transform_indices = @transform_0, window_bounds = array<i64: 2, 1024>}, {pipeline_mode = #tpu.pipeline_mode<synchronous>, transform_indices = @transform_1, window_bounds = array<i64: 1024, 128>}, {pipeline_mode = #tpu.pipeline_mode<synchronous>, transform_indices = @transform_2, window_bounds = array<i64: 1, 128>}, {transform_indices = @transform_3, window_bounds = array<i64: 2, 128>}, {pipeline_mode = #tpu.pipeline_mode<synchronous>, transform_indices = @transform_4, window_bounds = array<i64: 128, 128>}, {pipeline_mode = #tpu.pipeline_mode<synchronous>, transform_indices = @transform_5, window_bounds = array<i64: 128, 128>}, {pipeline_mode = #tpu.pipeline_mode<synchronous>, transform_indices = @transform_6, window_bounds = array<i64: 1, 128>}, {transform_indices = @transform_7, window_bounds = array<i64: 2, 128>}]} {
    %c0 = arith.constant 0 : index
    %c0_0 = arith.constant 0 : index
    %0 = vector.load %arg1[%c0, %c0_0] : memref<2x1024xbf16, #tpu.memory_space<vmem>>, vector<2x1024xbf16>
    %c0_1 = arith.constant 0 : index
    %c0_2 = arith.constant 0 : index
    %1 = vector.load %arg2[%c0_1, %c0_2] : memref<1024x128xbf16, #tpu.memory_space<vmem>>, vector<1024x128xbf16>
    %cst = arith.constant dense<0.000000e+00> : vector<2x128xf32>
    %2 = tpu.matmul %0, %1, %cst {dimension_numbers = #tpu.dot_dimension_numbers<[1], [0], [0], [1], [0, 0, 1, 1], [], []>} : vector<2x1024xbf16>, vector<1024x128xbf16>, vector<2x128xf32> -> vector<2x128xf32>
    %c0_3 = arith.constant 0 : index
    %c0_4 = arith.constant 0 : index
    %3 = vector.load %arg3[%c0_3, %c0_4] : memref<1x128xf32, #tpu.memory_space<vmem>>, vector<1x128xf32>
    %4 = vector.broadcast %3 : vector<1x128xf32> to vector<2x128xf32>
    %5 = arith.addf %2, %4 : vector<2x128xf32>
    %cst_5 = arith.constant 0.000000e+00 : f32
    %6 = vector.broadcast %cst_5 : f32 to vector<2x128xf32>
    %7 = arith.maximumf %5, %6 : vector<2x128xf32>
    %c0_6 = arith.constant 0 : index
    %c0_7 = arith.constant 0 : index
    %8 = vector.load %arg5[%c0_6, %c0_7] : memref<128x128xf32, #tpu.memory_space<vmem>>, vector<128x128xf32>
    %cst_8 = arith.constant dense<0.000000e+00> : vector<2x128xf32>
    %9 = tpu.matmul %7, %8, %cst_8 {dimension_numbers = #tpu.dot_dimension_numbers<[1], [0], [0], [1], [0, 0, 1, 1], [], []>} : vector<2x128xf32>, vector<128x128xf32>, vector<2x128xf32> -> vector<2x128xf32>
    %c0_9 = arith.constant 0 : index
    %c0_10 = arith.constant 0 : index
    %10 = vector.load %arg4[%c0_9, %c0_10] : memref<2x128xf32, #tpu.memory_space<vmem>>, vector<2x128xf32>
    %c0_11 = arith.constant 0 : index
    %c0_12 = arith.constant 0 : index
    %11 = vector.load %arg6[%c0_11, %c0_12] : memref<128x128xf32, #tpu.memory_space<vmem>>, vector<128x128xf32>
    %cst_13 = arith.constant dense<0.000000e+00> : vector<2x128xf32>
    %12 = tpu.matmul %10, %11, %cst_13 {dimension_numbers = #tpu.dot_dimension_numbers<[1], [0], [0], [1], [0, 0, 1, 1], [], []>} : vector<2x128xf32>, vector<128x128xf32>, vector<2x128xf32> -> vector<2x128xf32>
    %13 = arith.addf %9, %12 : vector<2x128xf32>
    %c0_14 = arith.constant 0 : index
    %c0_15 = arith.constant 0 : index
    %14 = vector.load %arg7[%c0_14, %c0_15] : memref<1x128xf32, #tpu.memory_space<vmem>>, vector<1x128xf32>
    %15 = vector.broadcast %14 : vector<1x128xf32> to vector<2x128xf32>
    %16 = arith.addf %13, %15 : vector<2x128xf32>
    %17 = arith.negf %16 : vector<2x128xf32>
    %18 = math.exp %17 : vector<2x128xf32>
    %cst_16 = arith.constant 1.000000e+00 : f32
    %19 = vector.broadcast %cst_16 : f32 to vector<2x128xf32>
    %20 = arith.addf %19, %18 : vector<2x128xf32>
    %21 = arith.divf %19, %20 : vector<2x128xf32>
    %c0_17 = arith.constant 0 : index
    %c0_18 = arith.constant 0 : index
    %22 = vector.load %arg8[%c0_17, %c0_18] : memref<2x128xf32, #tpu.memory_space<vmem>>, vector<2x128xf32>
    tpu.vector_store %arg8[%c0_17, %c0_18], %21 {strides = array<i32>} : memref<2x128xf32, #tpu.memory_space<vmem>>, vector<2x128xf32>,
    return
  }
  func.func @transform_0(%arg0: i32) -> (i32, i32) {
    %c0_i32 = arith.constant 0 : i32
    %c0_i32_0 = arith.constant 0 : i32
    return %arg0, %c0_i32 : i32, i32
  }
  func.func @transform_1(%arg0: i32) -> (i32, i32) {
    %c0_i32 = arith.constant 0 : i32
    %c0_i32_0 = arith.constant 0 : i32
    %c0_i32_1 = arith.constant 0 : i32
    return %c0_i32, %c0_i32_0 : i32, i32
  }
  func.func @transform_2(%arg0: i32) -> (i32, i32) {
    %c0_i32 = arith.constant 0 : i32
    %c0_i32_0 = arith.constant 0 : i32
    %c0_i32_1 = arith.constant 0 : i32
    return %c0_i32, %c0_i32_0 : i32, i32
  }
  func.func @transform_3(%arg0: i32) -> (i32, i32) {
    %c0_i32 = arith.constant 0 : i32
    %c0_i32_0 = arith.constant 0 : i32
    return %arg0, %c0_i32 : i32, i32
  }
  func.func @transform_4(%arg0: i32) -> (i32, i32) {
    %c0_i32 = arith.constant 0 : i32
    %c0_i32_0 = arith.constant 0 : i32
    %c0_i32_1 = arith.constant 0 : i32
    return %c0_i32, %c0_i32_0 : i32, i32
  }
  func.func @transform_5(%arg0: i32) -> (i32, i32) {
    %c0_i32 = arith.constant 0 : i32
    %c0_i32_0 = arith.constant 0 : i32
    %c0_i32_1 = arith.constant 0 : i32
    return %c0_i32, %c0_i32_0 : i32, i32
  }
  func.func @transform_6(%arg0: i32) -> (i32, i32) {
    %c0_i32 = arith.constant 0 : i32
    %c0_i32_0 = arith.constant 0 : i32
    %c0_i32_1 = arith.constant 0 : i32
    return %c0_i32, %c0_i32_0 : i32, i32
  }
  func.func @transform_7(%arg0: i32) -> (i32, i32) {
    %c0_i32 = arith.constant 0 : i32
    %c0_i32_0 = arith.constant 0 : i32
    return %arg0, %c0_i32 : i32, i32
  }
}

</mosaic_0001>

<llo_original>
// kernel: forward.5
$region0: #{forward.5}
  #allocation0 [shape = 'u32[]', space=smem, size = 0x4, offset = 0x4, fixed_abs, tag = 'smem constant byte address 0x4 - core index']
  #allocation1 [shape = 'u32[144,128]{1,0:T(1,128)}', space=vmem, size = 0x12000, scoped, tag = 'internal scratch']
  %s0 = inlined_call_operand.vmem [shape: bf16[1536,128], index: 0, kind: input, shape index: {}]
  %s1 = inlined_call_operand.vmem [shape: bf16[128,128], index: 1, kind: input, shape index: {}]
  %s2 = inlined_call_operand.vmem [shape: f32[1,128], index: 2, kind: input, shape index: {}]
  %s3 = inlined_call_operand.vmem [shape: bf16[1536,128], index: 3, kind: output, shape index: {}]
  %s4 = sld [smem:[#allocation0]]
  $region45: #{forward.5} parent=0
    _
  %s6 = ssub.s32 1, %s4
  %s7 = scalar_select 0, %s6, %s4
  loop: start=0, step=1, limit=4
  $region2: #{forward.5} parent=0 // loop_pre_header
    _
  $region3: #{forward.5} parent=0 // loop_header
    %s9 = sphi 0, %s13
    %p10 = scmp.ge.s32.totalorder %s9, 4
    %s19 = sphi 0, %s21
    %s22 = sphi 0, %s19
    %s23 = sphi 0, %s22
    %s39 = sphi 0, %s23
    %s43 = sphi 0, %s43
    %s45 = sphi 0, %s43
    %s46 = sphi 0, %s45
    %s60 = sphi 0, %s46
    %s64 = sphi 0, %s64
    %s66 = sphi 0, %s64
    %s67 = sphi 0, %s66
    %s81 = sphi 0, %s67
    %s87 = sphi 0, %s89
    %s90 = sphi 0, %s87
    %s91 = sphi 0, %s90
    %s107 = sphi 0, %s91
  $region4: #{forward.5} parent=0 // loop_header_branch
    %12 = sbr.rel (%p10) target = $region8
  $region5: #{forward.5} parent=0 // loop_body
    %s14 = ssub.s32 %s9, 1
    %s15 = ssub.s32 %s9, 2
    %s16 = sadd.s32 %s9, 1
    %s17 = ssub.s32 %s9, %s16
    %p18 = scmp.eq.s32.totalorder %s17, 0
    %s20 = sadd.s32 %s19, 1
    %s21 = scalar_select %p18, %s19, %s20
    %p24 = pneg %p18
    %p25 = scmp.eq.s32.totalorder %s9, 1
    %p26 = por %p24, %p25
    %p27 = scmp.ne.s32.totalorder %s19, %s22
    %p28 = scmp.eq.s32.totalorder %s9, 0
    %p29 = por %p27, %p28
    %p30 = scmp.ne.s32.totalorder %s19, %s22
    %p31 = scmp.eq.s32.totalorder %s14, 1
    %p32 = por %p30, %p31
    %p33 = scmp.ne.s32.totalorder %s22, %s23
    %p34 = scmp.eq.s32.totalorder %s14, 0
    %p35 = por %p33, %p34
    %p36 = scmp.ne.s32.totalorder %s22, %s23
    %p37 = scmp.eq.s32.totalorder %s15, 1
    %p38 = por %p36, %p37
    %p40 = scmp.ne.s32.totalorder %s23, %s39
    %p41 = scmp.eq.s32.totalorder %s15, 0
    %p42 = por %p40, %p41
    %s44 = sadd.s32 %s43, 1
    %p47 = scmp.eq.s32.totalorder %s9, 1
    %p48 = scmp.ne.s32.totalorder %s43, %s45
    %p49 = scmp.eq.s32.totalorder %s9, 0
    %p50 = por %p48, %p49
    %p51 = scmp.ne.s32.totalorder %s43, %s45
    %p52 = scmp.eq.s32.totalorder %s14, 1
    %p53 = por %p51, %p52
    %p54 = scmp.ne.s32.totalorder %s45, %s46
    %p55 = scmp.eq.s32.totalorder %s14, 0
    %p56 = por %p54, %p55
    %p57 = scmp.ne.s32.totalorder %s45, %s46
    %p58 = scmp.eq.s32.totalorder %s15, 1
    %p59 = por %p57, %p58
    %p61 = scmp.ne.s32.totalorder %s46, %s60
    %p62 = scmp.eq.s32.totalorder %s15, 0
    %p63 = por %p61, %p62
    %s65 = sadd.s32 %s64, 1
    %p68 = scmp.eq.s32.totalorder %s9, 1
    %p69 = scmp.ne.s32.totalorder %s64, %s66
    %p70 = scmp.eq.s32.totalorder %s9, 0
    %p71 = por %p69, %p70
    %p72 = scmp.ne.s32.totalorder %s64, %s66
    %p73 = scmp.eq.s32.totalorder %s14, 1
    %p74 = por %p72, %p73
    %p75 = scmp.ne.s32.totalorder %s66, %s67
    %p76 = scmp.eq.s32.totalorder %s14, 0
    %p77 = por %p75, %p76
    %p78 = scmp.ne.s32.totalorder %s66, %s67
    %p79 = scmp.eq.s32.totalorder %s15, 1
    %p80 = por %p78, %p79
    %p82 = scmp.ne.s32.totalorder %s67, %s81
    %p83 = scmp.eq.s32.totalorder %s15, 0
    %p84 = por %p82, %p83
    %s85 = ssub.s32 %s9, %s16
    %p86 = scmp.eq.s32.totalorder %s85, 0
    %s88 = sadd.s32 %s87, 1
    %s89 = scalar_select %p86, %s87, %s88
    %p92 = pneg %p86
    %p93 = scmp.eq.s32.totalorder %s9, 1
    %p94 = por %p92, %p93
    %p95 = scmp.ne.s32.totalorder %s87, %s90
    %p96 = scmp.eq.s32.totalorder %s9, 0
    %p97 = por %p95, %p96
    %p98 = scmp.ne.s32.totalorder %s87, %s90
    %p99 = scmp.eq.s32.totalorder %s14, 1
    %p100 = por %p98, %p99
    %p101 = scmp.ne.s32.totalorder %s90, %s91
    %p102 = scmp.eq.s32.totalorder %s14, 0
    %p103 = por %p101, %p102
    %p104 = scmp.ne.s32.totalorder %s90, %s91
    %p105 = scmp.eq.s32.totalorder %s15, 1
    %p106 = por %p104, %p105
    %p108 = scmp.ne.s32.totalorder %s91, %s107
    %p109 = scmp.eq.s32.totalorder %s15, 0
    %p110 = por %p108, %p109
    %p111 = scmp.le.s32.totalorder 1, %s9
    %p112 = scmp.lt.s32.totalorder %s9, 3
    %p113 = pnand %p111, %p112
    %p114 = pneg %p113
    // Predicated region
    $region9: #{forward.5} parent=5 // pred_check
      _
    $region10: #{forward.5} parent=5 // pred_check_branch
      %116 = sbr.rel (%p113) target = $region12
    $region11: #{forward.5} parent=5 // pred_region
      %s117 = ssub.s32 %s9, 1
      // Predicated region
      $region13: #{forward.5} parent=11 // pred_check
        %p118 = pneg %p56
      $region14: #{forward.5} parent=11 // pred_check_branch
        %120 = sbr.rel (%p118) target = $region16
      $region15: #{forward.5} parent=11 // pred_region
        _
      $region16: #{forward.5} parent=11 // pred_fallthru
        _
      // Predicated region
      $region17: #{forward.5} parent=11 // pred_check
        %p121 = pneg %p77
      $region18: #{forward.5} parent=11 // pred_check_branch
        %123 = sbr.rel (%p121) target = $region20
      $region19: #{forward.5} parent=11 // pred_region
        _
      $region20: #{forward.5} parent=11 // pred_fallthru
        _
    $region12: #{forward.5} parent=5 // pred_fallthru
      _
    %p124 = scmp.lt.s32.totalorder %s9, 2
    // Predicated region
    $region21: #{forward.5} parent=5 // pred_check
      %p125 = pneg %p124
    $region22: #{forward.5} parent=5 // pred_check_branch
      %127 = sbr.rel (%p125) target = $region24
    $region23: #{forward.5} parent=5 // pred_region
      // Predicated region
      $region25: #{forward.5} parent=23 // pred_check
        %p128 = pneg %p29
      $region26: #{forward.5} parent=23 // pred_check_branch
        %130 = sbr.rel (%p128) target = $region28
      $region27: #{forward.5} parent=23 // pred_region
        %s131 = smul.u32 96, %s9
        %p132 = scmp.lt.s32.totalorder %s131, 191
        %s133 = scalar_select %p132, %s131, 191
        %s134 = smul.addr %s133, 4
        %s135 = scalar_lea.vmem %s0, %s134
        %s136 = smul.u32 96, %s9
      $region28: #{forward.5} parent=23 // pred_fallthru
        _
    $region24: #{forward.5} parent=5 // pred_fallthru
      _
    %p137 = scmp.le.s32.totalorder 1, %s9
    %p138 = scmp.lt.s32.totalorder %s9, 3
    %p139 = pnand %p137, %p138
    %p140 = pneg %p139
    // Predicated region
    $region29: #{forward.5} parent=5 // pred_check
      _
    $region30: #{forward.5} parent=5 // pred_check_branch
      %142 = sbr.rel (%p139) target = $region32
    $region31: #{forward.5} parent=5 // pred_region
      %s143 = ssub.s32 %s9, 1
      %s144 = smul.u32 96, %s14
      %p145 = scmp.lt.s32.totalorder %s144, 191
      %s146 = scalar_select %p145, %s144, 191
      %s147 = smul.addr %s146, 4
      %s148 = scalar_lea.vmem %s0, %s147
      %p149 = pneg %p35
      %p150 = pneg %p32
      %p151 = pneg %p56
      %p152 = pneg %p53
      %p153 = pneg %p77
      %p154 = pneg %p74
      %p155 = pneg %p103
      %p156 = pneg %p100
      %s157 = smul.u32 96, %s14
      %p158 = scmp.lt.s32.totalorder %s157, 191
      %s159 = scalar_select %p158, %s157, 191
      %s160 = smul.addr %s159, 4
      %s161 = scalar_lea.vmem %s3, %s160
      %s162 = smul.u32 96, %s14
      %p163 = scmp.lt.s32.totalorder %s162, 191
      %s164 = scalar_select %p163, %s162, 191
      %s165 = smul.addr %s164, 4
      %s166 = scalar_lea.vmem %s0, %s165
      %s167 = smul.u32 96, %s14
      %s168 = smul.u32 96, %s14
      %p169 = scmp.lt.s32.totalorder %s168, 191
      %s170 = scalar_select %p169, %s168, 191
      %s171 = smul.addr %s170, 4
      %s172 = scalar_lea.vmem %s3, %s171
      %s173 = smul.u32 96, %s14
      %v175 = vld [vmem:[%s166] sm:$0xf]
      %v176 = vld [vmem:[%s166 + $0x4] sm:$0xf]
      %v177 = vld [vmem:[%s166 + $0x8] sm:$0xf]
      %v178 = vld [vmem:[%s166 + $0xc] sm:$0xf]
      %v179 = vld [vmem:[%s166 + $0x10] sm:$0xf]
      %v180 = vld [vmem:[%s166 + $0x14] sm:$0xf]
      %v181 = vld [vmem:[%s166 + $0x18] sm:$0xf]
      %v182 = vld [vmem:[%s166 + $0x1c] sm:$0xf]
      %v183 = vld [vmem:[%s166 + $0x20] sm:$0xf]
      %v184 = vld [vmem:[%s166 + $0x24] sm:$0xf]
      %v185 = vld [vmem:[%s166 + $0x28] sm:$0xf]
      %v186 = vld [vmem:[%s166 + $0x2c] sm:$0xf]
      %v187 = vld [vmem:[%s166 + $0x30] sm:$0xf]
      %v188 = vld [vmem:[%s166 + $0x34] sm:$0xf]
      %v189 = vld [vmem:[%s166 + $0x38] sm:$0xf]
      %v190 = vld [vmem:[%s166 + $0x3c] sm:$0xf]
      %v191 = vld [vmem:[%s166 + $0x40] sm:$0xf]
      %v192 = vld [vmem:[%s166 + $0x44] sm:$0xf]
      %v193 = vld [vmem:[%s166 + $0x48] sm:$0xf]
      %v194 = vld [vmem:[%s166 + $0x4c] sm:$0xf]
      %v195 = vld [vmem:[%s166 + $0x50] sm:$0xf]
      %v196 = vld [vmem:[%s166 + $0x54] sm:$0xf]
      %v197 = vld [vmem:[%s166 + $0x58] sm:$0xf]
      %v198 = vld [vmem:[%s166 + $0x5c] sm:$0xf]
      %v199 = vld [vmem:[%s166 + $0x60] sm:$0xf]
      %v200 = vld [vmem:[%s166 + $0x64] sm:$0xf]
      %v201 = vld [vmem:[%s166 + $0x68] sm:$0xf]
      %v202 = vld [vmem:[%s166 + $0x6c] sm:$0xf]
      %v203 = vld [vmem:[%s166 + $0x70] sm:$0xf]
      %v204 = vld [vmem:[%s166 + $0x74] sm:$0xf]
      %v205 = vld [vmem:[%s166 + $0x78] sm:$0xf]
      %v206 = vld [vmem:[%s166 + $0x7c] sm:$0xf]
      %v207 = vld [vmem:[%s166 + $0x80] sm:$0xf]
      %v208 = vld [vmem:[%s166 + $0x84] sm:$0xf]
      %v209 = vld [vmem:[%s166 + $0x88] sm:$0xf]
      %v210 = vld [vmem:[%s166 + $0x8c] sm:$0xf]
      %v211 = vld [vmem:[%s166 + $0x90] sm:$0xf]
      %v212 = vld [vmem:[%s166 + $0x94] sm:$0xf]
      %v213 = vld [vmem:[%s166 + $0x98] sm:$0xf]
      %v214 = vld [vmem:[%s166 + $0x9c] sm:$0xf]
      %v215 = vld [vmem:[%s166 + $0xa0] sm:$0xf]
      %v216 = vld [vmem:[%s166 + $0xa4] sm:$0xf]
      %v217 = vld [vmem:[%s166 + $0xa8] sm:$0xf]
      %v218 = vld [vmem:[%s166 + $0xac] sm:$0xf]
      %v219 = vld [vmem:[%s166 + $0xb0] sm:$0xf]
      %v220 = vld [vmem:[%s166 + $0xb4] sm:$0xf]
      %v221 = vld [vmem:[%s166 + $0xb8] sm:$0xf]
      %v222 = vld [vmem:[%s166 + $0xbc] sm:$0xf]
      %v223 = vld [vmem:[%s166 + $0xc0] sm:$0xf]
      %v224 = vld [vmem:[%s166 + $0xc4] sm:$0xf]
      %v225 = vld [vmem:[%s166 + $0xc8] sm:$0xf]
      %v226 = vld [vmem:[%s166 + $0xcc] sm:$0xf]
      %v227 = vld [vmem:[%s166 + $0xd0] sm:$0xf]
      %v228 = vld [vmem:[%s166 + $0xd4] sm:$0xf]
      %v229 = vld [vmem:[%s166 + $0xd8] sm:$0xf]
      %v230 = vld [vmem:[%s166 + $0xdc] sm:$0xf]
      %v231 = vld [vmem:[%s166 + $0xe0] sm:$0xf]
      %v232 = vld [vmem:[%s166 + $0xe4] sm:$0xf]
      %v233 = vld [vmem:[%s166 + $0xe8] sm:$0xf]
      %v234 = vld [vmem:[%s166 + $0xec] sm:$0xf]
      %v235 = vld [vmem:[%s166 + $0xf0] sm:$0xf]
      %v236 = vld [vmem:[%s166 + $0xf4] sm:$0xf]
      %v237 = vld [vmem:[%s166 + $0xf8] sm:$0xf]
      %v238 = vld [vmem:[%s166 + $0xfc] sm:$0xf]
      %v239 = vld [vmem:[%s166 + $0x100] sm:$0xf]
      %v240 = vld [vmem:[%s166 + $0x104] sm:$0xf]
      %v241 = vld [vmem:[%s166 + $0x108] sm:$0xf]
      %v242 = vld [vmem:[%s166 + $0x10c] sm:$0xf]
      %v243 = vld [vmem:[%s166 + $0x110] sm:$0xf]
      %v244 = vld [vmem:[%s166 + $0x114] sm:$0xf]
      %v245 = vld [vmem:[%s166 + $0x118] sm:$0xf]
      %v246 = vld [vmem:[%s166 + $0x11c] sm:$0xf]
      %v247 = vld [vmem:[%s166 + $0x120] sm:$0xf]
      %v248 = vld [vmem:[%s166 + $0x124] sm:$0xf]
      %v249 = vld [vmem:[%s166 + $0x128] sm:$0xf]
      %v250 = vld [vmem:[%s166 + $0x12c] sm:$0xf]
      %v251 = vld [vmem:[%s166 + $0x130] sm:$0xf]
      %v252 = vld [vmem:[%s166 + $0x134] sm:$0xf]
      %v253 = vld [vmem:[%s166 + $0x138] sm:$0xf]
      %v254 = vld [vmem:[%s166 + $0x13c] sm:$0xf]
      %v255 = vld [vmem:[%s166 + $0x140] sm:$0xf]
      %v256 = vld [vmem:[%s166 + $0x144] sm:$0xf]
      %v257 = vld [vmem:[%s166 + $0x148] sm:$0xf]
      %v258 = vld [vmem:[%s166 + $0x14c] sm:$0xf]
      %v259 = vld [vmem:[%s166 + $0x150] sm:$0xf]
      %v260 = vld [vmem:[%s166 + $0x154] sm:$0xf]
      %v261 = vld [vmem:[%s166 + $0x158] sm:$0xf]
      %v262 = vld [vmem:[%s166 + $0x15c] sm:$0xf]
      %v263 = vld [vmem:[%s166 + $0x160] sm:$0xf]
      %v264 = vld [vmem:[%s166 + $0x164] sm:$0xf]
      %v265 = vld [vmem:[%s166 + $0x168] sm:$0xf]
      %v266 = vld [vmem:[%s166 + $0x16c] sm:$0xf]
      %v267 = vld [vmem:[%s166 + $0x170] sm:$0xf]
      %v268 = vld [vmem:[%s166 + $0x174] sm:$0xf]
      %v269 = vld [vmem:[%s166 + $0x178] sm:$0xf]
      %v270 = vld [vmem:[%s166 + $0x17c] sm:$0xf]
      %v271 = vld [vmem:[%s1] sm:$0xf]
      %v272 = vld [vmem:[%s1 + $0x4] sm:$0xf]
      %v273 = vld [vmem:[%s1 + $0x8] sm:$0xf]
      %v274 = vld [vmem:[%s1 + $0xc] sm:$0xf]
      %v275 = vld [vmem:[%s1 + $0x10] sm:$0xf]
      %v276 = vld [vmem:[%s1 + $0x14] sm:$0xf]
      %v277 = vld [vmem:[%s1 + $0x18] sm:$0xf]
      %v278 = vld [vmem:[%s1 + $0x1c] sm:$0xf]
      %v279 = vld [vmem:[%s1 + $0x20] sm:$0xf]
      %v280 = vld [vmem:[%s1 + $0x24] sm:$0xf]
      %v281 = vld [vmem:[%s1 + $0x28] sm:$0xf]
      %v282 = vld [vmem:[%s1 + $0x2c] sm:$0xf]
      %v283 = vld [vmem:[%s1 + $0x30] sm:$0xf]
      %v284 = vld [vmem:[%s1 + $0x34] sm:$0xf]
      %v285 = vld [vmem:[%s1 + $0x38] sm:$0xf]
      %v286 = vld [vmem:[%s1 + $0x3c] sm:$0xf]
      %v287 = vld [vmem:[%s2] sm:$0x1]
      %v289 = vlaneseq
      %v290 = vshrl.u32 %v289, 7
      %v291 = vsub.s32 0, %v290
      %v292 = vrot.slane %v287, %v291
      %v390 = vunpack.c.l.b16 %v175
      %v391 = vunpack.c.l.b16 %v176
      %v392 = vunpack.c.l.b16 %v177
      %v393 = vunpack.c.l.b16 %v178
      %v394 = vunpack.c.l.b16 %v179
      %v395 = vunpack.c.l.b16 %v180
      %v396 = vunpack.c.l.b16 %v181
      %v397 = vunpack.c.l.b16 %v182
      %v398 = vunpack.c.l.b16 %v183
      %v399 = vunpack.c.l.b16 %v184
      %v400 = vunpack.c.l.b16 %v185
      %v401 = vunpack.c.l.b16 %v186
      %v402 = vunpack.c.l.b16 %v187
      %v403 = vunpack.c.l.b16 %v188
      %v404 = vunpack.c.l.b16 %v189
      %v405 = vunpack.c.l.b16 %v190
      %v406 = vunpack.c.l.b16 %v191
      %v407 = vunpack.c.l.b16 %v192
      %v408 = vunpack.c.l.b16 %v193
      %v409 = vunpack.c.l.b16 %v194
      %v410 = vunpack.c.l.b16 %v195
      %v411 = vunpack.c.l.b16 %v196
      %v412 = vunpack.c.l.b16 %v197
      %v413 = vunpack.c.l.b16 %v198
      %v414 = vunpack.c.l.b16 %v199
      %v415 = vunpack.c.l.b16 %v200
      %v416 = vunpack.c.l.b16 %v201
      %v417 = vunpack.c.l.b16 %v202
      %v418 = vunpack.c.l.b16 %v203
      %v419 = vunpack.c.l.b16 %v204
      %v420 = vunpack.c.l.b16 %v205
      %v421 = vunpack.c.l.b16 %v206
      %v422 = vunpack.c.l.b16 %v207
      %v423 = vunpack.c.l.b16 %v208
      %v424 = vunpack.c.l.b16 %v209
      %v425 = vunpack.c.l.b16 %v210
      %v426 = vunpack.c.l.b16 %v211
      %v427 = vunpack.c.l.b16 %v212
      %v428 = vunpack.c.l.b16 %v213
      %v429 = vunpack.c.l.b16 %v214
      %v430 = vunpack.c.l.b16 %v215
      %v431 = vunpack.c.l.b16 %v216
      %v432 = vunpack.c.l.b16 %v217
      %v433 = vunpack.c.l.b16 %v218
      %v434 = vunpack.c.l.b16 %v219
      %v435 = vunpack.c.l.b16 %v220
      %v436 = vunpack.c.l.b16 %v221
      %v437 = vunpack.c.l.b16 %v222
      %v438 = vunpack.c.l.b16 %v223
      %v439 = vunpack.c.l.b16 %v224
      %v440 = vunpack.c.l.b16 %v225
      %v441 = vunpack.c.l.b16 %v226
      %v442 = vunpack.c.l.b16 %v227
      %v443 = vunpack.c.l.b16 %v228
      %v444 = vunpack.c.l.b16 %v229
      %v445 = vunpack.c.l.b16 %v230
      %v446 = vunpack.c.l.b16 %v231
      %v447 = vunpack.c.l.b16 %v232
      %v448 = vunpack.c.l.b16 %v233
      %v449 = vunpack.c.l.b16 %v234
      %v450 = vunpack.c.l.b16 %v235
      %v451 = vunpack.c.l.b16 %v236
      %v452 = vunpack.c.l.b16 %v237
      %v453 = vunpack.c.l.b16 %v238
      %v454 = vunpack.c.l.b16 %v239
      %v455 = vunpack.c.l.b16 %v240
      %v456 = vunpack.c.l.b16 %v241
      %v457 = vunpack.c.l.b16 %v242
      %v458 = vunpack.c.l.b16 %v243
      %v459 = vunpack.c.l.b16 %v244
      %v460 = vunpack.c.l.b16 %v245
      %v461 = vunpack.c.l.b16 %v246
      %v462 = vunpack.c.l.b16 %v247
      %v463 = vunpack.c.l.b16 %v248
      %v464 = vunpack.c.l.b16 %v249
      %v465 = vunpack.c.l.b16 %v250
      %v466 = vunpack.c.l.b16 %v251
      %v467 = vunpack.c.l.b16 %v252
      %v468 = vunpack.c.l.b16 %v253
      %v469 = vunpack.c.l.b16 %v254
      %v470 = vunpack.c.l.b16 %v255
      %v471 = vunpack.c.l.b16 %v256
      %v472 = vunpack.c.l.b16 %v257
      %v473 = vunpack.c.l.b16 %v258
      %v474 = vunpack.c.l.b16 %v259
      %v475 = vunpack.c.l.b16 %v260
      %v476 = vunpack.c.l.b16 %v261
      %v477 = vunpack.c.l.b16 %v262
      %v478 = vunpack.c.l.b16 %v263
      %v479 = vunpack.c.l.b16 %v264
      %v480 = vunpack.c.l.b16 %v265
      %v481 = vunpack.c.l.b16 %v266
      %v482 = vunpack.c.l.b16 %v267
      %v483 = vunpack.c.l.b16 %v268
      %v484 = vunpack.c.l.b16 %v269
      %v485 = vunpack.c.l.b16 %v270
      %v486 = vpack.c.b16 %v391, %v390
      %v487 = vpack.c.b16 %v393, %v392
      %v488 = vpack.c.b16 %v395, %v394
      %v489 = vpack.c.b16 %v397, %v396
      %v490 = vpack.c.b16 %v399, %v398
      %v491 = vpack.c.b16 %v401, %v400
      %v492 = vpack.c.b16 %v403, %v402
      %v493 = vpack.c.b16 %v405, %v404
      %v494 = vpack.c.b16 %v407, %v406
      %v495 = vpack.c.b16 %v409, %v408
      %v496 = vpack.c.b16 %v411, %v410
      %v497 = vpack.c.b16 %v413, %v412
      %v498 = vpack.c.b16 %v415, %v414
      %v499 = vpack.c.b16 %v417, %v416
      %v500 = vpack.c.b16 %v419, %v418
      %v501 = vpack.c.b16 %v421, %v420
      %v502 = vpack.c.b16 %v423, %v422
      %v503 = vpack.c.b16 %v425, %v424
      %v504 = vpack.c.b16 %v427, %v426
      %v505 = vpack.c.b16 %v429, %v428
      %v506 = vpack.c.b16 %v431, %v430
      %v507 = vpack.c.b16 %v433, %v432
      %v508 = vpack.c.b16 %v435, %v434
      %v509 = vpack.c.b16 %v437, %v436
      %v510 = vpack.c.b16 %v439, %v438
      %v511 = vpack.c.b16 %v441, %v440
      %v512 = vpack.c.b16 %v443, %v442
      %v513 = vpack.c.b16 %v445, %v444
      %v514 = vpack.c.b16 %v447, %v446
      %v515 = vpack.c.b16 %v449, %v448
      %v516 = vpack.c.b16 %v451, %v450
      %v517 = vpack.c.b16 %v453, %v452
      %v518 = vpack.c.b16 %v455, %v454
      %v519 = vpack.c.b16 %v457, %v456
      %v520 = vpack.c.b16 %v459, %v458
      %v521 = vpack.c.b16 %v461, %v460
      %v522 = vpack.c.b16 %v463, %v462
      %v523 = vpack.c.b16 %v465, %v464
      %v524 = vpack.c.b16 %v467, %v466
      %v525 = vpack.c.b16 %v469, %v468
      %v526 = vpack.c.b16 %v471, %v470
      %v527 = vpack.c.b16 %v473, %v472
      %v528 = vpack.c.b16 %v475, %v474
      %v529 = vpack.c.b16 %v477, %v476
      %v530 = vpack.c.b16 %v479, %v478
      %v531 = vpack.c.b16 %v481, %v480
      %v532 = vpack.c.b16 %v483, %v482
      %v533 = vpack.c.b16 %v485, %v484
      %v598 = vunpack.c.l.b16 %v271
      %v599 = vunpack.c.l.b16 %v272
      %v600 = vunpack.c.l.b16 %v273
      %v601 = vunpack.c.l.b16 %v274
      %v602 = vunpack.c.l.b16 %v275
      %v603 = vunpack.c.l.b16 %v276
      %v604 = vunpack.c.l.b16 %v277
      %v605 = vunpack.c.l.b16 %v278
      %v606 = vunpack.c.l.b16 %v279
      %v607 = vunpack.c.l.b16 %v280
      %v608 = vunpack.c.l.b16 %v281
      %v609 = vunpack.c.l.b16 %v282
      %v610 = vunpack.c.l.b16 %v283
      %v611 = vunpack.c.l.b16 %v284
      %v612 = vunpack.c.l.b16 %v285
      %v613 = vunpack.c.l.b16 %v286
      %v614 = vpack.c.b16 %v599, %v598
      %v615 = vpack.c.b16 %v601, %v600
      %v616 = vpack.c.b16 %v603, %v602
      %v617 = vpack.c.b16 %v605, %v604
      %v618 = vpack.c.b16 %v607, %v606
      %v619 = vpack.c.b16 %v609, %v608
      %v620 = vpack.c.b16 %v611, %v610
      %v621 = vpack.c.b16 %v613, %v612
      %630 = vmatprep.subr.bf16.mxu0 0
      %631 = vmatpush1.bf16.msra.mxu0 %v614
      %632 = vmatprep.subr.bf16.mxu0 0
      %633 = vmatpush1.bf16.msra.mxu0 %v615
      %634 = vmatprep.subr.bf16.mxu0 0
      %635 = vmatpush1.bf16.msra.mxu0 %v616
      %636 = vmatprep.subr.bf16.mxu0 0
      %637 = vmatpush1.bf16.msra.mxu0 %v617
      %638 = vmatprep.subr.bf16.mxu0 0
      %639 = vmatpush1.bf16.msra.mxu0 %v618
      %640 = vmatprep.subr.bf16.mxu0 0
      %641 = vmatpush1.bf16.msra.mxu0 %v619
      %642 = vmatprep.subr.bf16.mxu0 0
      %643 = vmatpush1.bf16.msra.mxu0 %v620
      %644 = vmatprep.subr.bf16.mxu0 0
      %645 = vmatpush1.bf16.msra.mxu0 %v621
      %646 = vmatprep.subr.bf16.mxu0 0
      %647 = vmatpush1.bf16.msra.mxu0 0
      %648 = vmatprep.subr.bf16.mxu0 0
      %649 = vmatpush1.bf16.msra.mxu0 0
      %650 = vmatprep.subr.bf16.mxu0 0
      %651 = vmatpush1.bf16.msra.mxu0 0
      %652 = vmatprep.subr.bf16.mxu0 0
      %653 = vmatpush1.bf16.msra.mxu0 0
      %654 = vmatprep.subr.bf16.mxu0 0
      %655 = vmatpush1.bf16.msra.mxu0 0
      %656 = vmatprep.subr.bf16.mxu0 0
      %657 = vmatpush1.bf16.msra.mxu0 0
      %658 = vmatprep.subr.bf16.mxu0 0
      %659 = vmatpush1.bf16.msra.mxu0 0
      %660 = vmatprep.subr.bf16.mxu0 0
      %661 = vmatpush1.bf16.msra.mxu0 0
      %662 = vmatprep.mubr.bf16.mxu0 0
      %663 = vmatmul.mubr.bf16.gmra.mrb[0].mxu0 %v486
      %v664 = vpop.f32.mrb[0].mxu0
      %v665 = vadd.f32 %v292, %v664
      %v666 = vpop.f32.mrb[0].mxu0
      %v667 = vpop.f32.mrb[0].mxu0
      %v668 = vadd.f32 %v292, %v667
      %v669 = vpop.f32.mrb[0].mxu0
      %670 = vmatprep.mubr.bf16.mxu0 0
      %671 = vmatmul.mubr.bf16.gmra.mrb[0].mxu0 %v487
      %v672 = vpop.f32.mrb[0].mxu0
      %v673 = vadd.f32 %v292, %v672
      %v674 = vpop.f32.mrb[0].mxu0
      %v675 = vpop.f32.mrb[0].mxu0
      %v676 = vadd.f32 %v292, %v675
      %v677 = vpop.f32.mrb[0].mxu0
      %678 = vmatprep.mubr.bf16.mxu0 0
      %679 = vmatmul.mubr.bf16.gmra.mrb[0].mxu0 %v488
      %v680 = vpop.f32.mrb[0].mxu0
      %v681 = vadd.f32 %v292, %v680
      %v682 = vpop.f32.mrb[0].mxu0
      %v683 = vpop.f32.mrb[0].mxu0
      %v684 = vadd.f32 %v292, %v683
      %v685 = vpop.f32.mrb[0].mxu0
      %686 = vmatprep.mubr.bf16.mxu0 0
      %687 = vmatmul.mubr.bf16.gmra.mrb[0].mxu0 %v489
      %v688 = vpop.f32.mrb[0].mxu0
      %v689 = vadd.f32 %v292, %v688
      %v690 = vpop.f32.mrb[0].mxu0
      %v691 = vpop.f32.mrb[0].mxu0
      %v692 = vadd.f32 %v292, %v691
      %v693 = vpop.f32.mrb[0].mxu0
      %694 = vmatprep.mubr.bf16.mxu0 0
      %695 = vmatmul.mubr.bf16.gmra.mrb[0].mxu0 %v490
      %v696 = vpop.f32.mrb[0].mxu0
      %v697 = vadd.f32 %v292, %v696
      %v698 = vpop.f32.mrb[0].mxu0
      %v699 = vpop.f32.mrb[0].mxu0
      %v700 = vadd.f32 %v292, %v699
      %v701 = vpop.f32.mrb[0].mxu0
      %702 = vmatprep.mubr.bf16.mxu0 0
      %703 = vmatmul.mubr.bf16.gmra.mrb[0].mxu0 %v491
      %v704 = vpop.f32.mrb[0].mxu0
      %v705 = vadd.f32 %v292, %v704
      %v706 = vpop.f32.mrb[0].mxu0
      %v707 = vpop.f32.mrb[0].mxu0
      %v708 = vadd.f32 %v292, %v707
      %v709 = vpop.f32.mrb[0].mxu0
      %710 = vmatprep.mubr.bf16.mxu0 0
      %711 = vmatmul.mubr.bf16.gmra.mrb[0].mxu0 %v492
      %v712 = vpop.f32.mrb[0].mxu0
      %v713 = vadd.f32 %v292, %v712
      %v714 = vpop.f32.mrb[0].mxu0
      %v715 = vpop.f32.mrb[0].mxu0
      %v716 = vadd.f32 %v292, %v715
      %v717 = vpop.f32.mrb[0].mxu0
      %718 = vmatprep.mubr.bf16.mxu0 0
      %719 = vmatmul.mubr.bf16.gmra.mrb[0].mxu0 %v493
      %v720 = vpop.f32.mrb[0].mxu0
      %v721 = vadd.f32 %v292, %v720
      %v722 = vpop.f32.mrb[0].mxu0
      %v723 = vpop.f32.mrb[0].mxu0
      %v724 = vadd.f32 %v292, %v723
      %v725 = vpop.f32.mrb[0].mxu0
      %726 = vmatprep.mubr.bf16.mxu0 0
      %727 = vmatmul.mubr.bf16.gmra.mrb[0].mxu0 %v494
      %v728 = vpop.f32.mrb[0].mxu0
      %v729 = vadd.f32 %v292, %v728
      %v730 = vpop.f32.mrb[0].mxu0
      %v731 = vpop.f32.mrb[0].mxu0
      %v732 = vadd.f32 %v292, %v731
      %v733 = vpop.f32.mrb[0].mxu0
      %734 = vmatprep.mubr.bf16.mxu0 0
      %735 = vmatmul.mubr.bf16.gmra.mrb[0].mxu0 %v495
      %v736 = vpop.f32.mrb[0].mxu0
      %v737 = vadd.f32 %v292, %v736
      %v738 = vpop.f32.mrb[0].mxu0
      %v739 = vpop.f32.mrb[0].mxu0
      %v740 = vadd.f32 %v292, %v739
      %v741 = vpop.f32.mrb[0].mxu0
      %742 = vmatprep.mubr.bf16.mxu0 0
      %743 = vmatmul.mubr.bf16.gmra.mrb[0].mxu0 %v496
      %v744 = vpop.f32.mrb[0].mxu0
      %v745 = vadd.f32 %v292, %v744
      %v746 = vpop.f32.mrb[0].mxu0
      %v747 = vpop.f32.mrb[0].mxu0
      %v748 = vadd.f32 %v292, %v747
      %v749 = vpop.f32.mrb[0].mxu0
      %750 = vmatprep.mubr.bf16.mxu0 0
      %751 = vmatmul.mubr.bf16.gmra.mrb[0].mxu0 %v497
      %v752 = vpop.f32.mrb[0].mxu0
      %v753 = vadd.f32 %v292, %v752
      %v754 = vpop.f32.mrb[0].mxu0
      %v755 = vpop.f32.mrb[0].mxu0
      %v756 = vadd.f32 %v292, %v755
      %v757 = vpop.f32.mrb[0].mxu0
      %758 = vmatprep.mubr.bf16.mxu0 0
      %759 = vmatmul.mubr.bf16.gmra.mrb[0].mxu0 %v498
      %v760 = vpop.f32.mrb[0].mxu0
      %v761 = vadd.f32 %v292, %v760
      %v762 = vpop.f32.mrb[0].mxu0
      %v763 = vpop.f32.mrb[0].mxu0
      %v764 = vadd.f32 %v292, %v763
      %v765 = vpop.f32.mrb[0].mxu0
      %766 = vmatprep.mubr.bf16.mxu0 0
      %767 = vmatmul.mubr.bf16.gmra.mrb[0].mxu0 %v499
      %v768 = vpop.f32.mrb[0].mxu0
      %v769 = vadd.f32 %v292, %v768
      %v770 = vpop.f32.mrb[0].mxu0
      %v771 = vpop.f32.mrb[0].mxu0
      %v772 = vadd.f32 %v292, %v771
      %v773 = vpop.f32.mrb[0].mxu0
      %774 = vmatprep.mubr.bf16.mxu0 0
      %775 = vmatmul.mubr.bf16.gmra.mrb[0].mxu0 %v500
      %v776 = vpop.f32.mrb[0].mxu0
      %v777 = vadd.f32 %v292, %v776
      %v778 = vpop.f32.mrb[0].mxu0
      %v779 = vpop.f32.mrb[0].mxu0
      %v780 = vadd.f32 %v292, %v779
      %v781 = vpop.f32.mrb[0].mxu0
      %782 = vmatprep.mubr.bf16.mxu0 0
      %783 = vmatmul.mubr.bf16.gmra.mrb[0].mxu0 %v501
      %v784 = vpop.f32.mrb[0].mxu0
      %v785 = vadd.f32 %v292, %v784
      %v786 = vpop.f32.mrb[0].mxu0
      %v787 = vpop.f32.mrb[0].mxu0
      %v788 = vadd.f32 %v292, %v787
      %v789 = vpop.f32.mrb[0].mxu0
      %790 = vmatprep.mubr.bf16.mxu0 0
      %791 = vmatmul.mubr.bf16.gmra.mrb[0].mxu0 %v502
      %v792 = vpop.f32.mrb[0].mxu0
      %v793 = vadd.f32 %v292, %v792
      %v794 = vpop.f32.mrb[0].mxu0
      %v795 = vpop.f32.mrb[0].mxu0
      %v796 = vadd.f32 %v292, %v795
      %v797 = vpop.f32.mrb[0].mxu0
      %798 = vmatprep.mubr.bf16.mxu0 0
      %799 = vmatmul.mubr.bf16.gmra.mrb[0].mxu0 %v503
      %v800 = vpop.f32.mrb[0].mxu0
      %v801 = vadd.f32 %v292, %v800
      %v802 = vpop.f32.mrb[0].mxu0
      %v803 = vpop.f32.mrb[0].mxu0
      %v804 = vadd.f32 %v292, %v803
      %v805 = vpop.f32.mrb[0].mxu0
      %806 = vmatprep.mubr.bf16.mxu0 0
      %807 = vmatmul.mubr.bf16.gmra.mrb[0].mxu0 %v504
      %v808 = vpop.f32.mrb[0].mxu0
      %v809 = vadd.f32 %v292, %v808
      %v810 = vpop.f32.mrb[0].mxu0
      %v811 = vpop.f32.mrb[0].mxu0
      %v812 = vadd.f32 %v292, %v811
      %v813 = vpop.f32.mrb[0].mxu0
      %814 = vmatprep.mubr.bf16.mxu0 0
      %815 = vmatmul.mubr.bf16.gmra.mrb[0].mxu0 %v505
      %v816 = vpop.f32.mrb[0].mxu0
      %v817 = vadd.f32 %v292, %v816
      %v818 = vpop.f32.mrb[0].mxu0
      %v819 = vpop.f32.mrb[0].mxu0
      %v820 = vadd.f32 %v292, %v819
      %v821 = vpop.f32.mrb[0].mxu0
      %822 = vmatprep.mubr.bf16.mxu0 0
      %823 = vmatmul.mubr.bf16.gmra.mrb[0].mxu0 %v506
      %v824 = vpop.f32.mrb[0].mxu0
      %v825 = vadd.f32 %v292, %v824
      %v826 = vpop.f32.mrb[0].mxu0
      %v827 = vpop.f32.mrb[0].mxu0
      %v828 = vadd.f32 %v292, %v827
      %v829 = vpop.f32.mrb[0].mxu0
      %830 = vmatprep.mubr.bf16.mxu0 0
      %831 = vmatmul.mubr.bf16.gmra.mrb[0].mxu0 %v507
      %v832 = vpop.f32.mrb[0].mxu0
      %v833 = vadd.f32 %v292, %v832
      %v834 = vpop.f32.mrb[0].mxu0
      %v835 = vpop.f32.mrb[0].mxu0
      %v836 = vadd.f32 %v292, %v835
      %v837 = vpop.f32.mrb[0].mxu0
      %838 = vmatprep.mubr.bf16.mxu0 0
      %839 = vmatmul.mubr.bf16.gmra.mrb[0].mxu0 %v508
      %v840 = vpop.f32.mrb[0].mxu0
      %v841 = vadd.f32 %v292, %v840
      %v842 = vpop.f32.mrb[0].mxu0
      %v843 = vpop.f32.mrb[0].mxu0
      %v844 = vadd.f32 %v292, %v843
      %v845 = vpop.f32.mrb[0].mxu0
      %846 = vmatprep.mubr.bf16.mxu0 0
      %847 = vmatmul.mubr.bf16.gmra.mrb[0].mxu0 %v509
      %v848 = vpop.f32.mrb[0].mxu0
      %v849 = vadd.f32 %v292, %v848
      %v850 = vpop.f32.mrb[0].mxu0
      %v851 = vpop.f32.mrb[0].mxu0
      %v852 = vadd.f32 %v292, %v851
      %v853 = vpop.f32.mrb[0].mxu0
      %854 = vmatprep.mubr.bf16.mxu0 0
      %855 = vmatmul.mubr.bf16.gmra.mrb[0].mxu0 %v510
      %v856 = vpop.f32.mrb[0].mxu0
      %v857 = vadd.f32 %v292, %v856
      %v858 = vpop.f32.mrb[0].mxu0
      %v859 = vpop.f32.mrb[0].mxu0
      %v860 = vadd.f32 %v292, %v859
      %v861 = vpop.f32.mrb[0].mxu0
      %862 = vmatprep.mubr.bf16.mxu0 0
      %863 = vmatmul.mubr.bf16.gmra.mrb[0].mxu0 %v511
      %v864 = vpop.f32.mrb[0].mxu0
      %v865 = vadd.f32 %v292, %v864
      %v866 = vpop.f32.mrb[0].mxu0
      %v867 = vpop.f32.mrb[0].mxu0
      %v868 = vadd.f32 %v292, %v867
      %v869 = vpop.f32.mrb[0].mxu0
      %870 = vmatprep.mubr.bf16.mxu0 0
      %871 = vmatmul.mubr.bf16.gmra.mrb[0].mxu0 %v512
      %v872 = vpop.f32.mrb[0].mxu0
      %v873 = vadd.f32 %v292, %v872
      %v874 = vpop.f32.mrb[0].mxu0
      %v875 = vpop.f32.mrb[0].mxu0
      %v876 = vadd.f32 %v292, %v875
      %v877 = vpop.f32.mrb[0].mxu0
      %878 = vmatprep.mubr.bf16.mxu0 0
      %879 = vmatmul.mubr.bf16.gmra.mrb[0].mxu0 %v513
      %v880 = vpop.f32.mrb[0].mxu0
      %v881 = vadd.f32 %v292, %v880
      %v882 = vpop.f32.mrb[0].mxu0
      %v883 = vpop.f32.mrb[0].mxu0
      %v884 = vadd.f32 %v292, %v883
      %v885 = vpop.f32.mrb[0].mxu0
      %886 = vmatprep.mubr.bf16.mxu0 0
      %887 = vmatmul.mubr.bf16.gmra.mrb[0].mxu0 %v514
      %v888 = vpop.f32.mrb[0].mxu0
      %v889 = vadd.f32 %v292, %v888
      %v890 = vpop.f32.mrb[0].mxu0
      %v891 = vpop.f32.mrb[0].mxu0
      %v892 = vadd.f32 %v292, %v891
      %v893 = vpop.f32.mrb[0].mxu0
      %894 = vmatprep.mubr.bf16.mxu0 0
      %895 = vmatmul.mubr.bf16.gmra.mrb[0].mxu0 %v515
      %v896 = vpop.f32.mrb[0].mxu0
      %v897 = vadd.f32 %v292, %v896
      %v898 = vpop.f32.mrb[0].mxu0
      %v899 = vpop.f32.mrb[0].mxu0
      %v900 = vadd.f32 %v292, %v899
      %v901 = vpop.f32.mrb[0].mxu0
      %902 = vmatprep.mubr.bf16.mxu0 0
      %903 = vmatmul.mubr.bf16.gmra.mrb[0].mxu0 %v516
      %v904 = vpop.f32.mrb[0].mxu0
      %v905 = vadd.f32 %v292, %v904
      %v906 = vpop.f32.mrb[0].mxu0
      %v907 = vpop.f32.mrb[0].mxu0
      %v908 = vadd.f32 %v292, %v907
      %v909 = vpop.f32.mrb[0].mxu0
      %910 = vmatprep.mubr.bf16.mxu0 0
      %911 = vmatmul.mubr.bf16.gmra.mrb[0].mxu0 %v517
      %v912 = vpop.f32.mrb[0].mxu0
      %v913 = vadd.f32 %v292, %v912
      %v914 = vpop.f32.mrb[0].mxu0
      %v915 = vpop.f32.mrb[0].mxu0
      %v916 = vadd.f32 %v292, %v915
      %v917 = vpop.f32.mrb[0].mxu0
      %918 = vmatprep.mubr.bf16.mxu0 0
      %919 = vmatmul.mubr.bf16.gmra.mrb[0].mxu0 %v518
      %v920 = vpop.f32.mrb[0].mxu0
      %v921 = vadd.f32 %v292, %v920
      %v922 = vpop.f32.mrb[0].mxu0
      %v923 = vpop.f32.mrb[0].mxu0
      %v924 = vadd.f32 %v292, %v923
      %v925 = vpop.f32.mrb[0].mxu0
      %926 = vmatprep.mubr.bf16.mxu0 0
      %927 = vmatmul.mubr.bf16.gmra.mrb[0].mxu0 %v519
      %v928 = vpop.f32.mrb[0].mxu0
      %v929 = vadd.f32 %v292, %v928
      %v930 = vpop.f32.mrb[0].mxu0
      %v931 = vpop.f32.mrb[0].mxu0
      %v932 = vadd.f32 %v292, %v931
      %v933 = vpop.f32.mrb[0].mxu0
      %934 = vmatprep.mubr.bf16.mxu0 0
      %935 = vmatmul.mubr.bf16.gmra.mrb[0].mxu0 %v520
      %v936 = vpop.f32.mrb[0].mxu0
      %v937 = vadd.f32 %v292, %v936
      %v938 = vpop.f32.mrb[0].mxu0
      %v939 = vpop.f32.mrb[0].mxu0
      %v940 = vadd.f32 %v292, %v939
      %v941 = vpop.f32.mrb[0].mxu0
      %942 = vmatprep.mubr.bf16.mxu0 0
      %943 = vmatmul.mubr.bf16.gmra.mrb[0].mxu0 %v521
      %v944 = vpop.f32.mrb[0].mxu0
      %v945 = vadd.f32 %v292, %v944
      %v946 = vpop.f32.mrb[0].mxu0
      %v947 = vpop.f32.mrb[0].mxu0
      %v948 = vadd.f32 %v292, %v947
      %v949 = vpop.f32.mrb[0].mxu0
      %950 = vmatprep.mubr.bf16.mxu0 0
      %951 = vmatmul.mubr.bf16.gmra.mrb[0].mxu0 %v522
      %v952 = vpop.f32.mrb[0].mxu0
      %v953 = vadd.f32 %v292, %v952
      %v954 = vpop.f32.mrb[0].mxu0
      %v955 = vpop.f32.mrb[0].mxu0
      %v956 = vadd.f32 %v292, %v955
      %v957 = vpop.f32.mrb[0].mxu0
      %958 = vmatprep.mubr.bf16.mxu0 0
      %959 = vmatmul.mubr.bf16.gmra.mrb[0].mxu0 %v523
      %v960 = vpop.f32.mrb[0].mxu0
      %v961 = vadd.f32 %v292, %v960
      %v962 = vpop.f32.mrb[0].mxu0
      %v963 = vpop.f32.mrb[0].mxu0
      %v964 = vadd.f32 %v292, %v963
      %v965 = vpop.f32.mrb[0].mxu0
      %966 = vmatprep.mubr.bf16.mxu0 0
      %967 = vmatmul.mubr.bf16.gmra.mrb[0].mxu0 %v524
      %v968 = vpop.f32.mrb[0].mxu0
      %v969 = vadd.f32 %v292, %v968
      %v970 = vpop.f32.mrb[0].mxu0
      %v971 = vpop.f32.mrb[0].mxu0
      %v972 = vadd.f32 %v292, %v971
      %v973 = vpop.f32.mrb[0].mxu0
      %974 = vmatprep.mubr.bf16.mxu0 0
      %975 = vmatmul.mubr.bf16.gmra.mrb[0].mxu0 %v525
      %v976 = vpop.f32.mrb[0].mxu0
      %v977 = vadd.f32 %v292, %v976
      %v978 = vpop.f32.mrb[0].mxu0
      %v979 = vpop.f32.mrb[0].mxu0
      %v980 = vadd.f32 %v292, %v979
      %v981 = vpop.f32.mrb[0].mxu0
      %982 = vmatprep.mubr.bf16.mxu0 0
      %983 = vmatmul.mubr.bf16.gmra.mrb[0].mxu0 %v526
      %v984 = vpop.f32.mrb[0].mxu0
      %v985 = vadd.f32 %v292, %v984
      %v986 = vpop.f32.mrb[0].mxu0
      %v987 = vpop.f32.mrb[0].mxu0
      %v988 = vadd.f32 %v292, %v987
      %v989 = vpop.f32.mrb[0].mxu0
      %990 = vmatprep.mubr.bf16.mxu0 0
      %991 = vmatmul.mubr.bf16.gmra.mrb[0].mxu0 %v527
      %v992 = vpop.f32.mrb[0].mxu0
      %v993 = vadd.f32 %v292, %v992
      %v994 = vpop.f32.mrb[0].mxu0
      %v995 = vpop.f32.mrb[0].mxu0
      %v996 = vadd.f32 %v292, %v995
      %v997 = vpop.f32.mrb[0].mxu0
      %998 = vmatprep.mubr.bf16.mxu0 0
      %999 = vmatmul.mubr.bf16.gmra.mrb[0].mxu0 %v528
      %v1000 = vpop.f32.mrb[0].mxu0
      %v1001 = vadd.f32 %v292, %v1000
      %v1002 = vpop.f32.mrb[0].mxu0
      %v1003 = vpop.f32.mrb[0].mxu0
      %v1004 = vadd.f32 %v292, %v1003
      %v1005 = vpop.f32.mrb[0].mxu0
      %1006 = vmatprep.mubr.bf16.mxu0 0
      %1007 = vmatmul.mubr.bf16.gmra.mrb[0].mxu0 %v529
      %v1008 = vpop.f32.mrb[0].mxu0
      %v1009 = vadd.f32 %v292, %v1008
      %v1010 = vpop.f32.mrb[0].mxu0
      %v1011 = vpop.f32.mrb[0].mxu0
      %v1012 = vadd.f32 %v292, %v1011
      %v1013 = vpop.f32.mrb[0].mxu0
      %1014 = vmatprep.mubr.bf16.mxu0 0
      %1015 = vmatmul.mubr.bf16.gmra.mrb[0].mxu0 %v530
      %v1016 = vpop.f32.mrb[0].mxu0
      %v1017 = vadd.f32 %v292, %v1016
      %v1018 = vpop.f32.mrb[0].mxu0
      %v1019 = vpop.f32.mrb[0].mxu0
      %v1020 = vadd.f32 %v292, %v1019
      %v1021 = vpop.f32.mrb[0].mxu0
      %1022 = vmatprep.mubr.bf16.mxu0 0
      %1023 = vmatmul.mubr.bf16.gmra.mrb[0].mxu0 %v531
      %v1024 = vpop.f32.mrb[0].mxu0
      %v1025 = vadd.f32 %v292, %v1024
      %v1026 = vpop.f32.mrb[0].mxu0
      %v1027 = vpop.f32.mrb[0].mxu0
      %v1028 = vadd.f32 %v292, %v1027
      %v1029 = vpop.f32.mrb[0].mxu0
      %1030 = vmatprep.mubr.bf16.mxu0 0
      %1031 = vmatmul.mubr.bf16.gmra.mrb[0].mxu0 %v532
      %v1032 = vpop.f32.mrb[0].mxu0
      %v1033 = vadd.f32 %v292, %v1032
      %v1034 = vpop.f32.mrb[0].mxu0
      %v1035 = vpop.f32.mrb[0].mxu0
      %v1036 = vadd.f32 %v292, %v1035
      %v1037 = vpop.f32.mrb[0].mxu0
      %1038 = vmatprep.mubr.bf16.mxu0 0
      %1039 = vmatmul.mubr.bf16.gmra.mrb[0].mxu0 %v533
      %v1040 = vpop.f32.mrb[0].mxu0
      %v1041 = vadd.f32 %v292, %v1040
      %v1042 = vpop.f32.mrb[0].mxu0
      %v1043 = vpop.f32.mrb[0].mxu0
      %v1044 = vadd.f32 %v292, %v1043
      %v1045 = vpop.f32.mrb[0].mxu0
      %1046 = vdwg.mxu0
      %v1047 = vpack.c.bf16 %v668, %v665
      %v1048 = vpack.c.bf16 %v676, %v673
      %v1049 = vpack.c.bf16 %v684, %v681
      %v1050 = vpack.c.bf16 %v692, %v689
      %v1051 = vpack.c.bf16 %v700, %v697
      %v1052 = vpack.c.bf16 %v708, %v705
      %v1053 = vpack.c.bf16 %v716, %v713
      %v1054 = vpack.c.bf16 %v724, %v721
      %v1055 = vpack.c.bf16 %v732, %v729
      %v1056 = vpack.c.bf16 %v740, %v737
      %v1057 = vpack.c.bf16 %v748, %v745
      %v1058 = vpack.c.bf16 %v756, %v753
      %v1059 = vpack.c.bf16 %v764, %v761
      %v1060 = vpack.c.bf16 %v772, %v769
      %v1061 = vpack.c.bf16 %v780, %v777
      %v1062 = vpack.c.bf16 %v788, %v785
      %v1063 = vpack.c.bf16 %v796, %v793
      %v1064 = vpack.c.bf16 %v804, %v801
      %v1065 = vpack.c.bf16 %v812, %v809
      %v1066 = vpack.c.bf16 %v820, %v817
      %v1067 = vpack.c.bf16 %v828, %v825
      %v1068 = vpack.c.bf16 %v836, %v833
      %v1069 = vpack.c.bf16 %v844, %v841
      %v1070 = vpack.c.bf16 %v852, %v849
      %v1071 = vpack.c.bf16 %v860, %v857
      %v1072 = vpack.c.bf16 %v868, %v865
      %v1073 = vpack.c.bf16 %v876, %v873
      %v1074 = vpack.c.bf16 %v884, %v881
      %v1075 = vpack.c.bf16 %v892, %v889
      %v1076 = vpack.c.bf16 %v900, %v897
      %v1077 = vpack.c.bf16 %v908, %v905
      %v1078 = vpack.c.bf16 %v916, %v913
      %v1079 = vpack.c.bf16 %v924, %v921
      %v1080 = vpack.c.bf16 %v932, %v929
      %v1081 = vpack.c.bf16 %v940, %v937
      %v1082 = vpack.c.bf16 %v948, %v945
      %v1083 = vpack.c.bf16 %v956, %v953
      %v1084 = vpack.c.bf16 %v964, %v961
      %v1085 = vpack.c.bf16 %v972, %v969
      %v1086 = vpack.c.bf16 %v980, %v977
      %v1087 = vpack.c.bf16 %v988, %v985
      %v1088 = vpack.c.bf16 %v996, %v993
      %v1089 = vpack.c.bf16 %v1004, %v1001
      %v1090 = vpack.c.bf16 %v1012, %v1009
      %v1091 = vpack.c.bf16 %v1020, %v1017
      %v1092 = vpack.c.bf16 %v1028, %v1025
      %v1093 = vpack.c.bf16 %v1036, %v1033
      %v1094 = vpack.c.bf16 %v1044, %v1041
      %v1143 = vunpack.c.l.b16 %v1047
      %v1144 = vunpack.c.h.b16 %v1047
      %v1145 = vunpack.c.l.b16 %v1048
      %v1146 = vunpack.c.h.b16 %v1048
      %v1147 = vunpack.c.l.b16 %v1049
      %v1148 = vunpack.c.h.b16 %v1049
      %v1149 = vunpack.c.l.b16 %v1050
      %v1150 = vunpack.c.h.b16 %v1050
      %v1151 = vunpack.c.l.b16 %v1051
      %v1152 = vunpack.c.h.b16 %v1051
      %v1153 = vunpack.c.l.b16 %v1052
      %v1154 = vunpack.c.h.b16 %v1052
      %v1155 = vunpack.c.l.b16 %v1053
      %v1156 = vunpack.c.h.b16 %v1053
      %v1157 = vunpack.c.l.b16 %v1054
      %v1158 = vunpack.c.h.b16 %v1054
      %v1159 = vunpack.c.l.b16 %v1055
      %v1160 = vunpack.c.h.b16 %v1055
      %v1161 = vunpack.c.l.b16 %v1056
      %v1162 = vunpack.c.h.b16 %v1056
      %v1163 = vunpack.c.l.b16 %v1057
      %v1164 = vunpack.c.h.b16 %v1057
      %v1165 = vunpack.c.l.b16 %v1058
      %v1166 = vunpack.c.h.b16 %v1058
      %v1167 = vunpack.c.l.b16 %v1059
      %v1168 = vunpack.c.h.b16 %v1059
      %v1169 = vunpack.c.l.b16 %v1060
      %v1170 = vunpack.c.h.b16 %v1060
      %v1171 = vunpack.c.l.b16 %v1061
      %v1172 = vunpack.c.h.b16 %v1061
      %v1173 = vunpack.c.l.b16 %v1062
      %v1174 = vunpack.c.h.b16 %v1062
      %v1175 = vunpack.c.l.b16 %v1063
      %v1176 = vunpack.c.h.b16 %v1063
      %v1177 = vunpack.c.l.b16 %v1064
      %v1178 = vunpack.c.h.b16 %v1064
      %v1179 = vunpack.c.l.b16 %v1065
      %v1180 = vunpack.c.h.b16 %v1065
      %v1181 = vunpack.c.l.b16 %v1066
      %v1182 = vunpack.c.h.b16 %v1066
      %v1183 = vunpack.c.l.b16 %v1067
      %v1184 = vunpack.c.h.b16 %v1067
      %v1185 = vunpack.c.l.b16 %v1068
      %v1186 = vunpack.c.h.b16 %v1068
      %v1187 = vunpack.c.l.b16 %v1069
      %v1188 = vunpack.c.h.b16 %v1069
      %v1189 = vunpack.c.l.b16 %v1070
      %v1190 = vunpack.c.h.b16 %v1070
      %v1191 = vunpack.c.l.b16 %v1071
      %v1192 = vunpack.c.h.b16 %v1071
      %v1193 = vunpack.c.l.b16 %v1072
      %v1194 = vunpack.c.h.b16 %v1072
      %v1195 = vunpack.c.l.b16 %v1073
      %v1196 = vunpack.c.h.b16 %v1073
      %v1197 = vunpack.c.l.b16 %v1074
      %v1198 = vunpack.c.h.b16 %v1074
      %v1199 = vunpack.c.l.b16 %v1075
      %v1200 = vunpack.c.h.b16 %v1075
      %v1201 = vunpack.c.l.b16 %v1076
      %v1202 = vunpack.c.h.b16 %v1076
      %v1203 = vunpack.c.l.b16 %v1077
      %v1204 = vunpack.c.h.b16 %v1077
      %v1205 = vunpack.c.l.b16 %v1078
      %v1206 = vunpack.c.h.b16 %v1078
      %v1207 = vunpack.c.l.b16 %v1079
      %v1208 = vunpack.c.h.b16 %v1079
      %v1209 = vunpack.c.l.b16 %v1080
      %v1210 = vunpack.c.h.b16 %v1080
      %v1211 = vunpack.c.l.b16 %v1081
      %v1212 = vunpack.c.h.b16 %v1081
      %v1213 = vunpack.c.l.b16 %v1082
      %v1214 = vunpack.c.h.b16 %v1082
      %v1215 = vunpack.c.l.b16 %v1083
      %v1216 = vunpack.c.h.b16 %v1083
      %v1217 = vunpack.c.l.b16 %v1084
      %v1218 = vunpack.c.h.b16 %v1084
      %v1219 = vunpack.c.l.b16 %v1085
      %v1220 = vunpack.c.h.b16 %v1085
      %v1221 = vunpack.c.l.b16 %v1086
      %v1222 = vunpack.c.h.b16 %v1086
      %v1223 = vunpack.c.l.b16 %v1087
      %v1224 = vunpack.c.h.b16 %v1087
      %v1225 = vunpack.c.l.b16 %v1088
      %v1226 = vunpack.c.h.b16 %v1088
      %v1227 = vunpack.c.l.b16 %v1089
      %v1228 = vunpack.c.h.b16 %v1089
      %v1229 = vunpack.c.l.b16 %v1090
      %v1230 = vunpack.c.h.b16 %v1090
      %v1231 = vunpack.c.l.b16 %v1091
      %v1232 = vunpack.c.h.b16 %v1091
      %v1233 = vunpack.c.l.b16 %v1092
      %v1234 = vunpack.c.h.b16 %v1092
      %v1235 = vunpack.c.l.b16 %v1093
      %v1236 = vunpack.c.h.b16 %v1093
      %v1237 = vunpack.c.l.b16 %v1094
      %v1238 = vunpack.c.h.b16 %v1094
      %v1239 = vpack.c.b16 %v1143, %v1143
      %v1240 = vpack.c.b16 %v1144, %v1144
      %v1241 = vpack.c.b16 %v1145, %v1145
      %v1242 = vpack.c.b16 %v1146, %v1146
      %v1243 = vpack.c.b16 %v1147, %v1147
      %v1244 = vpack.c.b16 %v1148, %v1148
      %v1245 = vpack.c.b16 %v1149, %v1149
      %v1246 = vpack.c.b16 %v1150, %v1150
      %v1247 = vpack.c.b16 %v1151, %v1151
      %v1248 = vpack.c.b16 %v1152, %v1152
      %v1249 = vpack.c.b16 %v1153, %v1153
      %v1250 = vpack.c.b16 %v1154, %v1154
      %v1251 = vpack.c.b16 %v1155, %v1155
      %v1252 = vpack.c.b16 %v1156, %v1156
      %v1253 = vpack.c.b16 %v1157, %v1157
      %v1254 = vpack.c.b16 %v1158, %v1158
      %v1255 = vpack.c.b16 %v1159, %v1159
      %v1256 = vpack.c.b16 %v1160, %v1160
      %v1257 = vpack.c.b16 %v1161, %v1161
      %v1258 = vpack.c.b16 %v1162, %v1162
      %v1259 = vpack.c.b16 %v1163, %v1163
      %v1260 = vpack.c.b16 %v1164, %v1164
      %v1261 = vpack.c.b16 %v1165, %v1165
      %v1262 = vpack.c.b16 %v1166, %v1166
      %v1263 = vpack.c.b16 %v1167, %v1167
      %v1264 = vpack.c.b16 %v1168, %v1168
      %v1265 = vpack.c.b16 %v1169, %v1169
      %v1266 = vpack.c.b16 %v1170, %v1170
      %v1267 = vpack.c.b16 %v1171, %v1171
      %v1268 = vpack.c.b16 %v1172, %v1172
      %v1269 = vpack.c.b16 %v1173, %v1173
      %v1270 = vpack.c.b16 %v1174, %v1174
      %v1271 = vpack.c.b16 %v1175, %v1175
      %v1272 = vpack.c.b16 %v1176, %v1176
      %v1273 = vpack.c.b16 %v1177, %v1177
      %v1274 = vpack.c.b16 %v1178, %v1178
      %v1275 = vpack.c.b16 %v1179, %v1179
      %v1276 = vpack.c.b16 %v1180, %v1180
      %v1277 = vpack.c.b16 %v1181, %v1181
      %v1278 = vpack.c.b16 %v1182, %v1182
      %v1279 = vpack.c.b16 %v1183, %v1183
      %v1280 = vpack.c.b16 %v1184, %v1184
      %v1281 = vpack.c.b16 %v1185, %v1185
      %v1282 = vpack.c.b16 %v1186, %v1186
      %v1283 = vpack.c.b16 %v1187, %v1187
      %v1284 = vpack.c.b16 %v1188, %v1188
      %v1285 = vpack.c.b16 %v1189, %v1189
      %v1286 = vpack.c.b16 %v1190, %v1190
      %v1287 = vpack.c.b16 %v1191, %v1191
      %v1288 = vpack.c.b16 %v1192, %v1192
      %v1289 = vpack.c.b16 %v1193, %v1193
      %v1290 = vpack.c.b16 %v1194, %v1194
      %v1291 = vpack.c.b16 %v1195, %v1195
      %v1292 = vpack.c.b16 %v1196, %v1196
      %v1293 = vpack.c.b16 %v1197, %v1197
      %v1294 = vpack.c.b16 %v1198, %v1198
      %v1295 = vpack.c.b16 %v1199, %v1199
      %v1296 = vpack.c.b16 %v1200, %v1200
      %v1297 = vpack.c.b16 %v1201, %v1201
      %v1298 = vpack.c.b16 %v1202, %v1202
      %v1299 = vpack.c.b16 %v1203, %v1203
      %v1300 = vpack.c.b16 %v1204, %v1204
      %v1301 = vpack.c.b16 %v1205, %v1205
      %v1302 = vpack.c.b16 %v1206, %v1206
      %v1303 = vpack.c.b16 %v1207, %v1207
      %v1304 = vpack.c.b16 %v1208, %v1208
      %v1305 = vpack.c.b16 %v1209, %v1209
      %v1306 = vpack.c.b16 %v1210, %v1210
      %v1307 = vpack.c.b16 %v1211, %v1211
      %v1308 = vpack.c.b16 %v1212, %v1212
      %v1309 = vpack.c.b16 %v1213, %v1213
      %v1310 = vpack.c.b16 %v1214, %v1214
      %v1311 = vpack.c.b16 %v1215, %v1215
      %v1312 = vpack.c.b16 %v1216, %v1216
      %v1313 = vpack.c.b16 %v1217, %v1217
      %v1314 = vpack.c.b16 %v1218, %v1218
      %v1315 = vpack.c.b16 %v1219, %v1219
      %v1316 = vpack.c.b16 %v1220, %v1220
      %v1317 = vpack.c.b16 %v1221, %v1221
      %v1318 = vpack.c.b16 %v1222, %v1222
      %v1319 = vpack.c.b16 %v1223, %v1223
      %v1320 = vpack.c.b16 %v1224, %v1224
      %v1321 = vpack.c.b16 %v1225, %v1225
      %v1322 = vpack.c.b16 %v1226, %v1226
      %v1323 = vpack.c.b16 %v1227, %v1227
      %v1324 = vpack.c.b16 %v1228, %v1228
      %v1325 = vpack.c.b16 %v1229, %v1229
      %v1326 = vpack.c.b16 %v1230, %v1230
      %v1327 = vpack.c.b16 %v1231, %v1231
      %v1328 = vpack.c.b16 %v1232, %v1232
      %v1329 = vpack.c.b16 %v1233, %v1233
      %v1330 = vpack.c.b16 %v1234, %v1234
      %v1331 = vpack.c.b16 %v1235, %v1235
      %v1332 = vpack.c.b16 %v1236, %v1236
      %v1333 = vpack.c.b16 %v1237, %v1237
      %v1334 = vpack.c.b16 %v1238, %v1238
      %1431 = vst [vmem:[%s172] sm:$0xf] %v1239
      %1432 = vst [vmem:[%s172 + $0x4] sm:$0xf] %v1240
      %1433 = vst [vmem:[%s172 + $0x8] sm:$0xf] %v1241
      %1434 = vst [vmem:[%s172 + $0xc] sm:$0xf] %v1242
      %1435 = vst [vmem:[%s172 + $0x10] sm:$0xf] %v1243
      %1436 = vst [vmem:[%s172 + $0x14] sm:$0xf] %v1244
      %1437 = vst [vmem:[%s172 + $0x18] sm:$0xf] %v1245
      %1438 = vst [vmem:[%s172 + $0x1c] sm:$0xf] %v1246
      %1439 = vst [vmem:[%s172 + $0x20] sm:$0xf] %v1247
      %1440 = vst [vmem:[%s172 + $0x24] sm:$0xf] %v1248
      %1441 = vst [vmem:[%s172 + $0x28] sm:$0xf] %v1249
      %1442 = vst [vmem:[%s172 + $0x2c] sm:$0xf] %v1250
      %1443 = vst [vmem:[%s172 + $0x30] sm:$0xf] %v1251
      %1444 = vst [vmem:[%s172 + $0x34] sm:$0xf] %v1252
      %1445 = vst [vmem:[%s172 + $0x38] sm:$0xf] %v1253
      %1446 = vst [vmem:[%s172 + $0x3c] sm:$0xf] %v1254
      %1447 = vst [vmem:[%s172 + $0x40] sm:$0xf] %v1255
      %1448 = vst [vmem:[%s172 + $0x44] sm:$0xf] %v1256
      %1449 = vst [vmem:[%s172 + $0x48] sm:$0xf] %v1257
      %1450 = vst [vmem:[%s172 + $0x4c] sm:$0xf] %v1258
      %1451 = vst [vmem:[%s172 + $0x50] sm:$0xf] %v1259
      %1452 = vst [vmem:[%s172 + $0x54] sm:$0xf] %v1260
      %1453 = vst [vmem:[%s172 + $0x58] sm:$0xf] %v1261
      %1454 = vst [vmem:[%s172 + $0x5c] sm:$0xf] %v1262
      %1455 = vst [vmem:[%s172 + $0x60] sm:$0xf] %v1263
      %1456 = vst [vmem:[%s172 + $0x64] sm:$0xf] %v1264
      %1457 = vst [vmem:[%s172 + $0x68] sm:$0xf] %v1265
      %1458 = vst [vmem:[%s172 + $0x6c] sm:$0xf] %v1266
      %1459 = vst [vmem:[%s172 + $0x70] sm:$0xf] %v1267
      %1460 = vst [vmem:[%s172 + $0x74] sm:$0xf] %v1268
      %1461 = vst [vmem:[%s172 + $0x78] sm:$0xf] %v1269
      %1462 = vst [vmem:[%s172 + $0x7c] sm:$0xf] %v1270
      %1463 = vst [vmem:[%s172 + $0x80] sm:$0xf] %v1271
      %1464 = vst [vmem:[%s172 + $0x84] sm:$0xf] %v1272
      %1465 = vst [vmem:[%s172 + $0x88] sm:$0xf] %v1273
      %1466 = vst [vmem:[%s172 + $0x8c] sm:$0xf] %v1274
      %1467 = vst [vmem:[%s172 + $0x90] sm:$0xf] %v1275
      %1468 = vst [vmem:[%s172 + $0x94] sm:$0xf] %v1276
      %1469 = vst [vmem:[%s172 + $0x98] sm:$0xf] %v1277
      %1470 = vst [vmem:[%s172 + $0x9c] sm:$0xf] %v1278
      %1471 = vst [vmem:[%s172 + $0xa0] sm:$0xf] %v1279
      %1472 = vst [vmem:[%s172 + $0xa4] sm:$0xf] %v1280
      %1473 = vst [vmem:[%s172 + $0xa8] sm:$0xf] %v1281
      %1474 = vst [vmem:[%s172 + $0xac] sm:$0xf] %v1282
      %1475 = vst [vmem:[%s172 + $0xb0] sm:$0xf] %v1283
      %1476 = vst [vmem:[%s172 + $0xb4] sm:$0xf] %v1284
      %1477 = vst [vmem:[%s172 + $0xb8] sm:$0xf] %v1285
      %1478 = vst [vmem:[%s172 + $0xbc] sm:$0xf] %v1286
      %1479 = vst [vmem:[%s172 + $0xc0] sm:$0xf] %v1287
      %1480 = vst [vmem:[%s172 + $0xc4] sm:$0xf] %v1288
      %1481 = vst [vmem:[%s172 + $0xc8] sm:$0xf] %v1289
      %1482 = vst [vmem:[%s172 + $0xcc] sm:$0xf] %v1290
      %1483 = vst [vmem:[%s172 + $0xd0] sm:$0xf] %v1291
      %1484 = vst [vmem:[%s172 + $0xd4] sm:$0xf] %v1292
      %1485 = vst [vmem:[%s172 + $0xd8] sm:$0xf] %v1293
      %1486 = vst [vmem:[%s172 + $0xdc] sm:$0xf] %v1294
      %1487 = vst [vmem:[%s172 + $0xe0] sm:$0xf] %v1295
      %1488 = vst [vmem:[%s172 + $0xe4] sm:$0xf] %v1296
      %1489 = vst [vmem:[%s172 + $0xe8] sm:$0xf] %v1297
      %1490 = vst [vmem:[%s172 + $0xec] sm:$0xf] %v1298
      %1491 = vst [vmem:[%s172 + $0xf0] sm:$0xf] %v1299
      %1492 = vst [vmem:[%s172 + $0xf4] sm:$0xf] %v1300
      %1493 = vst [vmem:[%s172 + $0xf8] sm:$0xf] %v1301
      %1494 = vst [vmem:[%s172 + $0xfc] sm:$0xf] %v1302
      %1495 = vst [vmem:[%s172 + $0x100] sm:$0xf] %v1303
      %1496 = vst [vmem:[%s172 + $0x104] sm:$0xf] %v1304
      %1497 = vst [vmem:[%s172 + $0x108] sm:$0xf] %v1305
      %1498 = vst [vmem:[%s172 + $0x10c] sm:$0xf] %v1306
      %1499 = vst [vmem:[%s172 + $0x110] sm:$0xf] %v1307
      %1500 = vst [vmem:[%s172 + $0x114] sm:$0xf] %v1308
      %1501 = vst [vmem:[%s172 + $0x118] sm:$0xf] %v1309
      %1502 = vst [vmem:[%s172 + $0x11c] sm:$0xf] %v1310
      %1503 = vst [vmem:[%s172 + $0x120] sm:$0xf] %v1311
      %1504 = vst [vmem:[%s172 + $0x124] sm:$0xf] %v1312
      %1505 = vst [vmem:[%s172 + $0x128] sm:$0xf] %v1313
      %1506 = vst [vmem:[%s172 + $0x12c] sm:$0xf] %v1314
      %1507 = vst [vmem:[%s172 + $0x130] sm:$0xf] %v1315
      %1508 = vst [vmem:[%s172 + $0x134] sm:$0xf] %v1316
      %1509 = vst [vmem:[%s172 + $0x138] sm:$0xf] %v1317
      %1510 = vst [vmem:[%s172 + $0x13c] sm:$0xf] %v1318
      %1511 = vst [vmem:[%s172 + $0x140] sm:$0xf] %v1319
      %1512 = vst [vmem:[%s172 + $0x144] sm:$0xf] %v1320
      %1513 = vst [vmem:[%s172 + $0x148] sm:$0xf] %v1321
      %1514 = vst [vmem:[%s172 + $0x14c] sm:$0xf] %v1322
      %1515 = vst [vmem:[%s172 + $0x150] sm:$0xf] %v1323
      %1516 = vst [vmem:[%s172 + $0x154] sm:$0xf] %v1324
      %1517 = vst [vmem:[%s172 + $0x158] sm:$0xf] %v1325
      %1518 = vst [vmem:[%s172 + $0x15c] sm:$0xf] %v1326
      %1519 = vst [vmem:[%s172 + $0x160] sm:$0xf] %v1327
      %1520 = vst [vmem:[%s172 + $0x164] sm:$0xf] %v1328
      %1521 = vst [vmem:[%s172 + $0x168] sm:$0xf] %v1329
      %1522 = vst [vmem:[%s172 + $0x16c] sm:$0xf] %v1330
      %1523 = vst [vmem:[%s172 + $0x170] sm:$0xf] %v1331
      %1524 = vst [vmem:[%s172 + $0x174] sm:$0xf] %v1332
      %1525 = vst [vmem:[%s172 + $0x178] sm:$0xf] %v1333
      %1526 = vst [vmem:[%s172 + $0x17c] sm:$0xf] %v1334
      %s1527 = smul.u32 96, %s14
      %p1528 = scmp.lt.s32.totalorder %s1527, 191
      %s1529 = scalar_select %p1528, %s1527, 191
      %s1530 = smul.addr %s1529, 4
      %s1531 = scalar_lea.vmem %s3, %s1530
      // Predicated region
      $region33: #{forward.5} parent=31 // pred_check
        %p1532 = pneg %p100
      $region34: #{forward.5} parent=31 // pred_check_branch
        %1534 = sbr.rel (%p1532) target = $region36
      $region35: #{forward.5} parent=31 // pred_region
        %s1535 = smul.u32 96, %s14
      $region36: #{forward.5} parent=31 // pred_fallthru
        _
    $region32: #{forward.5} parent=5 // pred_fallthru
      _
    %p1536 = scmp.le.s32.totalorder 2, %s9
    // Predicated region
    $region37: #{forward.5} parent=5 // pred_check
      %p1537 = pneg %p1536
    $region38: #{forward.5} parent=5 // pred_check_branch
      %1539 = sbr.rel (%p1537) target = $region40
    $region39: #{forward.5} parent=5 // pred_region
      %s1540 = ssub.s32 %s9, 2
      // Predicated region
      $region41: #{forward.5} parent=39 // pred_check
        %p1541 = pneg %p106
      $region42: #{forward.5} parent=39 // pred_check_branch
        %1543 = sbr.rel (%p1541) target = $region44
      $region43: #{forward.5} parent=39 // pred_region
        %s1544 = smul.u32 96, %s15
        %p1545 = scmp.lt.s32.totalorder %s1544, 191
        %s1546 = scalar_select %p1545, %s1544, 191
        %s1547 = smul.addr %s1546, 4
        %s1548 = scalar_lea.vmem %s3, %s1547
      $region44: #{forward.5} parent=39 // pred_fallthru
        _
    $region40: #{forward.5} parent=5 // pred_fallthru
      _
  $region6: #{forward.5} parent=0 // loop_footer
    %s13 = sadd.s32 1, %s9
  $region7: #{forward.5} parent=0 // loop_footer_branch
    %8 = sbr.rel target = $region3
  $region8: #{forward.5} parent=0 // loop_exit
    _

// kernel: forward.6
$region0: #{forward.6}
  #allocation0 [shape = 'u32[]', space=smem, size = 0x4, offset = 0x4, fixed_abs, tag = 'smem constant byte address 0x4 - core index']
  #allocation1 [shape = 'u32[144,128]{1,0:T(1,128)}', space=vmem, size = 0x12000, scoped, tag = 'internal scratch']
  %s0 = inlined_call_operand.vmem [shape: bf16[26,2,13,256], index: 0, kind: input, shape index: {}]
  %s1 = inlined_call_operand.vmem [shape: bf16[26,13,128], index: 1, kind: output, shape index: {}]
  %s2 = sld [smem:[#allocation0]]
  $region14: #{forward.6} parent=0
    _
  %s4 = ssub.s32 1, %s2
  %s5 = scalar_select 0, %s4, %s2
  // Predicated region
  $region2: #{forward.6} parent=0 // pred_check
    _
  $region3: #{forward.6} parent=0 // pred_check_branch
    %7 = sbr.rel (0) target = $region5
  $region4: #{forward.6} parent=0 // pred_region
    _
  $region5: #{forward.6} parent=0 // pred_fallthru
    _
  %v8 = vld [vmem:[%s0] sm:$0xff]
  %v9 = vld [vmem:[%s0 + $0x8] sm:$0x77]
  %v10 = vld [vmem:[%s0 + $0x10] sm:$0xff]
  %v11 = vld [vmem:[%s0 + $0x18] sm:$0x77]
  %v12 = vld [vmem:[%s0 + $0x20] sm:$0xff]
  %v13 = vld [vmem:[%s0 + $0x28] sm:$0x77]
  %v14 = vld [vmem:[%s0 + $0x30] sm:$0xff]
  %v15 = vld [vmem:[%s0 + $0x38] sm:$0x77]
  %v16 = vld [vmem:[%s0 + $0x40] sm:$0xff]
  %v17 = vld [vmem:[%s0 + $0x48] sm:$0x77]
  %v18 = vld [vmem:[%s0 + $0x50] sm:$0xff]
  %v19 = vld [vmem:[%s0 + $0x58] sm:$0x77]
  %v20 = vld [vmem:[%s0 + $0x60] sm:$0xff]
  %v21 = vld [vmem:[%s0 + $0x68] sm:$0x77]
  %v22 = vld [vmem:[%s0 + $0x70] sm:$0xff]
  %v23 = vld [vmem:[%s0 + $0x78] sm:$0x77]
  %v24 = vld [vmem:[%s0 + $0x80] sm:$0xff]
  %v25 = vld [vmem:[%s0 + $0x88] sm:$0x77]
  %v26 = vld [vmem:[%s0 + $0x90] sm:$0xff]
  %v27 = vld [vmem:[%s0 + $0x98] sm:$0x77]
  %v28 = vld [vmem:[%s0 + $0xa0] sm:$0xff]
  %v29 = vld [vmem:[%s0 + $0xa8] sm:$0x77]
  %v30 = vld [vmem:[%s0 + $0xb0] sm:$0xff]
  %v31 = vld [vmem:[%s0 + $0xb8] sm:$0x77]
  %v32 = vld [vmem:[%s0 + $0xc0] sm:$0xff]
  %v33 = vld [vmem:[%s0 + $0xc8] sm:$0x77]
  %v34 = vld [vmem:[%s0 + $0xd0] sm:$0xff]
  %v35 = vld [vmem:[%s0 + $0xd8] sm:$0x77]
  %v36 = vld [vmem:[%s0 + $0xe0] sm:$0xff]
  %v37 = vld [vmem:[%s0 + $0xe8] sm:$0x77]
  %v38 = vld [vmem:[%s0 + $0xf0] sm:$0xff]
  %v39 = vld [vmem:[%s0 + $0xf8] sm:$0x77]
  %v40 = vld [vmem:[%s0 + $0x100] sm:$0xff]
  %v41 = vld [vmem:[%s0 + $0x108] sm:$0x77]
  %v42 = vld [vmem:[%s0 + $0x110] sm:$0xff]
  %v43 = vld [vmem:[%s0 + $0x118] sm:$0x77]
  %v44 = vld [vmem:[%s0 + $0x120] sm:$0xff]
  %v45 = vld [vmem:[%s0 + $0x128] sm:$0x77]
  %v46 = vld [vmem:[%s0 + $0x130] sm:$0xff]
  %v47 = vld [vmem:[%s0 + $0x138] sm:$0x77]
  %v48 = vld [vmem:[%s0 + $0x140] sm:$0xff]
  %v49 = vld [vmem:[%s0 + $0x148] sm:$0x77]
  %v50 = vld [vmem:[%s0 + $0x150] sm:$0xff]
  %v51 = vld [vmem:[%s0 + $0x158] sm:$0x77]
  %v52 = vld [vmem:[%s0 + $0x160] sm:$0xff]
  %v53 = vld [vmem:[%s0 + $0x168] sm:$0x77]
  %v54 = vld [vmem:[%s0 + $0x170] sm:$0xff]
  %v55 = vld [vmem:[%s0 + $0x178] sm:$0x77]
  %v56 = vld [vmem:[%s0 + $0x180] sm:$0xff]
  %v57 = vld [vmem:[%s0 + $0x188] sm:$0x77]
  %v58 = vld [vmem:[%s0 + $0x190] sm:$0xff]
  %v59 = vld [vmem:[%s0 + $0x198] sm:$0x77]
  %v60 = vld [vmem:[%s0 + $0x1a0] sm:$0xff]
  %v61 = vld [vmem:[%s0 + $0x1a8] sm:$0x77]
  %v62 = vld [vmem:[%s0 + $0x1b0] sm:$0xff]
  %v63 = vld [vmem:[%s0 + $0x1b8] sm:$0x77]
  %v64 = vld [vmem:[%s0 + $0x1c0] sm:$0xff]
  %v65 = vld [vmem:[%s0 + $0x1c8] sm:$0x77]
  %v66 = vld [vmem:[%s0 + $0x1d0] sm:$0xff]
  %v67 = vld [vmem:[%s0 + $0x1d8] sm:$0x77]
  %v68 = vld [vmem:[%s0 + $0x1e0] sm:$0xff]
  %v69 = vld [vmem:[%s0 + $0x1e8] sm:$0x77]
  %v70 = vld [vmem:[%s0 + $0x1f0] sm:$0xff]
  %v71 = vld [vmem:[%s0 + $0x1f8] sm:$0x77]
  %v72 = vld [vmem:[%s0 + $0x200] sm:$0xff]
  %v73 = vld [vmem:[%s0 + $0x208] sm:$0x77]
  %v74 = vld [vmem:[%s0 + $0x210] sm:$0xff]
  %v75 = vld [vmem:[%s0 + $0x218] sm:$0x77]
  %v76 = vld [vmem:[%s0 + $0x220] sm:$0xff]
  %v77 = vld [vmem:[%s0 + $0x228] sm:$0x77]
  %v78 = vld [vmem:[%s0 + $0x230] sm:$0xff]
  %v79 = vld [vmem:[%s0 + $0x238] sm:$0x77]
  %v80 = vld [vmem:[%s0 + $0x240] sm:$0xff]
  %v81 = vld [vmem:[%s0 + $0x248] sm:$0x77]
  %v82 = vld [vmem:[%s0 + $0x250] sm:$0xff]
  %v83 = vld [vmem:[%s0 + $0x258] sm:$0x77]
  %v84 = vld [vmem:[%s0 + $0x260] sm:$0xff]
  %v85 = vld [vmem:[%s0 + $0x268] sm:$0x77]
  %v86 = vld [vmem:[%s0 + $0x270] sm:$0xff]
  %v87 = vld [vmem:[%s0 + $0x278] sm:$0x77]
  %v88 = vld [vmem:[%s0 + $0x280] sm:$0xff]
  %v89 = vld [vmem:[%s0 + $0x288] sm:$0x77]
  %v90 = vld [vmem:[%s0 + $0x290] sm:$0xff]
  %v91 = vld [vmem:[%s0 + $0x298] sm:$0x77]
  %v92 = vld [vmem:[%s0 + $0x2a0] sm:$0xff]
  %v93 = vld [vmem:[%s0 + $0x2a8] sm:$0x77]
  %v94 = vld [vmem:[%s0 + $0x2b0] sm:$0xff]
  %v95 = vld [vmem:[%s0 + $0x2b8] sm:$0x77]
  %v96 = vld [vmem:[%s0 + $0x2c0] sm:$0xff]
  %v97 = vld [vmem:[%s0 + $0x2c8] sm:$0x77]
  %v98 = vld [vmem:[%s0 + $0x2d0] sm:$0xff]
  %v99 = vld [vmem:[%s0 + $0x2d8] sm:$0x77]
  %v100 = vld [vmem:[%s0 + $0x2e0] sm:$0xff]
  %v101 = vld [vmem:[%s0 + $0x2e8] sm:$0x77]
  %v102 = vld [vmem:[%s0 + $0x2f0] sm:$0xff]
  %v103 = vld [vmem:[%s0 + $0x2f8] sm:$0x77]
  %v104 = vld [vmem:[%s0 + $0x300] sm:$0xff]
  %v105 = vld [vmem:[%s0 + $0x308] sm:$0x77]
  %v106 = vld [vmem:[%s0 + $0x310] sm:$0xff]
  %v107 = vld [vmem:[%s0 + $0x318] sm:$0x77]
  %v108 = vld [vmem:[%s0 + $0x320] sm:$0xff]
  %v109 = vld [vmem:[%s0 + $0x328] sm:$0x77]
  %v110 = vld [vmem:[%s0 + $0x330] sm:$0xff]
  %v111 = vld [vmem:[%s0 + $0x338] sm:$0x77]
  %v112 = vmax.bf16 %v8, %v10
  %v113 = vmax.bf16 %v9, %v11
  %v114 = vmax.bf16 %v12, %v14
  %v115 = vmax.bf16 %v13, %v15
  %v116 = vmax.bf16 %v16, %v18
  %v117 = vmax.bf16 %v17, %v19
  %v118 = vmax.bf16 %v20, %v22
  %v119 = vmax.bf16 %v21, %v23
  %v120 = vmax.bf16 %v24, %v26
  %v121 = vmax.bf16 %v25, %v27
  %v122 = vmax.bf16 %v28, %v30
  %v123 = vmax.bf16 %v29, %v31
  %v124 = vmax.bf16 %v32, %v34
  %v125 = vmax.bf16 %v33, %v35
  %v126 = vmax.bf16 %v36, %v38
  %v127 = vmax.bf16 %v37, %v39
  %v128 = vmax.bf16 %v40, %v42
  %v129 = vmax.bf16 %v41, %v43
  %v130 = vmax.bf16 %v44, %v46
  %v131 = vmax.bf16 %v45, %v47
  %v132 = vmax.bf16 %v48, %v50
  %v133 = vmax.bf16 %v49, %v51
  %v134 = vmax.bf16 %v52, %v54
  %v135 = vmax.bf16 %v53, %v55
  %v136 = vmax.bf16 %v56, %v58
  %v137 = vmax.bf16 %v57, %v59
  %v138 = vmax.bf16 %v60, %v62
  %v139 = vmax.bf16 %v61, %v63
  %v140 = vmax.bf16 %v64, %v66
  %v141 = vmax.bf16 %v65, %v67
  %v142 = vmax.bf16 %v68, %v70
  %v143 = vmax.bf16 %v69, %v71
  %v144 = vmax.bf16 %v72, %v74
  %v145 = vmax.bf16 %v73, %v75
  %v146 = vmax.bf16 %v76, %v78
  %v147 = vmax.bf16 %v77, %v79
  %v148 = vmax.bf16 %v80, %v82
  %v149 = vmax.bf16 %v81, %v83
  %v150 = vmax.bf16 %v84, %v86
  %v151 = vmax.bf16 %v85, %v87
  %v152 = vmax.bf16 %v88, %v90
  %v153 = vmax.bf16 %v89, %v91
  %v154 = vmax.bf16 %v92, %v94
  %v155 = vmax.bf16 %v93, %v95
  %v156 = vmax.bf16 %v96, %v98
  %v157 = vmax.bf16 %v97, %v99
  %v158 = vmax.bf16 %v100, %v102
  %v159 = vmax.bf16 %v101, %v103
  %v160 = vmax.bf16 %v104, %v106
  %v161 = vmax.bf16 %v105, %v107
  %v162 = vmax.bf16 %v108, %v110
  %v163 = vmax.bf16 %v109, %v111
  %v216 = vrot.slane %v112, 4
  %v217 = vrot.slane %v113, 4
  %v218 = vrot.slane %v114, 4
  %v219 = vrot.slane %v115, 4
  %v220 = vrot.slane %v116, 4
  %v221 = vrot.slane %v117, 4
  %v222 = vrot.slane %v118, 4
  %v223 = vrot.slane %v119, 4
  %v224 = vrot.slane %v120, 4
  %v225 = vrot.slane %v121, 4
  %v226 = vrot.slane %v122, 4
  %v227 = vrot.slane %v123, 4
  %v228 = vrot.slane %v124, 4
  %v229 = vrot.slane %v125, 4
  %v230 = vrot.slane %v126, 4
  %v231 = vrot.slane %v127, 4
  %v232 = vrot.slane %v128, 4
  %v233 = vrot.slane %v129, 4
  %v234 = vrot.slane %v130, 4
  %v235 = vrot.slane %v131, 4
  %v236 = vrot.slane %v132, 4
  %v237 = vrot.slane %v133, 4
  %v238 = vrot.slane %v134, 4
  %v239 = vrot.slane %v135, 4
  %v240 = vrot.slane %v136, 4
  %v241 = vrot.slane %v137, 4
  %v242 = vrot.slane %v138, 4
  %v243 = vrot.slane %v139, 4
  %v244 = vrot.slane %v140, 4
  %v245 = vrot.slane %v141, 4
  %v246 = vrot.slane %v142, 4
  %v247 = vrot.slane %v143, 4
  %v248 = vrot.slane %v144, 4
  %v249 = vrot.slane %v145, 4
  %v250 = vrot.slane %v146, 4
  %v251 = vrot.slane %v147, 4
  %v252 = vrot.slane %v148, 4
  %v253 = vrot.slane %v149, 4
  %v254 = vrot.slane %v150, 4
  %v255 = vrot.slane %v151, 4
  %v256 = vrot.slane %v152, 4
  %v257 = vrot.slane %v153, 4
  %v258 = vrot.slane %v154, 4
  %v259 = vrot.slane %v155, 4
  %v260 = vrot.slane %v156, 4
  %v261 = vrot.slane %v157, 4
  %v262 = vrot.slane %v158, 4
  %v263 = vrot.slane %v159, 4
  %v264 = vrot.slane %v160, 4
  %v265 = vrot.slane %v161, 4
  %v266 = vrot.slane %v162, 4
  %v267 = vrot.slane %v163, 4
  %v320 = vmax.bf16 %v112, %v216
  %v321 = vmax.bf16 %v113, %v217
  %v322 = vmax.bf16 %v114, %v218
  %v323 = vmax.bf16 %v115, %v219
  %v324 = vmax.bf16 %v116, %v220
  %v325 = vmax.bf16 %v117, %v221
  %v326 = vmax.bf16 %v118, %v222
  %v327 = vmax.bf16 %v119, %v223
  %v328 = vmax.bf16 %v120, %v224
  %v329 = vmax.bf16 %v121, %v225
  %v330 = vmax.bf16 %v122, %v226
  %v331 = vmax.bf16 %v123, %v227
  %v332 = vmax.bf16 %v124, %v228
  %v333 = vmax.bf16 %v125, %v229
  %v334 = vmax.bf16 %v126, %v230
  %v335 = vmax.bf16 %v127, %v231
  %v336 = vmax.bf16 %v128, %v232
  %v337 = vmax.bf16 %v129, %v233
  %v338 = vmax.bf16 %v130, %v234
  %v339 = vmax.bf16 %v131, %v235
  %v340 = vmax.bf16 %v132, %v236
  %v341 = vmax.bf16 %v133, %v237
  %v342 = vmax.bf16 %v134, %v238
  %v343 = vmax.bf16 %v135, %v239
  %v344 = vmax.bf16 %v136, %v240
  %v345 = vmax.bf16 %v137, %v241
  %v346 = vmax.bf16 %v138, %v242
  %v347 = vmax.bf16 %v139, %v243
  %v348 = vmax.bf16 %v140, %v244
  %v349 = vmax.bf16 %v141, %v245
  %v350 = vmax.bf16 %v142, %v246
  %v351 = vmax.bf16 %v143, %v247
  %v352 = vmax.bf16 %v144, %v248
  %v353 = vmax.bf16 %v145, %v249
  %v354 = vmax.bf16 %v146, %v250
  %v355 = vmax.bf16 %v147, %v251
  %v356 = vmax.bf16 %v148, %v252
  %v357 = vmax.bf16 %v149, %v253
  %v358 = vmax.bf16 %v150, %v254
  %v359 = vmax.bf16 %v151, %v255
  %v360 = vmax.bf16 %v152, %v256
  %v361 = vmax.bf16 %v153, %v257
  %v362 = vmax.bf16 %v154, %v258
  %v363 = vmax.bf16 %v155, %v259
  %v364 = vmax.bf16 %v156, %v260
  %v365 = vmax.bf16 %v157, %v261
  %v366 = vmax.bf16 %v158, %v262
  %v367 = vmax.bf16 %v159, %v263
  %v368 = vmax.bf16 %v160, %v264
  %v369 = vmax.bf16 %v161, %v265
  %v370 = vmax.bf16 %v162, %v266
  %v371 = vmax.bf16 %v163, %v267
  %372 = vst [vmem:[%s1] sm:$0xf] %v320
  %vm373 = vcmask 1042432
  %vm374 = vsmask.f32 2304
  %vm375 = vmand %vm373, %vm374
  %v376 = vld [vmem:[%s1 + $0x4] sm:$0x7]
  %v377 = vsel %vm375, %v321, %v376
  %378 = vst [vmem:[%s1 + $0x4] sm:$0x7] %v377
  %379 = vst [vmem:[%s1 + $0x8] sm:$0xf] %v322
  %v380 = vld [vmem:[%s1 + $0xc] sm:$0x7]
  %v381 = vsel %vm375, %v323, %v380
  %382 = vst [vmem:[%s1 + $0xc] sm:$0x7] %v381
  %383 = vst [vmem:[%s1 + $0x10] sm:$0xf] %v324
  %v384 = vld [vmem:[%s1 + $0x14] sm:$0x7]
  %v385 = vsel %vm375, %v325, %v384
  %386 = vst [vmem:[%s1 + $0x14] sm:$0x7] %v385
  %387 = vst [vmem:[%s1 + $0x18] sm:$0xf] %v326
  %v388 = vld [vmem:[%s1 + $0x1c] sm:$0x7]
  %v389 = vsel %vm375, %v327, %v388
  %390 = vst [vmem:[%s1 + $0x1c] sm:$0x7] %v389
  %391 = vst [vmem:[%s1 + $0x20] sm:$0xf] %v328
  %v392 = vld [vmem:[%s1 + $0x24] sm:$0x7]
  %v393 = vsel %vm375, %v329, %v392
  %394 = vst [vmem:[%s1 + $0x24] sm:$0x7] %v393
  %395 = vst [vmem:[%s1 + $0x28] sm:$0xf] %v330
  %v396 = vld [vmem:[%s1 + $0x2c] sm:$0x7]
  %v397 = vsel %vm375, %v331, %v396
  %398 = vst [vmem:[%s1 + $0x2c] sm:$0x7] %v397
  %399 = vst [vmem:[%s1 + $0x30] sm:$0xf] %v332
  %v400 = vld [vmem:[%s1 + $0x34] sm:$0x7]
  %v401 = vsel %vm375, %v333, %v400
  %402 = vst [vmem:[%s1 + $0x34] sm:$0x7] %v401
  %403 = vst [vmem:[%s1 + $0x38] sm:$0xf] %v334
  %v404 = vld [vmem:[%s1 + $0x3c] sm:$0x7]
  %v405 = vsel %vm375, %v335, %v404
  %406 = vst [vmem:[%s1 + $0x3c] sm:$0x7] %v405
  %407 = vst [vmem:[%s1 + $0x40] sm:$0xf] %v336
  %v408 = vld [vmem:[%s1 + $0x44] sm:$0x7]
  %v409 = vsel %vm375, %v337, %v408
  %410 = vst [vmem:[%s1 + $0x44] sm:$0x7] %v409
  %411 = vst [vmem:[%s1 + $0x48] sm:$0xf] %v338
  %v412 = vld [vmem:[%s1 + $0x4c] sm:$0x7]
  %v413 = vsel %vm375, %v339, %v412
  %414 = vst [vmem:[%s1 + $0x4c] sm:$0x7] %v413
  %415 = vst [vmem:[%s1 + $0x50] sm:$0xf] %v340
  %v416 = vld [vmem:[%s1 + $0x54] sm:$0x7]
  %v417 = vsel %vm375, %v341, %v416
  %418 = vst [vmem:[%s1 + $0x54] sm:$0x7] %v417
  %419 = vst [vmem:[%s1 + $0x58] sm:$0xf] %v342
  %v420 = vld [vmem:[%s1 + $0x5c] sm:$0x7]
  %v421 = vsel %vm375, %v343, %v420
  %422 = vst [vmem:[%s1 + $0x5c] sm:$0x7] %v421
  %423 = vst [vmem:[%s1 + $0x60] sm:$0xf] %v344
  %v424 = vld [vmem:[%s1 + $0x64] sm:$0x7]
  %v425 = vsel %vm375, %v345, %v424
  %426 = vst [vmem:[%s1 + $0x64] sm:$0x7] %v425
  %427 = vst [vmem:[%s1 + $0x68] sm:$0xf] %v346
  %v428 = vld [vmem:[%s1 + $0x6c] sm:$0x7]
  %v429 = vsel %vm375, %v347, %v428
  %430 = vst [vmem:[%s1 + $0x6c] sm:$0x7] %v429
  %431 = vst [vmem:[%s1 + $0x70] sm:$0xf] %v348
  %v432 = vld [vmem:[%s1 + $0x74] sm:$0x7]
  %v433 = vsel %vm375, %v349, %v432
  %434 = vst [vmem:[%s1 + $0x74] sm:$0x7] %v433
  %435 = vst [vmem:[%s1 + $0x78] sm:$0xf] %v350
  %v436 = vld [vmem:[%s1 + $0x7c] sm:$0x7]
  %v437 = vsel %vm375, %v351, %v436
  %438 = vst [vmem:[%s1 + $0x7c] sm:$0x7] %v437
  %439 = vst [vmem:[%s1 + $0x80] sm:$0xf] %v352
  %v440 = vld [vmem:[%s1 + $0x84] sm:$0x7]
  %v441 = vsel %vm375, %v353, %v440
  %442 = vst [vmem:[%s1 + $0x84] sm:$0x7] %v441
  %443 = vst [vmem:[%s1 + $0x88] sm:$0xf] %v354
  %v444 = vld [vmem:[%s1 + $0x8c] sm:$0x7]
  %v445 = vsel %vm375, %v355, %v444
  %446 = vst [vmem:[%s1 + $0x8c] sm:$0x7] %v445
  %447 = vst [vmem:[%s1 + $0x90] sm:$0xf] %v356
  %v448 = vld [vmem:[%s1 + $0x94] sm:$0x7]
  %v449 = vsel %vm375, %v357, %v448
  %450 = vst [vmem:[%s1 + $0x94] sm:$0x7] %v449
  %451 = vst [vmem:[%s1 + $0x98] sm:$0xf] %v358
  %v452 = vld [vmem:[%s1 + $0x9c] sm:$0x7]
  %v453 = vsel %vm375, %v359, %v452
  %454 = vst [vmem:[%s1 + $0x9c] sm:$0x7] %v453
  %455 = vst [vmem:[%s1 + $0xa0] sm:$0xf] %v360
  %v456 = vld [vmem:[%s1 + $0xa4] sm:$0x7]
  %v457 = vsel %vm375, %v361, %v456
  %458 = vst [vmem:[%s1 + $0xa4] sm:$0x7] %v457
  %459 = vst [vmem:[%s1 + $0xa8] sm:$0xf] %v362
  %v460 = vld [vmem:[%s1 + $0xac] sm:$0x7]
  %v461 = vsel %vm375, %v363, %v460
  %462 = vst [vmem:[%s1 + $0xac] sm:$0x7] %v461
  %463 = vst [vmem:[%s1 + $0xb0] sm:$0xf] %v364
  %v464 = vld [vmem:[%s1 + $0xb4] sm:$0x7]
  %v465 = vsel %vm375, %v365, %v464
  %466 = vst [vmem:[%s1 + $0xb4] sm:$0x7] %v465
  %467 = vst [vmem:[%s1 + $0xb8] sm:$0xf] %v366
  %v468 = vld [vmem:[%s1 + $0xbc] sm:$0x7]
  %v469 = vsel %vm375, %v367, %v468
  %470 = vst [vmem:[%s1 + $0xbc] sm:$0x7] %v469
  %471 = vst [vmem:[%s1 + $0xc0] sm:$0xf] %v368
  %v472 = vld [vmem:[%s1 + $0xc4] sm:$0x7]
  %v473 = vsel %vm375, %v369, %v472
  %474 = vst [vmem:[%s1 + $0xc4] sm:$0x7] %v473
  %475 = vst [vmem:[%s1 + $0xc8] sm:$0xf] %v370
  %v476 = vld [vmem:[%s1 + $0xcc] sm:$0x7]
  %v477 = vsel %vm375, %v371, %v476
  %478 = vst [vmem:[%s1 + $0xcc] sm:$0x7] %v477
  // Predicated region
  $region6: #{forward.6} parent=0 // pred_check
    _
  $region7: #{forward.6} parent=0 // pred_check_branch
    %480 = sbr.rel (0) target = $region9
  $region8: #{forward.6} parent=0 // pred_region
    _
  $region9: #{forward.6} parent=0 // pred_fallthru
    _
  // Predicated region
  $region10: #{forward.6} parent=0 // pred_check
    _
  $region11: #{forward.6} parent=0 // pred_check_branch
    %482 = sbr.rel (0) target = $region13
  $region12: #{forward.6} parent=0 // pred_region
    _
  $region13: #{forward.6} parent=0 // pred_fallthru
    _

// kernel: forward.7
$region0: #{forward.7}
  #allocation0 [shape = 'u32[]', space=smem, size = 0x4, offset = 0x4, fixed_abs, tag = 'smem constant byte address 0x4 - core index']
  #allocation1 [shape = 'u32[144,128]{1,0:T(1,128)}', space=vmem, size = 0x12000, scoped, tag = 'internal scratch']
  %s0 = inlined_call_operand.vmem [shape: bf16[98,1152], index: 0, kind: input, shape index: {}]
  %s1 = inlined_call_operand.vmem [shape: bf16[1152,256], index: 1, kind: input, shape index: {}]
  %s2 = inlined_call_operand.vmem [shape: f32[1,256], index: 2, kind: input, shape index: {}]
  %s3 = inlined_call_operand.vmem [shape: bf16[98,128], index: 3, kind: output, shape index: {0}]
  %s4 = inlined_call_operand.vmem [shape: bf16[98,128], index: 4, kind: output, shape index: {1}]
  %5 = xla_tuple %s3, %s4
  %s6 = sld [smem:[#allocation0]]
  $region30: #{forward.7} parent=0
    _
  %s8 = ssub.s32 1, %s6
  %s9 = scalar_select 0, %s8, %s6
  // Predicated region
  $region2: #{forward.7} parent=0 // pred_check
    _
  $region3: #{forward.7} parent=0 // pred_check_branch
    %11 = sbr.rel (0) target = $region5
  $region4: #{forward.7} parent=0 // pred_region
    _
  $region5: #{forward.7} parent=0 // pred_fallthru
    _
  // Predicated region
  $region6: #{forward.7} parent=0 // pred_check
    _
  $region7: #{forward.7} parent=0 // pred_check_branch
    %13 = sbr.rel (0) target = $region9
  $region8: #{forward.7} parent=0 // pred_region
    _
  $region9: #{forward.7} parent=0 // pred_fallthru
    _
  // Predicated region
  $region10: #{forward.7} parent=0 // pred_check
    _
  $region11: #{forward.7} parent=0 // pred_check_branch
    %15 = sbr.rel (0) target = $region13
  $region12: #{forward.7} parent=0 // pred_region
    _
  $region13: #{forward.7} parent=0 // pred_fallthru
    _
  %v17 = vld [vmem:[%s0] sm:$0xff]
  %v18 = vld [vmem:[%s0 + $0x8] sm:$0xff]
  %v19 = vld [vmem:[%s0 + $0x10] sm:$0xff]
  %v20 = vld [vmem:[%s0 + $0x18] sm:$0xff]
  %v21 = vld [vmem:[%s0 + $0x20] sm:$0xf]
  %v22 = vld [vmem:[%s0 + $0x24] sm:$0xff]
  %v23 = vld [vmem:[%s0 + $0x2c] sm:$0xff]
  %v24 = vld [vmem:[%s0 + $0x34] sm:$0xff]
  %v25 = vld [vmem:[%s0 + $0x3c] sm:$0xff]
  %v26 = vld [vmem:[%s0 + $0x44] sm:$0xf]
  %v27 = vld [vmem:[%s0 + $0x48] sm:$0xff]
  %v28 = vld [vmem:[%s0 + $0x50] sm:$0xff]
  %v29 = vld [vmem:[%s0 + $0x58] sm:$0xff]
  %v30 = vld [vmem:[%s0 + $0x60] sm:$0xff]
  %v31 = vld [vmem:[%s0 + $0x68] sm:$0xf]
  %v32 = vld [vmem:[%s0 + $0x6c] sm:$0xff]
  %v33 = vld [vmem:[%s0 + $0x74] sm:$0xff]
  %v34 = vld [vmem:[%s0 + $0x7c] sm:$0xff]
  %v35 = vld [vmem:[%s0 + $0x84] sm:$0xff]
  %v36 = vld [vmem:[%s0 + $0x8c] sm:$0xf]
  %v37 = vld [vmem:[%s0 + $0x90] sm:$0xff]
  %v38 = vld [vmem:[%s0 + $0x98] sm:$0xff]
  %v39 = vld [vmem:[%s0 + $0xa0] sm:$0xff]
  %v40 = vld [vmem:[%s0 + $0xa8] sm:$0xff]
  %v41 = vld [vmem:[%s0 + $0xb0] sm:$0xf]
  %v42 = vld [vmem:[%s0 + $0xb4] sm:$0xff]
  %v43 = vld [vmem:[%s0 + $0xbc] sm:$0xff]
  %v44 = vld [vmem:[%s0 + $0xc4] sm:$0xff]
  %v45 = vld [vmem:[%s0 + $0xcc] sm:$0xff]
  %v46 = vld [vmem:[%s0 + $0xd4] sm:$0xf]
  %v47 = vld [vmem:[%s0 + $0xd8] sm:$0xff]
  %v48 = vld [vmem:[%s0 + $0xe0] sm:$0xff]
  %v49 = vld [vmem:[%s0 + $0xe8] sm:$0xff]
  %v50 = vld [vmem:[%s0 + $0xf0] sm:$0xff]
  %v51 = vld [vmem:[%s0 + $0xf8] sm:$0xf]
  %v52 = vld [vmem:[%s0 + $0xfc] sm:$0xff]
  %v53 = vld [vmem:[%s0 + $0x104] sm:$0xff]
  %v54 = vld [vmem:[%s0 + $0x10c] sm:$0xff]
  %v55 = vld [vmem:[%s0 + $0x114] sm:$0xff]
  %v56 = vld [vmem:[%s0 + $0x11c] sm:$0xf]
  %v57 = vld [vmem:[%s0 + $0x120] sm:$0xff]
  %v58 = vld [vmem:[%s0 + $0x128] sm:$0xff]
  %v59 = vld [vmem:[%s0 + $0x130] sm:$0xff]
  %v60 = vld [vmem:[%s0 + $0x138] sm:$0xff]
  %v61 = vld [vmem:[%s0 + $0x140] sm:$0xf]
  %v62 = vld [vmem:[%s0 + $0x144] sm:$0xff]
  %v63 = vld [vmem:[%s0 + $0x14c] sm:$0xff]
  %v64 = vld [vmem:[%s0 + $0x154] sm:$0xff]
  %v65 = vld [vmem:[%s0 + $0x15c] sm:$0xff]
  %v66 = vld [vmem:[%s0 + $0x164] sm:$0xf]
  %v67 = vld [vmem:[%s0 + $0x168] sm:$0xff]
  %v68 = vld [vmem:[%s0 + $0x170] sm:$0xff]
  %v69 = vld [vmem:[%s0 + $0x178] sm:$0xff]
  %v70 = vld [vmem:[%s0 + $0x180] sm:$0xff]
  %v71 = vld [vmem:[%s0 + $0x188] sm:$0xf]
  %v72 = vld [vmem:[%s0 + $0x18c] sm:$0xff]
  %v73 = vld [vmem:[%s0 + $0x194] sm:$0xff]
  %v74 = vld [vmem:[%s0 + $0x19c] sm:$0xff]
  %v75 = vld [vmem:[%s0 + $0x1a4] sm:$0xff]
  %v76 = vld [vmem:[%s0 + $0x1ac] sm:$0xf]
  %v77 = vld [vmem:[%s0 + $0x1b0] sm:$0x11]
  %v78 = vld [vmem:[%s0 + $0x1b8] sm:$0x11]
  %v79 = vld [vmem:[%s0 + $0x1c0] sm:$0x11]
  %v80 = vld [vmem:[%s0 + $0x1c8] sm:$0x11]
  %v81 = vld [vmem:[%s0 + $0x1d0] sm:$0x1]
  %v82 = vld [vmem:[%s1] sm:$0xff]
  %v83 = vld [vmem:[%s1 + $0x8] sm:$0xff]
  %v84 = vld [vmem:[%s1 + $0x10] sm:$0xff]
  %v85 = vld [vmem:[%s1 + $0x18] sm:$0xff]
  %v86 = vld [vmem:[%s1 + $0x20] sm:$0xff]
  %v87 = vld [vmem:[%s1 + $0x28] sm:$0xff]
  %v88 = vld [vmem:[%s1 + $0x30] sm:$0xff]
  %v89 = vld [vmem:[%s1 + $0x38] sm:$0xff]
  %v90 = vld [vmem:[%s1 + $0x40] sm:$0xff]
  %v91 = vld [vmem:[%s1 + $0x48] sm:$0xff]
  %v92 = vld [vmem:[%s1 + $0x50] sm:$0xff]
  %v93 = vld [vmem:[%s1 + $0x58] sm:$0xff]
  %v94 = vld [vmem:[%s1 + $0x60] sm:$0xff]
  %v95 = vld [vmem:[%s1 + $0x68] sm:$0xff]
  %v96 = vld [vmem:[%s1 + $0x70] sm:$0xff]
  %v97 = vld [vmem:[%s1 + $0x78] sm:$0xff]
  %v98 = vld [vmem:[%s1 + $0x80] sm:$0xff]
  %v99 = vld [vmem:[%s1 + $0x88] sm:$0xff]
  %v100 = vld [vmem:[%s1 + $0x90] sm:$0xff]
  %v101 = vld [vmem:[%s1 + $0x98] sm:$0xff]
  %v102 = vld [vmem:[%s1 + $0xa0] sm:$0xff]
  %v103 = vld [vmem:[%s1 + $0xa8] sm:$0xff]
  %v104 = vld [vmem:[%s1 + $0xb0] sm:$0xff]
  %v105 = vld [vmem:[%s1 + $0xb8] sm:$0xff]
  %v106 = vld [vmem:[%s1 + $0xc0] sm:$0xff]
  %v107 = vld [vmem:[%s1 + $0xc8] sm:$0xff]
  %v108 = vld [vmem:[%s1 + $0xd0] sm:$0xff]
  %v109 = vld [vmem:[%s1 + $0xd8] sm:$0xff]
  %v110 = vld [vmem:[%s1 + $0xe0] sm:$0xff]
  %v111 = vld [vmem:[%s1 + $0xe8] sm:$0xff]
  %v112 = vld [vmem:[%s1 + $0xf0] sm:$0xff]
  %v113 = vld [vmem:[%s1 + $0xf8] sm:$0xff]
  %v114 = vld [vmem:[%s1 + $0x100] sm:$0xff]
  %v115 = vld [vmem:[%s1 + $0x108] sm:$0xff]
  %v116 = vld [vmem:[%s1 + $0x110] sm:$0xff]
  %v117 = vld [vmem:[%s1 + $0x118] sm:$0xff]
  %v118 = vld [vmem:[%s1 + $0x120] sm:$0xff]
  %v119 = vld [vmem:[%s1 + $0x128] sm:$0xff]
  %v120 = vld [vmem:[%s1 + $0x130] sm:$0xff]
  %v121 = vld [vmem:[%s1 + $0x138] sm:$0xff]
  %v122 = vld [vmem:[%s1 + $0x140] sm:$0xff]
  %v123 = vld [vmem:[%s1 + $0x148] sm:$0xff]
  %v124 = vld [vmem:[%s1 + $0x150] sm:$0xff]
  %v125 = vld [vmem:[%s1 + $0x158] sm:$0xff]
  %v126 = vld [vmem:[%s1 + $0x160] sm:$0xff]
  %v127 = vld [vmem:[%s1 + $0x168] sm:$0xff]
  %v128 = vld [vmem:[%s1 + $0x170] sm:$0xff]
  %v129 = vld [vmem:[%s1 + $0x178] sm:$0xff]
  %v130 = vld [vmem:[%s1 + $0x180] sm:$0xff]
  %v131 = vld [vmem:[%s1 + $0x188] sm:$0xff]
  %v132 = vld [vmem:[%s1 + $0x190] sm:$0xff]
  %v133 = vld [vmem:[%s1 + $0x198] sm:$0xff]
  %v134 = vld [vmem:[%s1 + $0x1a0] sm:$0xff]
  %v135 = vld [vmem:[%s1 + $0x1a8] sm:$0xff]
  %v136 = vld [vmem:[%s1 + $0x1b0] sm:$0xff]
  %v137 = vld [vmem:[%s1 + $0x1b8] sm:$0xff]
  %v138 = vld [vmem:[%s1 + $0x1c0] sm:$0xff]
  %v139 = vld [vmem:[%s1 + $0x1c8] sm:$0xff]
  %v140 = vld [vmem:[%s1 + $0x1d0] sm:$0xff]
  %v141 = vld [vmem:[%s1 + $0x1d8] sm:$0xff]
  %v142 = vld [vmem:[%s1 + $0x1e0] sm:$0xff]
  %v143 = vld [vmem:[%s1 + $0x1e8] sm:$0xff]
  %v144 = vld [vmem:[%s1 + $0x1f0] sm:$0xff]
  %v145 = vld [vmem:[%s1 + $0x1f8] sm:$0xff]
  %v146 = vld [vmem:[%s1 + $0x200] sm:$0xff]
  %v147 = vld [vmem:[%s1 + $0x208] sm:$0xff]
  %v148 = vld [vmem:[%s1 + $0x210] sm:$0xff]
  %v149 = vld [vmem:[%s1 + $0x218] sm:$0xff]
  %v150 = vld [vmem:[%s1 + $0x220] sm:$0xff]
  %v151 = vld [vmem:[%s1 + $0x228] sm:$0xff]
  %v152 = vld [vmem:[%s1 + $0x230] sm:$0xff]
  %v153 = vld [vmem:[%s1 + $0x238] sm:$0xff]
  %v154 = vld [vmem:[%s1 + $0x240] sm:$0xff]
  %v155 = vld [vmem:[%s1 + $0x248] sm:$0xff]
  %v156 = vld [vmem:[%s1 + $0x250] sm:$0xff]
  %v157 = vld [vmem:[%s1 + $0x258] sm:$0xff]
  %v158 = vld [vmem:[%s1 + $0x260] sm:$0xff]
  %v159 = vld [vmem:[%s1 + $0x268] sm:$0xff]
  %v160 = vld [vmem:[%s1 + $0x270] sm:$0xff]
  %v161 = vld [vmem:[%s1 + $0x278] sm:$0xff]
  %v162 = vld [vmem:[%s1 + $0x280] sm:$0xff]
  %v163 = vld [vmem:[%s1 + $0x288] sm:$0xff]
  %v164 = vld [vmem:[%s1 + $0x290] sm:$0xff]
  %v165 = vld [vmem:[%s1 + $0x298] sm:$0xff]
  %v166 = vld [vmem:[%s1 + $0x2a0] sm:$0xff]
  %v167 = vld [vmem:[%s1 + $0x2a8] sm:$0xff]
  %v168 = vld [vmem:[%s1 + $0x2b0] sm:$0xff]
  %v169 = vld [vmem:[%s1 + $0x2b8] sm:$0xff]
  %v170 = vld [vmem:[%s1 + $0x2c0] sm:$0xff]
  %v171 = vld [vmem:[%s1 + $0x2c8] sm:$0xff]
  %v172 = vld [vmem:[%s1 + $0x2d0] sm:$0xff]
  %v173 = vld [vmem:[%s1 + $0x2d8] sm:$0xff]
  %v174 = vld [vmem:[%s1 + $0x2e0] sm:$0xff]
  %v175 = vld [vmem:[%s1 + $0x2e8] sm:$0xff]
  %v176 = vld [vmem:[%s1 + $0x2f0] sm:$0xff]
  %v177 = vld [vmem:[%s1 + $0x2f8] sm:$0xff]
  %v178 = vld [vmem:[%s1 + $0x300] sm:$0xff]
  %v179 = vld [vmem:[%s1 + $0x308] sm:$0xff]
  %v180 = vld [vmem:[%s1 + $0x310] sm:$0xff]
  %v181 = vld [vmem:[%s1 + $0x318] sm:$0xff]
  %v182 = vld [vmem:[%s1 + $0x320] sm:$0xff]
  %v183 = vld [vmem:[%s1 + $0x328] sm:$0xff]
  %v184 = vld [vmem:[%s1 + $0x330] sm:$0xff]
  %v185 = vld [vmem:[%s1 + $0x338] sm:$0xff]
  %v186 = vld [vmem:[%s1 + $0x340] sm:$0xff]
  %v187 = vld [vmem:[%s1 + $0x348] sm:$0xff]
  %v188 = vld [vmem:[%s1 + $0x350] sm:$0xff]
  %v189 = vld [vmem:[%s1 + $0x358] sm:$0xff]
  %v190 = vld [vmem:[%s1 + $0x360] sm:$0xff]
  %v191 = vld [vmem:[%s1 + $0x368] sm:$0xff]
  %v192 = vld [vmem:[%s1 + $0x370] sm:$0xff]
  %v193 = vld [vmem:[%s1 + $0x378] sm:$0xff]
  %v194 = vld [vmem:[%s1 + $0x380] sm:$0xff]
  %v195 = vld [vmem:[%s1 + $0x388] sm:$0xff]
  %v196 = vld [vmem:[%s1 + $0x390] sm:$0xff]
  %v197 = vld [vmem:[%s1 + $0x398] sm:$0xff]
  %v198 = vld [vmem:[%s1 + $0x3a0] sm:$0xff]
  %v199 = vld [vmem:[%s1 + $0x3a8] sm:$0xff]
  %v200 = vld [vmem:[%s1 + $0x3b0] sm:$0xff]
  %v201 = vld [vmem:[%s1 + $0x3b8] sm:$0xff]
  %v202 = vld [vmem:[%s1 + $0x3c0] sm:$0xff]
  %v203 = vld [vmem:[%s1 + $0x3c8] sm:$0xff]
  %v204 = vld [vmem:[%s1 + $0x3d0] sm:$0xff]
  %v205 = vld [vmem:[%s1 + $0x3d8] sm:$0xff]
  %v206 = vld [vmem:[%s1 + $0x3e0] sm:$0xff]
  %v207 = vld [vmem:[%s1 + $0x3e8] sm:$0xff]
  %v208 = vld [vmem:[%s1 + $0x3f0] sm:$0xff]
  %v209 = vld [vmem:[%s1 + $0x3f8] sm:$0xff]
  %v210 = vld [vmem:[%s1 + $0x400] sm:$0xff]
  %v211 = vld [vmem:[%s1 + $0x408] sm:$0xff]
  %v212 = vld [vmem:[%s1 + $0x410] sm:$0xff]
  %v213 = vld [vmem:[%s1 + $0x418] sm:$0xff]
  %v214 = vld [vmem:[%s1 + $0x420] sm:$0xff]
  %v215 = vld [vmem:[%s1 + $0x428] sm:$0xff]
  %v216 = vld [vmem:[%s1 + $0x430] sm:$0xff]
  %v217 = vld [vmem:[%s1 + $0x438] sm:$0xff]
  %v218 = vld [vmem:[%s1 + $0x440] sm:$0xff]
  %v219 = vld [vmem:[%s1 + $0x448] sm:$0xff]
  %v220 = vld [vmem:[%s1 + $0x450] sm:$0xff]
  %v221 = vld [vmem:[%s1 + $0x458] sm:$0xff]
  %v222 = vld [vmem:[%s1 + $0x460] sm:$0xff]
  %v223 = vld [vmem:[%s1 + $0x468] sm:$0xff]
  %v224 = vld [vmem:[%s1 + $0x470] sm:$0xff]
  %v225 = vld [vmem:[%s1 + $0x478] sm:$0xff]
  %v226 = vld [vmem:[%s2] sm:$0x3]
  %v228 = vlaneseq
  %v229 = vshrl.u32 %v228, 7
  %v230 = vsub.s32 0, %v229
  %v231 = vrot.slane %v226, %v230
  %v232 = vlaneseq
  %v233 = vshrl.u32 %v232, 7
  %v234 = vsub.s32 1, %v233
  %v235 = vrot.slane %v226, %v234
  %v303 = vunpack.c.l.b16 %v17
  %v304 = vunpack.c.h.b16 %v17
  %v305 = vunpack.c.l.b16 %v18
  %v306 = vunpack.c.h.b16 %v18
  %v307 = vunpack.c.l.b16 %v19
  %v308 = vunpack.c.h.b16 %v19
  %v309 = vunpack.c.l.b16 %v20
  %v310 = vunpack.c.h.b16 %v20
  %v311 = vunpack.c.l.b16 %v21
  %v312 = vunpack.c.l.b16 %v22
  %v313 = vunpack.c.h.b16 %v22
  %v314 = vunpack.c.l.b16 %v23
  %v315 = vunpack.c.h.b16 %v23
  %v316 = vunpack.c.l.b16 %v24
  %v317 = vunpack.c.h.b16 %v24
  %v318 = vunpack.c.l.b16 %v25
  %v319 = vunpack.c.h.b16 %v25
  %v320 = vunpack.c.l.b16 %v26
  %v321 = vunpack.c.l.b16 %v27
  %v322 = vunpack.c.h.b16 %v27
  %v323 = vunpack.c.l.b16 %v28
  %v324 = vunpack.c.h.b16 %v28
  %v325 = vunpack.c.l.b16 %v29
  %v326 = vunpack.c.h.b16 %v29
  %v327 = vunpack.c.l.b16 %v30
  %v328 = vunpack.c.h.b16 %v30
  %v329 = vunpack.c.l.b16 %v31
  %v330 = vunpack.c.l.b16 %v32
  %v331 = vunpack.c.h.b16 %v32
  %v332 = vunpack.c.l.b16 %v33
  %v333 = vunpack.c.h.b16 %v33
  %v334 = vunpack.c.l.b16 %v34
  %v335 = vunpack.c.h.b16 %v34
  %v336 = vunpack.c.l.b16 %v35
  %v337 = vunpack.c.h.b16 %v35
  %v338 = vunpack.c.l.b16 %v36
  %v339 = vunpack.c.l.b16 %v37
  %v340 = vunpack.c.h.b16 %v37
  %v341 = vunpack.c.l.b16 %v38
  %v342 = vunpack.c.h.b16 %v38
  %v343 = vunpack.c.l.b16 %v39
  %v344 = vunpack.c.h.b16 %v39
  %v345 = vunpack.c.l.b16 %v40
  %v346 = vunpack.c.h.b16 %v40
  %v347 = vunpack.c.l.b16 %v41
  %v348 = vunpack.c.l.b16 %v42
  %v349 = vunpack.c.h.b16 %v42
  %v350 = vunpack.c.l.b16 %v43
  %v351 = vunpack.c.h.b16 %v43
  %v352 = vunpack.c.l.b16 %v44
  %v353 = vunpack.c.h.b16 %v44
  %v354 = vunpack.c.l.b16 %v45
  %v355 = vunpack.c.h.b16 %v45
  %v356 = vunpack.c.l.b16 %v46
  %v357 = vunpack.c.l.b16 %v47
  %v358 = vunpack.c.h.b16 %v47
  %v359 = vunpack.c.l.b16 %v48
  %v360 = vunpack.c.h.b16 %v48
  %v361 = vunpack.c.l.b16 %v49
  %v362 = vunpack.c.h.b16 %v49
  %v363 = vunpack.c.l.b16 %v50
  %v364 = vunpack.c.h.b16 %v50
  %v365 = vunpack.c.l.b16 %v51
  %v366 = vunpack.c.l.b16 %v52
  %v367 = vunpack.c.h.b16 %v52
  %v368 = vunpack.c.l.b16 %v53
  %v369 = vunpack.c.h.b16 %v53
  %v370 = vunpack.c.l.b16 %v54
  %v371 = vunpack.c.h.b16 %v54
  %v372 = vunpack.c.l.b16 %v55
  %v373 = vunpack.c.h.b16 %v55
  %v374 = vunpack.c.l.b16 %v56
  %v375 = vunpack.c.l.b16 %v57
  %v376 = vunpack.c.h.b16 %v57
  %v377 = vunpack.c.l.b16 %v58
  %v378 = vunpack.c.h.b16 %v58
  %v379 = vunpack.c.l.b16 %v59
  %v380 = vunpack.c.h.b16 %v59
  %v381 = vunpack.c.l.b16 %v60
  %v382 = vunpack.c.h.b16 %v60
  %v383 = vunpack.c.l.b16 %v61
  %v384 = vunpack.c.l.b16 %v62
  %v385 = vunpack.c.h.b16 %v62
  %v386 = vunpack.c.l.b16 %v63
  %v387 = vunpack.c.h.b16 %v63
  %v388 = vunpack.c.l.b16 %v64
  %v389 = vunpack.c.h.b16 %v64
  %v390 = vunpack.c.l.b16 %v65
  %v391 = vunpack.c.h.b16 %v65
  %v392 = vunpack.c.l.b16 %v66
  %v393 = vunpack.c.l.b16 %v67
  %v394 = vunpack.c.h.b16 %v67
  %v395 = vunpack.c.l.b16 %v68
  %v396 = vunpack.c.h.b16 %v68
  %v397 = vunpack.c.l.b16 %v69
  %v398 = vunpack.c.h.b16 %v69
  %v399 = vunpack.c.l.b16 %v70
  %v400 = vunpack.c.h.b16 %v70
  %v401 = vunpack.c.l.b16 %v71
  %v402 = vunpack.c.l.b16 %v72
  %v403 = vunpack.c.h.b16 %v72
  %v404 = vunpack.c.l.b16 %v73
  %v405 = vunpack.c.h.b16 %v73
  %v406 = vunpack.c.l.b16 %v74
  %v407 = vunpack.c.h.b16 %v74
  %v408 = vunpack.c.l.b16 %v75
  %v409 = vunpack.c.h.b16 %v75
  %v410 = vunpack.c.l.b16 %v76
  %v411 = vunpack.c.l.b16 %v77
  %v412 = vunpack.c.h.b16 %v77
  %v413 = vunpack.c.l.b16 %v78
  %v414 = vunpack.c.h.b16 %v78
  %v415 = vunpack.c.l.b16 %v79
  %v416 = vunpack.c.h.b16 %v79
  %v417 = vunpack.c.l.b16 %v80
  %v418 = vunpack.c.h.b16 %v80
  %v419 = vunpack.c.l.b16 %v81
  %v420 = vpack.c.b16 %v312, %v303
  %v421 = vpack.c.b16 %v313, %v304
  %v422 = vpack.c.b16 %v314, %v305
  %v423 = vpack.c.b16 %v315, %v306
  %v424 = vpack.c.b16 %v316, %v307
  %v425 = vpack.c.b16 %v317, %v308
  %v426 = vpack.c.b16 %v318, %v309
  %v427 = vpack.c.b16 %v319, %v310
  %v428 = vpack.c.b16 %v320, %v311
  %v429 = vpack.c.b16 %v330, %v321
  %v430 = vpack.c.b16 %v331, %v322
  %v431 = vpack.c.b16 %v332, %v323
  %v432 = vpack.c.b16 %v333, %v324
  %v433 = vpack.c.b16 %v334, %v325
  %v434 = vpack.c.b16 %v335, %v326
  %v435 = vpack.c.b16 %v336, %v327
  %v436 = vpack.c.b16 %v337, %v328
  %v437 = vpack.c.b16 %v338, %v329
  %v438 = vpack.c.b16 %v348, %v339
  %v439 = vpack.c.b16 %v349, %v340
  %v440 = vpack.c.b16 %v350, %v341
  %v441 = vpack.c.b16 %v351, %v342
  %v442 = vpack.c.b16 %v352, %v343
  %v443 = vpack.c.b16 %v353, %v344
  %v444 = vpack.c.b16 %v354, %v345
  %v445 = vpack.c.b16 %v355, %v346
  %v446 = vpack.c.b16 %v356, %v347
  %v447 = vpack.c.b16 %v366, %v357
  %v448 = vpack.c.b16 %v367, %v358
  %v449 = vpack.c.b16 %v368, %v359
  %v450 = vpack.c.b16 %v369, %v360
  %v451 = vpack.c.b16 %v370, %v361
  %v452 = vpack.c.b16 %v371, %v362
  %v453 = vpack.c.b16 %v372, %v363
  %v454 = vpack.c.b16 %v373, %v364
  %v455 = vpack.c.b16 %v374, %v365
  %v456 = vpack.c.b16 %v384, %v375
  %v457 = vpack.c.b16 %v385, %v376
  %v458 = vpack.c.b16 %v386, %v377
  %v459 = vpack.c.b16 %v387, %v378
  %v460 = vpack.c.b16 %v388, %v379
  %v461 = vpack.c.b16 %v389, %v380
  %v462 = vpack.c.b16 %v390, %v381
  %v463 = vpack.c.b16 %v391, %v382
  %v464 = vpack.c.b16 %v392, %v383
  %v465 = vpack.c.b16 %v402, %v393
  %v466 = vpack.c.b16 %v403, %v394
  %v467 = vpack.c.b16 %v404, %v395
  %v468 = vpack.c.b16 %v405, %v396
  %v469 = vpack.c.b16 %v406, %v397
  %v470 = vpack.c.b16 %v407, %v398
  %v471 = vpack.c.b16 %v408, %v399
  %v472 = vpack.c.b16 %v409, %v400
  %v473 = vpack.c.b16 %v410, %v401
  %v474 = vpack.c.b16 %v411, %v411
  %v475 = vpack.c.b16 %v412, %v412
  %v476 = vpack.c.b16 %v413, %v413
  %v477 = vpack.c.b16 %v414, %v414
  %v478 = vpack.c.b16 %v415, %v415
  %v479 = vpack.c.b16 %v416, %v416
  %v480 = vpack.c.b16 %v417, %v417
  %v481 = vpack.c.b16 %v418, %v418
  %v482 = vpack.c.b16 %v419, %v419
  %v690 = vunpack.c.l.b16 %v82
  %v691 = vunpack.c.h.b16 %v82
  %v692 = vunpack.c.l.b16 %v83
  %v693 = vunpack.c.h.b16 %v83
  %v694 = vunpack.c.l.b16 %v84
  %v695 = vunpack.c.h.b16 %v84
  %v696 = vunpack.c.l.b16 %v85
  %v697 = vunpack.c.h.b16 %v85
  %v698 = vunpack.c.l.b16 %v86
  %v699 = vunpack.c.h.b16 %v86
  %v700 = vunpack.c.l.b16 %v87
  %v701 = vunpack.c.h.b16 %v87
  %v702 = vunpack.c.l.b16 %v88
  %v703 = vunpack.c.h.b16 %v88
  %v704 = vunpack.c.l.b16 %v89
  %v705 = vunpack.c.h.b16 %v89
  %v706 = vunpack.c.l.b16 %v90
  %v707 = vunpack.c.h.b16 %v90
  %v708 = vunpack.c.l.b16 %v91
  %v709 = vunpack.c.h.b16 %v91
  %v710 = vunpack.c.l.b16 %v92
  %v711 = vunpack.c.h.b16 %v92
  %v712 = vunpack.c.l.b16 %v93
  %v713 = vunpack.c.h.b16 %v93
  %v714 = vunpack.c.l.b16 %v94
  %v715 = vunpack.c.h.b16 %v94
  %v716 = vunpack.c.l.b16 %v95
  %v717 = vunpack.c.h.b16 %v95
  %v718 = vunpack.c.l.b16 %v96
  %v719 = vunpack.c.h.b16 %v96
  %v720 = vunpack.c.l.b16 %v97
  %v721 = vunpack.c.h.b16 %v97
  %v722 = vunpack.c.l.b16 %v98
  %v723 = vunpack.c.h.b16 %v98
  %v724 = vunpack.c.l.b16 %v99
  %v725 = vunpack.c.h.b16 %v99
  %v726 = vunpack.c.l.b16 %v100
  %v727 = vunpack.c.h.b16 %v100
  %v728 = vunpack.c.l.b16 %v101
  %v729 = vunpack.c.h.b16 %v101
  %v730 = vunpack.c.l.b16 %v102
  %v731 = vunpack.c.h.b16 %v102
  %v732 = vunpack.c.l.b16 %v103
  %v733 = vunpack.c.h.b16 %v103
  %v734 = vunpack.c.l.b16 %v104
  %v735 = vunpack.c.h.b16 %v104
  %v736 = vunpack.c.l.b16 %v105
  %v737 = vunpack.c.h.b16 %v105
  %v738 = vunpack.c.l.b16 %v106
  %v739 = vunpack.c.h.b16 %v106
  %v740 = vunpack.c.l.b16 %v107
  %v741 = vunpack.c.h.b16 %v107
  %v742 = vunpack.c.l.b16 %v108
  %v743 = vunpack.c.h.b16 %v108
  %v744 = vunpack.c.l.b16 %v109
  %v745 = vunpack.c.h.b16 %v109
  %v746 = vunpack.c.l.b16 %v110
  %v747 = vunpack.c.h.b16 %v110
  %v748 = vunpack.c.l.b16 %v111
  %v749 = vunpack.c.h.b16 %v111
  %v750 = vunpack.c.l.b16 %v112
  %v751 = vunpack.c.h.b16 %v112
  %v752 = vunpack.c.l.b16 %v113
  %v753 = vunpack.c.h.b16 %v113
  %v754 = vunpack.c.l.b16 %v114
  %v755 = vunpack.c.h.b16 %v114
  %v756 = vunpack.c.l.b16 %v115
  %v757 = vunpack.c.h.b16 %v115
  %v758 = vunpack.c.l.b16 %v116
  %v759 = vunpack.c.h.b16 %v116
  %v760 = vunpack.c.l.b16 %v117
  %v761 = vunpack.c.h.b16 %v117
  %v762 = vunpack.c.l.b16 %v118
  %v763 = vunpack.c.h.b16 %v118
  %v764 = vunpack.c.l.b16 %v119
  %v765 = vunpack.c.h.b16 %v119
  %v766 = vunpack.c.l.b16 %v120
  %v767 = vunpack.c.h.b16 %v120
  %v768 = vunpack.c.l.b16 %v121
  %v769 = vunpack.c.h.b16 %v121
  %v770 = vunpack.c.l.b16 %v122
  %v771 = vunpack.c.h.b16 %v122
  %v772 = vunpack.c.l.b16 %v123
  %v773 = vunpack.c.h.b16 %v123
  %v774 = vunpack.c.l.b16 %v124
  %v775 = vunpack.c.h.b16 %v124
  %v776 = vunpack.c.l.b16 %v125
  %v777 = vunpack.c.h.b16 %v125
  %v778 = vunpack.c.l.b16 %v126
  %v779 = vunpack.c.h.b16 %v126
  %v780 = vunpack.c.l.b16 %v127
  %v781 = vunpack.c.h.b16 %v127
  %v782 = vunpack.c.l.b16 %v128
  %v783 = vunpack.c.h.b16 %v128
  %v784 = vunpack.c.l.b16 %v129
  %v785 = vunpack.c.h.b16 %v129
  %v786 = vunpack.c.l.b16 %v130
  %v787 = vunpack.c.h.b16 %v130
  %v788 = vunpack.c.l.b16 %v131
  %v789 = vunpack.c.h.b16 %v131
  %v790 = vunpack.c.l.b16 %v132
  %v791 = vunpack.c.h.b16 %v132
  %v792 = vunpack.c.l.b16 %v133
  %v793 = vunpack.c.h.b16 %v133
  %v794 = vunpack.c.l.b16 %v134
  %v795 = vunpack.c.h.b16 %v134
  %v796 = vunpack.c.l.b16 %v135
  %v797 = vunpack.c.h.b16 %v135
  %v798 = vunpack.c.l.b16 %v136
  %v799 = vunpack.c.h.b16 %v136
  %v800 = vunpack.c.l.b16 %v137
  %v801 = vunpack.c.h.b16 %v137
  %v802 = vunpack.c.l.b16 %v138
  %v803 = vunpack.c.h.b16 %v138
  %v804 = vunpack.c.l.b16 %v139
  %v805 = vunpack.c.h.b16 %v139
  %v806 = vunpack.c.l.b16 %v140
  %v807 = vunpack.c.h.b16 %v140
  %v808 = vunpack.c.l.b16 %v141
  %v809 = vunpack.c.h.b16 %v141
  %v810 = vunpack.c.l.b16 %v142
  %v811 = vunpack.c.h.b16 %v142
  %v812 = vunpack.c.l.b16 %v143
  %v813 = vunpack.c.h.b16 %v143
  %v814 = vunpack.c.l.b16 %v144
  %v815 = vunpack.c.h.b16 %v144
  %v816 = vunpack.c.l.b16 %v145
  %v817 = vunpack.c.h.b16 %v145
  %v818 = vunpack.c.l.b16 %v146
  %v819 = vunpack.c.h.b16 %v146
  %v820 = vunpack.c.l.b16 %v147
  %v821 = vunpack.c.h.b16 %v147
  %v822 = vunpack.c.l.b16 %v148
  %v823 = vunpack.c.h.b16 %v148
  %v824 = vunpack.c.l.b16 %v149
  %v825 = vunpack.c.h.b16 %v149
  %v826 = vunpack.c.l.b16 %v150
  %v827 = vunpack.c.h.b16 %v150
  %v828 = vunpack.c.l.b16 %v151
  %v829 = vunpack.c.h.b16 %v151
  %v830 = vunpack.c.l.b16 %v152
  %v831 = vunpack.c.h.b16 %v152
  %v832 = vunpack.c.l.b16 %v153
  %v833 = vunpack.c.h.b16 %v153
  %v834 = vunpack.c.l.b16 %v154
  %v835 = vunpack.c.h.b16 %v154
  %v836 = vunpack.c.l.b16 %v155
  %v837 = vunpack.c.h.b16 %v155
  %v838 = vunpack.c.l.b16 %v156
  %v839 = vunpack.c.h.b16 %v156
  %v840 = vunpack.c.l.b16 %v157
  %v841 = vunpack.c.h.b16 %v157
  %v842 = vunpack.c.l.b16 %v158
  %v843 = vunpack.c.h.b16 %v158
  %v844 = vunpack.c.l.b16 %v159
  %v845 = vunpack.c.h.b16 %v159
  %v846 = vunpack.c.l.b16 %v160
  %v847 = vunpack.c.h.b16 %v160
  %v848 = vunpack.c.l.b16 %v161
  %v849 = vunpack.c.h.b16 %v161
  %v850 = vunpack.c.l.b16 %v162
  %v851 = vunpack.c.h.b16 %v162
  %v852 = vunpack.c.l.b16 %v163
  %v853 = vunpack.c.h.b16 %v163
  %v854 = vunpack.c.l.b16 %v164
  %v855 = vunpack.c.h.b16 %v164
  %v856 = vunpack.c.l.b16 %v165
  %v857 = vunpack.c.h.b16 %v165
  %v858 = vunpack.c.l.b16 %v166
  %v859 = vunpack.c.h.b16 %v166
  %v860 = vunpack.c.l.b16 %v167
  %v861 = vunpack.c.h.b16 %v167
  %v862 = vunpack.c.l.b16 %v168
  %v863 = vunpack.c.h.b16 %v168
  %v864 = vunpack.c.l.b16 %v169
  %v865 = vunpack.c.h.b16 %v169
  %v866 = vunpack.c.l.b16 %v170
  %v867 = vunpack.c.h.b16 %v170
  %v868 = vunpack.c.l.b16 %v171
  %v869 = vunpack.c.h.b16 %v171
  %v870 = vunpack.c.l.b16 %v172
  %v871 = vunpack.c.h.b16 %v172
  %v872 = vunpack.c.l.b16 %v173
  %v873 = vunpack.c.h.b16 %v173
  %v874 = vunpack.c.l.b16 %v174
  %v875 = vunpack.c.h.b16 %v174
  %v876 = vunpack.c.l.b16 %v175
  %v877 = vunpack.c.h.b16 %v175
  %v878 = vunpack.c.l.b16 %v176
  %v879 = vunpack.c.h.b16 %v176
  %v880 = vunpack.c.l.b16 %v177
  %v881 = vunpack.c.h.b16 %v177
  %v882 = vunpack.c.l.b16 %v178
  %v883 = vunpack.c.h.b16 %v178
  %v884 = vunpack.c.l.b16 %v179
  %v885 = vunpack.c.h.b16 %v179
  %v886 = vunpack.c.l.b16 %v180
  %v887 = vunpack.c.h.b16 %v180
  %v888 = vunpack.c.l.b16 %v181
  %v889 = vunpack.c.h.b16 %v181
  %v890 = vunpack.c.l.b16 %v182
  %v891 = vunpack.c.h.b16 %v182
  %v892 = vunpack.c.l.b16 %v183
  %v893 = vunpack.c.h.b16 %v183
  %v894 = vunpack.c.l.b16 %v184
  %v895 = vunpack.c.h.b16 %v184
  %v896 = vunpack.c.l.b16 %v185
  %v897 = vunpack.c.h.b16 %v185
  %v898 = vunpack.c.l.b16 %v186
  %v899 = vunpack.c.h.b16 %v186
  %v900 = vunpack.c.l.b16 %v187
  %v901 = vunpack.c.h.b16 %v187
  %v902 = vunpack.c.l.b16 %v188
  %v903 = vunpack.c.h.b16 %v188
  %v904 = vunpack.c.l.b16 %v189
  %v905 = vunpack.c.h.b16 %v189
  %v906 = vunpack.c.l.b16 %v190
  %v907 = vunpack.c.h.b16 %v190
  %v908 = vunpack.c.l.b16 %v191
  %v909 = vunpack.c.h.b16 %v191
  %v910 = vunpack.c.l.b16 %v192
  %v911 = vunpack.c.h.b16 %v192
  %v912 = vunpack.c.l.b16 %v193
  %v913 = vunpack.c.h.b16 %v193
  %v914 = vunpack.c.l.b16 %v194
  %v915 = vunpack.c.h.b16 %v194
  %v916 = vunpack.c.l.b16 %v195
  %v917 = vunpack.c.h.b16 %v195
  %v918 = vunpack.c.l.b16 %v196
  %v919 = vunpack.c.h.b16 %v196
  %v920 = vunpack.c.l.b16 %v197
  %v921 = vunpack.c.h.b16 %v197
  %v922 = vunpack.c.l.b16 %v198
  %v923 = vunpack.c.h.b16 %v198
  %v924 = vunpack.c.l.b16 %v199
  %v925 = vunpack.c.h.b16 %v199
  %v926 = vunpack.c.l.b16 %v200
  %v927 = vunpack.c.h.b16 %v200
  %v928 = vunpack.c.l.b16 %v201
  %v929 = vunpack.c.h.b16 %v201
  %v930 = vunpack.c.l.b16 %v202
  %v931 = vunpack.c.h.b16 %v202
  %v932 = vunpack.c.l.b16 %v203
  %v933 = vunpack.c.h.b16 %v203
  %v934 = vunpack.c.l.b16 %v204
  %v935 = vunpack.c.h.b16 %v204
  %v936 = vunpack.c.l.b16 %v205
  %v937 = vunpack.c.h.b16 %v205
  %v938 = vunpack.c.l.b16 %v206
  %v939 = vunpack.c.h.b16 %v206
  %v940 = vunpack.c.l.b16 %v207
  %v941 = vunpack.c.h.b16 %v207
  %v942 = vunpack.c.l.b16 %v208
  %v943 = vunpack.c.h.b16 %v208
  %v944 = vunpack.c.l.b16 %v209
  %v945 = vunpack.c.h.b16 %v209
  %v946 = vunpack.c.l.b16 %v210
  %v947 = vunpack.c.h.b16 %v210
  %v948 = vunpack.c.l.b16 %v211
  %v949 = vunpack.c.h.b16 %v211
  %v950 = vunpack.c.l.b16 %v212
  %v951 = vunpack.c.h.b16 %v212
  %v952 = vunpack.c.l.b16 %v213
  %v953 = vunpack.c.h.b16 %v213
  %v954 = vunpack.c.l.b16 %v214
  %v955 = vunpack.c.h.b16 %v214
  %v956 = vunpack.c.l.b16 %v215
  %v957 = vunpack.c.h.b16 %v215
  %v958 = vunpack.c.l.b16 %v216
  %v959 = vunpack.c.h.b16 %v216
  %v960 = vunpack.c.l.b16 %v217
  %v961 = vunpack.c.h.b16 %v217
  %v962 = vunpack.c.l.b16 %v218
  %v963 = vunpack.c.h.b16 %v218
  %v964 = vunpack.c.l.b16 %v219
  %v965 = vunpack.c.h.b16 %v219
  %v966 = vunpack.c.l.b16 %v220
  %v967 = vunpack.c.h.b16 %v220
  %v968 = vunpack.c.l.b16 %v221
  %v969 = vunpack.c.h.b16 %v221
  %v970 = vunpack.c.l.b16 %v222
  %v971 = vunpack.c.h.b16 %v222
  %v972 = vunpack.c.l.b16 %v223
  %v973 = vunpack.c.h.b16 %v223
  %v974 = vunpack.c.l.b16 %v224
  %v975 = vunpack.c.h.b16 %v224
  %v976 = vunpack.c.l.b16 %v225
  %v977 = vunpack.c.h.b16 %v225
  %v978 = vpack.c.b16 %v692, %v690
  %v979 = vpack.c.b16 %v693, %v691
  %v980 = vpack.c.b16 %v696, %v694
  %v981 = vpack.c.b16 %v697, %v695
  %v982 = vpack.c.b16 %v700, %v698
  %v983 = vpack.c.b16 %v701, %v699
  %v984 = vpack.c.b16 %v704, %v702
  %v985 = vpack.c.b16 %v705, %v703
  %v986 = vpack.c.b16 %v708, %v706
  %v987 = vpack.c.b16 %v709, %v707
  %v988 = vpack.c.b16 %v712, %v710
  %v989 = vpack.c.b16 %v713, %v711
  %v990 = vpack.c.b16 %v716, %v714
  %v991 = vpack.c.b16 %v717, %v715
  %v992 = vpack.c.b16 %v720, %v718
  %v993 = vpack.c.b16 %v721, %v719
  %v994 = vpack.c.b16 %v724, %v722
  %v995 = vpack.c.b16 %v725, %v723
  %v996 = vpack.c.b16 %v728, %v726
  %v997 = vpack.c.b16 %v729, %v727
  %v998 = vpack.c.b16 %v732, %v730
  %v999 = vpack.c.b16 %v733, %v731
  %v1000 = vpack.c.b16 %v736, %v734
  %v1001 = vpack.c.b16 %v737, %v735
  %v1002 = vpack.c.b16 %v740, %v738
  %v1003 = vpack.c.b16 %v741, %v739
  %v1004 = vpack.c.b16 %v744, %v742
  %v1005 = vpack.c.b16 %v745, %v743
  %v1006 = vpack.c.b16 %v748, %v746
  %v1007 = vpack.c.b16 %v749, %v747
  %v1008 = vpack.c.b16 %v752, %v750
  %v1009 = vpack.c.b16 %v753, %v751
  %v1010 = vpack.c.b16 %v756, %v754
  %v1011 = vpack.c.b16 %v757, %v755
  %v1012 = vpack.c.b16 %v760, %v758
  %v1013 = vpack.c.b16 %v761, %v759
  %v1014 = vpack.c.b16 %v764, %v762
  %v1015 = vpack.c.b16 %v765, %v763
  %v1016 = vpack.c.b16 %v768, %v766
  %v1017 = vpack.c.b16 %v769, %v767
  %v1018 = vpack.c.b16 %v772, %v770
  %v1019 = vpack.c.b16 %v773, %v771
  %v1020 = vpack.c.b16 %v776, %v774
  %v1021 = vpack.c.b16 %v777, %v775
  %v1022 = vpack.c.b16 %v780, %v778
  %v1023 = vpack.c.b16 %v781, %v779
  %v1024 = vpack.c.b16 %v784, %v782
  %v1025 = vpack.c.b16 %v785, %v783
  %v1026 = vpack.c.b16 %v788, %v786
  %v1027 = vpack.c.b16 %v789, %v787
  %v1028 = vpack.c.b16 %v792, %v790
  %v1029 = vpack.c.b16 %v793, %v791
  %v1030 = vpack.c.b16 %v796, %v794
  %v1031 = vpack.c.b16 %v797, %v795
  %v1032 = vpack.c.b16 %v800, %v798
  %v1033 = vpack.c.b16 %v801, %v799
  %v1034 = vpack.c.b16 %v804, %v802
  %v1035 = vpack.c.b16 %v805, %v803
  %v1036 = vpack.c.b16 %v808, %v806
  %v1037 = vpack.c.b16 %v809, %v807
  %v1038 = vpack.c.b16 %v812, %v810
  %v1039 = vpack.c.b16 %v813, %v811
  %v1040 = vpack.c.b16 %v816, %v814
  %v1041 = vpack.c.b16 %v817, %v815
  %v1042 = vpack.c.b16 %v820, %v818
  %v1043 = vpack.c.b16 %v821, %v819
  %v1044 = vpack.c.b16 %v824, %v822
  %v1045 = vpack.c.b16 %v825, %v823
  %v1046 = vpack.c.b16 %v828, %v826
  %v1047 = vpack.c.b16 %v829, %v827
  %v1048 = vpack.c.b16 %v832, %v830
  %v1049 = vpack.c.b16 %v833, %v831
  %v1050 = vpack.c.b16 %v836, %v834
  %v1051 = vpack.c.b16 %v837, %v835
  %v1052 = vpack.c.b16 %v840, %v838
  %v1053 = vpack.c.b16 %v841, %v839
  %v1054 = vpack.c.b16 %v844, %v842
  %v1055 = vpack.c.b16 %v845, %v843
  %v1056 = vpack.c.b16 %v848, %v846
  %v1057 = vpack.c.b16 %v849, %v847
  %v1058 = vpack.c.b16 %v852, %v850
  %v1059 = vpack.c.b16 %v853, %v851
  %v1060 = vpack.c.b16 %v856, %v854
  %v1061 = vpack.c.b16 %v857, %v855
  %v1062 = vpack.c.b16 %v860, %v858
  %v1063 = vpack.c.b16 %v861, %v859
  %v1064 = vpack.c.b16 %v864, %v862
  %v1065 = vpack.c.b16 %v865, %v863
  %v1066 = vpack.c.b16 %v868, %v866
  %v1067 = vpack.c.b16 %v869, %v867
  %v1068 = vpack.c.b16 %v872, %v870
  %v1069 = vpack.c.b16 %v873, %v871
  %v1070 = vpack.c.b16 %v876, %v874
  %v1071 = vpack.c.b16 %v877, %v875
  %v1072 = vpack.c.b16 %v880, %v878
  %v1073 = vpack.c.b16 %v881, %v879
  %v1074 = vpack.c.b16 %v884, %v882
  %v1075 = vpack.c.b16 %v885, %v883
  %v1076 = vpack.c.b16 %v888, %v886
  %v1077 = vpack.c.b16 %v889, %v887
  %v1078 = vpack.c.b16 %v892, %v890
  %v1079 = vpack.c.b16 %v893, %v891
  %v1080 = vpack.c.b16 %v896, %v894
  %v1081 = vpack.c.b16 %v897, %v895
  %v1082 = vpack.c.b16 %v900, %v898
  %v1083 = vpack.c.b16 %v901, %v899
  %v1084 = vpack.c.b16 %v904, %v902
  %v1085 = vpack.c.b16 %v905, %v903
  %v1086 = vpack.c.b16 %v908, %v906
  %v1087 = vpack.c.b16 %v909, %v907
  %v1088 = vpack.c.b16 %v912, %v910
  %v1089 = vpack.c.b16 %v913, %v911
  %v1090 = vpack.c.b16 %v916, %v914
  %v1091 = vpack.c.b16 %v917, %v915
  %v1092 = vpack.c.b16 %v920, %v918
  %v1093 = vpack.c.b16 %v921, %v919
  %v1094 = vpack.c.b16 %v924, %v922
  %v1095 = vpack.c.b16 %v925, %v923
  %v1096 = vpack.c.b16 %v928, %v926
  %v1097 = vpack.c.b16 %v929, %v927
  %v1098 = vpack.c.b16 %v932, %v930
  %v1099 = vpack.c.b16 %v933, %v931
  %v1100 = vpack.c.b16 %v936, %v934
  %v1101 = vpack.c.b16 %v937, %v935
  %v1102 = vpack.c.b16 %v940, %v938
  %v1103 = vpack.c.b16 %v941, %v939
  %v1104 = vpack.c.b16 %v944, %v942
  %v1105 = vpack.c.b16 %v945, %v943
  %v1106 = vpack.c.b16 %v948, %v946
  %v1107 = vpack.c.b16 %v949, %v947
  %v1108 = vpack.c.b16 %v952, %v950
  %v1109 = vpack.c.b16 %v953, %v951
  %v1110 = vpack.c.b16 %v956, %v954
  %v1111 = vpack.c.b16 %v957, %v955
  %v1112 = vpack.c.b16 %v960, %v958
  %v1113 = vpack.c.b16 %v961, %v959
  %v1114 = vpack.c.b16 %v964, %v962
  %v1115 = vpack.c.b16 %v965, %v963
  %v1116 = vpack.c.b16 %v968, %v966
  %v1117 = vpack.c.b16 %v969, %v967
  %v1118 = vpack.c.b16 %v972, %v970
  %v1119 = vpack.c.b16 %v973, %v971
  %v1120 = vpack.c.b16 %v976, %v974
  %v1121 = vpack.c.b16 %v977, %v975
  %1266 = vmatprep.subr.bf16.mxu0 %v979
  %1267 = vmatpush1.bf16.msra.mxu0 %v978
  %1268 = vmatprep.subr.bf16.mxu0 %v981
  %1269 = vmatpush1.bf16.msra.mxu0 %v980
  %1270 = vmatprep.subr.bf16.mxu0 %v983
  %1271 = vmatpush1.bf16.msra.mxu0 %v982
  %1272 = vmatprep.subr.bf16.mxu0 %v985
  %1273 = vmatpush1.bf16.msra.mxu0 %v984
  %1274 = vmatprep.subr.bf16.mxu0 %v987
  %1275 = vmatpush1.bf16.msra.mxu0 %v986
  %1276 = vmatprep.subr.bf16.mxu0 %v989
  %1277 = vmatpush1.bf16.msra.mxu0 %v988
  %1278 = vmatprep.subr.bf16.mxu0 %v991
  %1279 = vmatpush1.bf16.msra.mxu0 %v990
  %1280 = vmatprep.subr.bf16.mxu0 %v993
  %1281 = vmatpush1.bf16.msra.mxu0 %v992
  %1282 = vmatprep.subr.bf16.mxu0 %v995
  %1283 = vmatpush1.bf16.msra.mxu0 %v994
  %1284 = vmatprep.subr.bf16.mxu0 %v997
  %1285 = vmatpush1.bf16.msra.mxu0 %v996
  %1286 = vmatprep.subr.bf16.mxu0 %v999
  %1287 = vmatpush1.bf16.msra.mxu0 %v998
  %1288 = vmatprep.subr.bf16.mxu0 %v1001
  %1289 = vmatpush1.bf16.msra.mxu0 %v1000
  %1290 = vmatprep.subr.bf16.mxu0 %v1003
  %1291 = vmatpush1.bf16.msra.mxu0 %v1002
  %1292 = vmatprep.subr.bf16.mxu0 %v1005
  %1293 = vmatpush1.bf16.msra.mxu0 %v1004
  %1294 = vmatprep.subr.bf16.mxu0 %v1007
  %1295 = vmatpush1.bf16.msra.mxu0 %v1006
  %1296 = vmatprep.subr.bf16.mxu0 %v1009
  %1297 = vmatpush1.bf16.msra.mxu0 %v1008
  %1298 = vmatprep.mubr.bf16.mxu0 %v421
  %1299 = vmatmul.mubr.bf16.gmra.mrb[0].mxu0 %v420
  %v1300 = vpop.f32.mrb[0].mxu0
  %v1301 = vadd.f32 %v231, %v1300
  %v1302 = vpop.f32.mrb[0].mxu0
  %v1303 = vadd.f32 %v235, %v1302
  %v1304 = vpop.f32.mrb[0].mxu0
  %v1305 = vadd.f32 %v231, %v1304
  %v1306 = vpop.f32.mrb[0].mxu0
  %v1307 = vadd.f32 %v235, %v1306
  %1308 = vmatprep.mubr.bf16.mxu0 %v430
  %1309 = vmatmul.mubr.bf16.gmra.mrb[0].mxu0 %v429
  %v1310 = vpop.f32.mrb[0].mxu0
  %v1311 = vadd.f32 %v231, %v1310
  %v1312 = vpop.f32.mrb[0].mxu0
  %v1313 = vadd.f32 %v235, %v1312
  %v1314 = vpop.f32.mrb[0].mxu0
  %v1315 = vadd.f32 %v231, %v1314
  %v1316 = vpop.f32.mrb[0].mxu0
  %v1317 = vadd.f32 %v235, %v1316
  %1318 = vmatprep.mubr.bf16.mxu0 %v439
  %1319 = vmatmul.mubr.bf16.gmra.mrb[0].mxu0 %v438
  %v1320 = vpop.f32.mrb[0].mxu0
  %v1321 = vadd.f32 %v231, %v1320
  %v1322 = vpop.f32.mrb[0].mxu0
  %v1323 = vadd.f32 %v235, %v1322
  %v1324 = vpop.f32.mrb[0].mxu0
  %v1325 = vadd.f32 %v231, %v1324
  %v1326 = vpop.f32.mrb[0].mxu0
  %v1327 = vadd.f32 %v235, %v1326
  %1328 = vmatprep.mubr.bf16.mxu0 %v448
  %1329 = vmatmul.mubr.bf16.gmra.mrb[0].mxu0 %v447
  %v1330 = vpop.f32.mrb[0].mxu0
  %v1331 = vadd.f32 %v231, %v1330
  %v1332 = vpop.f32.mrb[0].mxu0
  %v1333 = vadd.f32 %v235, %v1332
  %v1334 = vpop.f32.mrb[0].mxu0
  %v1335 = vadd.f32 %v231, %v1334
  %v1336 = vpop.f32.mrb[0].mxu0
  %v1337 = vadd.f32 %v235, %v1336
  %1338 = vmatprep.mubr.bf16.mxu0 %v457
  %1339 = vmatmul.mubr.bf16.gmra.mrb[0].mxu0 %v456
  %v1340 = vpop.f32.mrb[0].mxu0
  %v1341 = vadd.f32 %v231, %v1340
  %v1342 = vpop.f32.mrb[0].mxu0
  %v1343 = vadd.f32 %v235, %v1342
  %v1344 = vpop.f32.mrb[0].mxu0
  %v1345 = vadd.f32 %v231, %v1344
  %v1346 = vpop.f32.mrb[0].mxu0
  %v1347 = vadd.f32 %v235, %v1346
  %1348 = vmatprep.mubr.bf16.mxu0 %v466
  %1349 = vmatmul.mubr.bf16.gmra.mrb[0].mxu0 %v465
  %v1350 = vpop.f32.mrb[0].mxu0
  %v1351 = vadd.f32 %v231, %v1350
  %v1352 = vpop.f32.mrb[0].mxu0
  %v1353 = vadd.f32 %v235, %v1352
  %v1354 = vpop.f32.mrb[0].mxu0
  %v1355 = vadd.f32 %v231, %v1354
  %v1356 = vpop.f32.mrb[0].mxu0
  %v1357 = vadd.f32 %v235, %v1356
  %1358 = vmatprep.mubr.bf16.mxu0 %v475
  %1359 = vmatmul.mubr.bf16.gmra.mrb[0].mxu0 %v474
  %v1360 = vpop.f32.mrb[0].mxu0
  %v1361 = vadd.f32 %v231, %v1360
  %v1362 = vpop.f32.mrb[0].mxu0
  %v1363 = vadd.f32 %v235, %v1362
  %v1364 = vpop.f32.mrb[0].mxu0
  %v1365 = vpop.f32.mrb[0].mxu0
  %1366 = vdwg.mxu0
  %1367 = vmatprep.subr.bf16.mxu0 %v1011
  %1368 = vmatpush1.bf16.msra.mxu0 %v1010
  %1369 = vmatprep.subr.bf16.mxu0 %v1013
  %1370 = vmatpush1.bf16.msra.mxu0 %v1012
  %1371 = vmatprep.subr.bf16.mxu0 %v1015
  %1372 = vmatpush1.bf16.msra.mxu0 %v1014
  %1373 = vmatprep.subr.bf16.mxu0 %v1017
  %1374 = vmatpush1.bf16.msra.mxu0 %v1016
  %1375 = vmatprep.subr.bf16.mxu0 %v1019
  %1376 = vmatpush1.bf16.msra.mxu0 %v1018
  %1377 = vmatprep.subr.bf16.mxu0 %v1021
  %1378 = vmatpush1.bf16.msra.mxu0 %v1020
  %1379 = vmatprep.subr.bf16.mxu0 %v1023
  %1380 = vmatpush1.bf16.msra.mxu0 %v1022
  %1381 = vmatprep.subr.bf16.mxu0 %v1025
  %1382 = vmatpush1.bf16.msra.mxu0 %v1024
  %1383 = vmatprep.subr.bf16.mxu0 %v1027
  %1384 = vmatpush1.bf16.msra.mxu0 %v1026
  %1385 = vmatprep.subr.bf16.mxu0 %v1029
  %1386 = vmatpush1.bf16.msra.mxu0 %v1028
  %1387 = vmatprep.subr.bf16.mxu0 %v1031
  %1388 = vmatpush1.bf16.msra.mxu0 %v1030
  %1389 = vmatprep.subr.bf16.mxu0 %v1033
  %1390 = vmatpush1.bf16.msra.mxu0 %v1032
  %1391 = vmatprep.subr.bf16.mxu0 %v1035
  %1392 = vmatpush1.bf16.msra.mxu0 %v1034
  %1393 = vmatprep.subr.bf16.mxu0 %v1037
  %1394 = vmatpush1.bf16.msra.mxu0 %v1036
  %1395 = vmatprep.subr.bf16.mxu0 %v1039
  %1396 = vmatpush1.bf16.msra.mxu0 %v1038
  %1397 = vmatprep.subr.bf16.mxu0 %v1041
  %1398 = vmatpush1.bf16.msra.mxu0 %v1040
  %1399 = vmatprep.mubr.bf16.mxu0 %v423
  %1400 = vmatmul.mubr.bf16.gmra.mrb[0].mxu0 %v422
  %v1401 = vpop.f32.mrb[0].mxu0
  %v1402 = vadd.f32 %v1301, %v1401
  %v1403 = vpop.f32.mrb[0].mxu0
  %v1404 = vadd.f32 %v1303, %v1403
  %v1405 = vpop.f32.mrb[0].mxu0
  %v1406 = vadd.f32 %v1305, %v1405
  %v1407 = vpop.f32.mrb[0].mxu0
  %v1408 = vadd.f32 %v1307, %v1407
  %1409 = vmatprep.mubr.bf16.mxu0 %v432
  %1410 = vmatmul.mubr.bf16.gmra.mrb[0].mxu0 %v431
  %v1411 = vpop.f32.mrb[0].mxu0
  %v1412 = vadd.f32 %v1311, %v1411
  %v1413 = vpop.f32.mrb[0].mxu0
  %v1414 = vadd.f32 %v1313, %v1413
  %v1415 = vpop.f32.mrb[0].mxu0
  %v1416 = vadd.f32 %v1315, %v1415
  %v1417 = vpop.f32.mrb[0].mxu0
  %v1418 = vadd.f32 %v1317, %v1417
  %1419 = vmatprep.mubr.bf16.mxu0 %v441
  %1420 = vmatmul.mubr.bf16.gmra.mrb[0].mxu0 %v440
  %v1421 = vpop.f32.mrb[0].mxu0
  %v1422 = vadd.f32 %v1321, %v1421
  %v1423 = vpop.f32.mrb[0].mxu0
  %v1424 = vadd.f32 %v1323, %v1423
  %v1425 = vpop.f32.mrb[0].mxu0
  %v1426 = vadd.f32 %v1325, %v1425
  %v1427 = vpop.f32.mrb[0].mxu0
  %v1428 = vadd.f32 %v1327, %v1427
  %1429 = vmatprep.mubr.bf16.mxu0 %v450
  %1430 = vmatmul.mubr.bf16.gmra.mrb[0].mxu0 %v449
  %v1431 = vpop.f32.mrb[0].mxu0
  %v1432 = vadd.f32 %v1331, %v1431
  %v1433 = vpop.f32.mrb[0].mxu0
  %v1434 = vadd.f32 %v1333, %v1433
  %v1435 = vpop.f32.mrb[0].mxu0
  %v1436 = vadd.f32 %v1335, %v1435
  %v1437 = vpop.f32.mrb[0].mxu0
  %v1438 = vadd.f32 %v1337, %v1437
  %1439 = vmatprep.mubr.bf16.mxu0 %v459
  %1440 = vmatmul.mubr.bf16.gmra.mrb[0].mxu0 %v458
  %v1441 = vpop.f32.mrb[0].mxu0
  %v1442 = vadd.f32 %v1341, %v1441
  %v1443 = vpop.f32.mrb[0].mxu0
  %v1444 = vadd.f32 %v1343, %v1443
  %v1445 = vpop.f32.mrb[0].mxu0
  %v1446 = vadd.f32 %v1345, %v1445
  %v1447 = vpop.f32.mrb[0].mxu0
  %v1448 = vadd.f32 %v1347, %v1447
  %1449 = vmatprep.mubr.bf16.mxu0 %v468
  %1450 = vmatmul.mubr.bf16.gmra.mrb[0].mxu0 %v467
  %v1451 = vpop.f32.mrb[0].mxu0
  %v1452 = vadd.f32 %v1351, %v1451
  %v1453 = vpop.f32.mrb[0].mxu0
  %v1454 = vadd.f32 %v1353, %v1453
  %v1455 = vpop.f32.mrb[0].mxu0
  %v1456 = vadd.f32 %v1355, %v1455
  %v1457 = vpop.f32.mrb[0].mxu0
  %v1458 = vadd.f32 %v1357, %v1457
  %1459 = vmatprep.mubr.bf16.mxu0 %v477
  %1460 = vmatmul.mubr.bf16.gmra.mrb[0].mxu0 %v476
  %v1461 = vpop.f32.mrb[0].mxu0
  %v1462 = vadd.f32 %v1361, %v1461
  %v1463 = vpop.f32.mrb[0].mxu0
  %v1464 = vadd.f32 %v1363, %v1463
  %v1465 = vpop.f32.mrb[0].mxu0
  %v1466 = vpop.f32.mrb[0].mxu0
  %1467 = vdwg.mxu0
  %1468 = vmatprep.subr.bf16.mxu0 %v1043
  %1469 = vmatpush1.bf16.msra.mxu0 %v1042
  %1470 = vmatprep.subr.bf16.mxu0 %v1045
  %1471 = vmatpush1.bf16.msra.mxu0 %v1044
  %1472 = vmatprep.subr.bf16.mxu0 %v1047
  %1473 = vmatpush1.bf16.msra.mxu0 %v1046
  %1474 = vmatprep.subr.bf16.mxu0 %v1049
  %1475 = vmatpush1.bf16.msra.mxu0 %v1048
  %1476 = vmatprep.subr.bf16.mxu0 %v1051
  %1477 = vmatpush1.bf16.msra.mxu0 %v1050
  %1478 = vmatprep.subr.bf16.mxu0 %v1053
  %1479 = vmatpush1.bf16.msra.mxu0 %v1052
  %1480 = vmatprep.subr.bf16.mxu0 %v1055
  %1481 = vmatpush1.bf16.msra.mxu0 %v1054
  %1482 = vmatprep.subr.bf16.mxu0 %v1057
  %1483 = vmatpush1.bf16.msra.mxu0 %v1056
  %1484 = vmatprep.subr.bf16.mxu0 %v1059
  %1485 = vmatpush1.bf16.msra.mxu0 %v1058
  %1486 = vmatprep.subr.bf16.mxu0 %v1061
  %1487 = vmatpush1.bf16.msra.mxu0 %v1060
  %1488 = vmatprep.subr.bf16.mxu0 %v1063
  %1489 = vmatpush1.bf16.msra.mxu0 %v1062
  %1490 = vmatprep.subr.bf16.mxu0 %v1065
  %1491 = vmatpush1.bf16.msra.mxu0 %v1064
  %1492 = vmatprep.subr.bf16.mxu0 %v1067
  %1493 = vmatpush1.bf16.msra.mxu0 %v1066
  %1494 = vmatprep.subr.bf16.mxu0 %v1069
  %1495 = vmatpush1.bf16.msra.mxu0 %v1068
  %1496 = vmatprep.subr.bf16.mxu0 %v1071
  %1497 = vmatpush1.bf16.msra.mxu0 %v1070
  %1498 = vmatprep.subr.bf16.mxu0 %v1073
  %1499 = vmatpush1.bf16.msra.mxu0 %v1072
  %1500 = vmatprep.mubr.bf16.mxu0 %v425
  %1501 = vmatmul.mubr.bf16.gmra.mrb[0].mxu0 %v424
  %v1502 = vpop.f32.mrb[0].mxu0
  %v1503 = vadd.f32 %v1402, %v1502
  %v1504 = vpop.f32.mrb[0].mxu0
  %v1505 = vadd.f32 %v1404, %v1504
  %v1506 = vpop.f32.mrb[0].mxu0
  %v1507 = vadd.f32 %v1406, %v1506
  %v1508 = vpop.f32.mrb[0].mxu0
  %v1509 = vadd.f32 %v1408, %v1508
  %1510 = vmatprep.mubr.bf16.mxu0 %v434
  %1511 = vmatmul.mubr.bf16.gmra.mrb[0].mxu0 %v433
  %v1512 = vpop.f32.mrb[0].mxu0
  %v1513 = vadd.f32 %v1412, %v1512
  %v1514 = vpop.f32.mrb[0].mxu0
  %v1515 = vadd.f32 %v1414, %v1514
  %v1516 = vpop.f32.mrb[0].mxu0
  %v1517 = vadd.f32 %v1416, %v1516
  %v1518 = vpop.f32.mrb[0].mxu0
  %v1519 = vadd.f32 %v1418, %v1518
  %1520 = vmatprep.mubr.bf16.mxu0 %v443
  %1521 = vmatmul.mubr.bf16.gmra.mrb[0].mxu0 %v442
  %v1522 = vpop.f32.mrb[0].mxu0
  %v1523 = vadd.f32 %v1422, %v1522
  %v1524 = vpop.f32.mrb[0].mxu0
  %v1525 = vadd.f32 %v1424, %v1524
  %v1526 = vpop.f32.mrb[0].mxu0
  %v1527 = vadd.f32 %v1426, %v1526
  %v1528 = vpop.f32.mrb[0].mxu0
  %v1529 = vadd.f32 %v1428, %v1528
  %1530 = vmatprep.mubr.bf16.mxu0 %v452
  %1531 = vmatmul.mubr.bf16.gmra.mrb[0].mxu0 %v451
  %v1532 = vpop.f32.mrb[0].mxu0
  %v1533 = vadd.f32 %v1432, %v1532
  %v1534 = vpop.f32.mrb[0].mxu0
  %v1535 = vadd.f32 %v1434, %v1534
  %v1536 = vpop.f32.mrb[0].mxu0
  %v1537 = vadd.f32 %v1436, %v1536
  %v1538 = vpop.f32.mrb[0].mxu0
  %v1539 = vadd.f32 %v1438, %v1538
  %1540 = vmatprep.mubr.bf16.mxu0 %v461
  %1541 = vmatmul.mubr.bf16.gmra.mrb[0].mxu0 %v460
  %v1542 = vpop.f32.mrb[0].mxu0
  %v1543 = vadd.f32 %v1442, %v1542
  %v1544 = vpop.f32.mrb[0].mxu0
  %v1545 = vadd.f32 %v1444, %v1544
  %v1546 = vpop.f32.mrb[0].mxu0
  %v1547 = vadd.f32 %v1446, %v1546
  %v1548 = vpop.f32.mrb[0].mxu0
  %v1549 = vadd.f32 %v1448, %v1548
  %1550 = vmatprep.mubr.bf16.mxu0 %v470
  %1551 = vmatmul.mubr.bf16.gmra.mrb[0].mxu0 %v469
  %v1552 = vpop.f32.mrb[0].mxu0
  %v1553 = vadd.f32 %v1452, %v1552
  %v1554 = vpop.f32.mrb[0].mxu0
  %v1555 = vadd.f32 %v1454, %v1554
  %v1556 = vpop.f32.mrb[0].mxu0
  %v1557 = vadd.f32 %v1456, %v1556
  %v1558 = vpop.f32.mrb[0].mxu0
  %v1559 = vadd.f32 %v1458, %v1558
  %1560 = vmatprep.mubr.bf16.mxu0 %v479
  %1561 = vmatmul.mubr.bf16.gmra.mrb[0].mxu0 %v478
  %v1562 = vpop.f32.mrb[0].mxu0
  %v1563 = vadd.f32 %v1462, %v1562
  %v1564 = vpop.f32.mrb[0].mxu0
  %v1565 = vadd.f32 %v1464, %v1564
  %v1566 = vpop.f32.mrb[0].mxu0
  %v1567 = vpop.f32.mrb[0].mxu0
  %1568 = vdwg.mxu0
  %1569 = vmatprep.subr.bf16.mxu0 %v1075
  %1570 = vmatpush1.bf16.msra.mxu0 %v1074
  %1571 = vmatprep.subr.bf16.mxu0 %v1077
  %1572 = vmatpush1.bf16.msra.mxu0 %v1076
  %1573 = vmatprep.subr.bf16.mxu0 %v1079
  %1574 = vmatpush1.bf16.msra.mxu0 %v1078
  %1575 = vmatprep.subr.bf16.mxu0 %v1081
  %1576 = vmatpush1.bf16.msra.mxu0 %v1080
  %1577 = vmatprep.subr.bf16.mxu0 %v1083
  %1578 = vmatpush1.bf16.msra.mxu0 %v1082
  %1579 = vmatprep.subr.bf16.mxu0 %v1085
  %1580 = vmatpush1.bf16.msra.mxu0 %v1084
  %1581 = vmatprep.subr.bf16.mxu0 %v1087
  %1582 = vmatpush1.bf16.msra.mxu0 %v1086
  %1583 = vmatprep.subr.bf16.mxu0 %v1089
  %1584 = vmatpush1.bf16.msra.mxu0 %v1088
  %1585 = vmatprep.subr.bf16.mxu0 %v1091
  %1586 = vmatpush1.bf16.msra.mxu0 %v1090
  %1587 = vmatprep.subr.bf16.mxu0 %v1093
  %1588 = vmatpush1.bf16.msra.mxu0 %v1092
  %1589 = vmatprep.subr.bf16.mxu0 %v1095
  %1590 = vmatpush1.bf16.msra.mxu0 %v1094
  %1591 = vmatprep.subr.bf16.mxu0 %v1097
  %1592 = vmatpush1.bf16.msra.mxu0 %v1096
  %1593 = vmatprep.subr.bf16.mxu0 %v1099
  %1594 = vmatpush1.bf16.msra.mxu0 %v1098
  %1595 = vmatprep.subr.bf16.mxu0 %v1101
  %1596 = vmatpush1.bf16.msra.mxu0 %v1100
  %1597 = vmatprep.subr.bf16.mxu0 %v1103
  %1598 = vmatpush1.bf16.msra.mxu0 %v1102
  %1599 = vmatprep.subr.bf16.mxu0 %v1105
  %1600 = vmatpush1.bf16.msra.mxu0 %v1104
  %1601 = vmatprep.mubr.bf16.mxu0 %v427
  %1602 = vmatmul.mubr.bf16.gmra.mrb[0].mxu0 %v426
  %v1603 = vpop.f32.mrb[0].mxu0
  %v1604 = vadd.f32 %v1503, %v1603
  %v1605 = vpop.f32.mrb[0].mxu0
  %v1606 = vadd.f32 %v1505, %v1605
  %v1607 = vpop.f32.mrb[0].mxu0
  %v1608 = vadd.f32 %v1507, %v1607
  %v1609 = vpop.f32.mrb[0].mxu0
  %v1610 = vadd.f32 %v1509, %v1609
  %1611 = vmatprep.mubr.bf16.mxu0 %v436
  %1612 = vmatmul.mubr.bf16.gmra.mrb[0].mxu0 %v435
  %v1613 = vpop.f32.mrb[0].mxu0
  %v1614 = vadd.f32 %v1513, %v1613
  %v1615 = vpop.f32.mrb[0].mxu0
  %v1616 = vadd.f32 %v1515, %v1615
  %v1617 = vpop.f32.mrb[0].mxu0
  %v1618 = vadd.f32 %v1517, %v1617
  %v1619 = vpop.f32.mrb[0].mxu0
  %v1620 = vadd.f32 %v1519, %v1619
  %1621 = vmatprep.mubr.bf16.mxu0 %v445
  %1622 = vmatmul.mubr.bf16.gmra.mrb[0].mxu0 %v444
  %v1623 = vpop.f32.mrb[0].mxu0
  %v1624 = vadd.f32 %v1523, %v1623
  %v1625 = vpop.f32.mrb[0].mxu0
  %v1626 = vadd.f32 %v1525, %v1625
  %v1627 = vpop.f32.mrb[0].mxu0
  %v1628 = vadd.f32 %v1527, %v1627
  %v1629 = vpop.f32.mrb[0].mxu0
  %v1630 = vadd.f32 %v1529, %v1629
  %1631 = vmatprep.mubr.bf16.mxu0 %v454
  %1632 = vmatmul.mubr.bf16.gmra.mrb[0].mxu0 %v453
  %v1633 = vpop.f32.mrb[0].mxu0
  %v1634 = vadd.f32 %v1533, %v1633
  %v1635 = vpop.f32.mrb[0].mxu0
  %v1636 = vadd.f32 %v1535, %v1635
  %v1637 = vpop.f32.mrb[0].mxu0
  %v1638 = vadd.f32 %v1537, %v1637
  %v1639 = vpop.f32.mrb[0].mxu0
  %v1640 = vadd.f32 %v1539, %v1639
  %1641 = vmatprep.mubr.bf16.mxu0 %v463
  %1642 = vmatmul.mubr.bf16.gmra.mrb[0].mxu0 %v462
  %v1643 = vpop.f32.mrb[0].mxu0
  %v1644 = vadd.f32 %v1543, %v1643
  %v1645 = vpop.f32.mrb[0].mxu0
  %v1646 = vadd.f32 %v1545, %v1645
  %v1647 = vpop.f32.mrb[0].mxu0
  %v1648 = vadd.f32 %v1547, %v1647
  %v1649 = vpop.f32.mrb[0].mxu0
  %v1650 = vadd.f32 %v1549, %v1649
  %1651 = vmatprep.mubr.bf16.mxu0 %v472
  %1652 = vmatmul.mubr.bf16.gmra.mrb[0].mxu0 %v471
  %v1653 = vpop.f32.mrb[0].mxu0
  %v1654 = vadd.f32 %v1553, %v1653
  %v1655 = vpop.f32.mrb[0].mxu0
  %v1656 = vadd.f32 %v1555, %v1655
  %v1657 = vpop.f32.mrb[0].mxu0
  %v1658 = vadd.f32 %v1557, %v1657
  %v1659 = vpop.f32.mrb[0].mxu0
  %v1660 = vadd.f32 %v1559, %v1659
  %1661 = vmatprep.mubr.bf16.mxu0 %v481
  %1662 = vmatmul.mubr.bf16.gmra.mrb[0].mxu0 %v480
  %v1663 = vpop.f32.mrb[0].mxu0
  %v1664 = vadd.f32 %v1563, %v1663
  %v1665 = vpop.f32.mrb[0].mxu0
  %v1666 = vadd.f32 %v1565, %v1665
  %v1667 = vpop.f32.mrb[0].mxu0
  %v1668 = vpop.f32.mrb[0].mxu0
  %1669 = vdwg.mxu0
  %1670 = vmatprep.subr.bf16.mxu0 %v1107
  %1671 = vmatpush1.bf16.msra.mxu0 %v1106
  %1672 = vmatprep.subr.bf16.mxu0 %v1109
  %1673 = vmatpush1.bf16.msra.mxu0 %v1108
  %1674 = vmatprep.subr.bf16.mxu0 %v1111
  %1675 = vmatpush1.bf16.msra.mxu0 %v1110
  %1676 = vmatprep.subr.bf16.mxu0 %v1113
  %1677 = vmatpush1.bf16.msra.mxu0 %v1112
  %1678 = vmatprep.subr.bf16.mxu0 %v1115
  %1679 = vmatpush1.bf16.msra.mxu0 %v1114
  %1680 = vmatprep.subr.bf16.mxu0 %v1117
  %1681 = vmatpush1.bf16.msra.mxu0 %v1116
  %1682 = vmatprep.subr.bf16.mxu0 %v1119
  %1683 = vmatpush1.bf16.msra.mxu0 %v1118
  %1684 = vmatprep.subr.bf16.mxu0 %v1121
  %1685 = vmatpush1.bf16.msra.mxu0 %v1120
  %1686 = vmatprep.subr.bf16.mxu0 0
  %1687 = vmatpush1.bf16.msra.mxu0 0
  %1688 = vmatprep.subr.bf16.mxu0 0
  %1689 = vmatpush1.bf16.msra.mxu0 0
  %1690 = vmatprep.subr.bf16.mxu0 0
  %1691 = vmatpush1.bf16.msra.mxu0 0
  %1692 = vmatprep.subr.bf16.mxu0 0
  %1693 = vmatpush1.bf16.msra.mxu0 0
  %1694 = vmatprep.subr.bf16.mxu0 0
  %1695 = vmatpush1.bf16.msra.mxu0 0
  %1696 = vmatprep.subr.bf16.mxu0 0
  %1697 = vmatpush1.bf16.msra.mxu0 0
  %1698 = vmatprep.subr.bf16.mxu0 0
  %1699 = vmatpush1.bf16.msra.mxu0 0
  %1700 = vmatprep.subr.bf16.mxu0 0
  %1701 = vmatpush1.bf16.msra.mxu0 0
  %1702 = vmatprep.mubr.bf16.mxu0 0
  %1703 = vmatmul.mubr.bf16.gmra.mrb[0].mxu0 %v428
  %v1704 = vpop.f32.mrb[0].mxu0
  %v1705 = vadd.f32 %v1604, %v1704
  %v1706 = vpop.f32.mrb[0].mxu0
  %v1707 = vadd.f32 %v1606, %v1706
  %v1708 = vpop.f32.mrb[0].mxu0
  %v1709 = vadd.f32 %v1608, %v1708
  %v1710 = vpop.f32.mrb[0].mxu0
  %v1711 = vadd.f32 %v1610, %v1710
  %1712 = vmatprep.mubr.bf16.mxu0 0
  %1713 = vmatmul.mubr.bf16.gmra.mrb[0].mxu0 %v437
  %v1714 = vpop.f32.mrb[0].mxu0
  %v1715 = vadd.f32 %v1614, %v1714
  %v1716 = vpop.f32.mrb[0].mxu0
  %v1717 = vadd.f32 %v1616, %v1716
  %v1718 = vpop.f32.mrb[0].mxu0
  %v1719 = vadd.f32 %v1618, %v1718
  %v1720 = vpop.f32.mrb[0].mxu0
  %v1721 = vadd.f32 %v1620, %v1720
  %1722 = vmatprep.mubr.bf16.mxu0 0
  %1723 = vmatmul.mubr.bf16.gmra.mrb[0].mxu0 %v446
  %v1724 = vpop.f32.mrb[0].mxu0
  %v1725 = vadd.f32 %v1624, %v1724
  %v1726 = vpop.f32.mrb[0].mxu0
  %v1727 = vadd.f32 %v1626, %v1726
  %v1728 = vpop.f32.mrb[0].mxu0
  %v1729 = vadd.f32 %v1628, %v1728
  %v1730 = vpop.f32.mrb[0].mxu0
  %v1731 = vadd.f32 %v1630, %v1730
  %1732 = vmatprep.mubr.bf16.mxu0 0
  %1733 = vmatmul.mubr.bf16.gmra.mrb[0].mxu0 %v455
  %v1734 = vpop.f32.mrb[0].mxu0
  %v1735 = vadd.f32 %v1634, %v1734
  %v1736 = vpop.f32.mrb[0].mxu0
  %v1737 = vadd.f32 %v1636, %v1736
  %v1738 = vpop.f32.mrb[0].mxu0
  %v1739 = vadd.f32 %v1638, %v1738
  %v1740 = vpop.f32.mrb[0].mxu0
  %v1741 = vadd.f32 %v1640, %v1740
  %1742 = vmatprep.mubr.bf16.mxu0 0
  %1743 = vmatmul.mubr.bf16.gmra.mrb[0].mxu0 %v464
  %v1744 = vpop.f32.mrb[0].mxu0
  %v1745 = vadd.f32 %v1644, %v1744
  %v1746 = vpop.f32.mrb[0].mxu0
  %v1747 = vadd.f32 %v1646, %v1746
  %v1748 = vpop.f32.mrb[0].mxu0
  %v1749 = vadd.f32 %v1648, %v1748
  %v1750 = vpop.f32.mrb[0].mxu0
  %v1751 = vadd.f32 %v1650, %v1750
  %1752 = vmatprep.mubr.bf16.mxu0 0
  %1753 = vmatmul.mubr.bf16.gmra.mrb[0].mxu0 %v473
  %v1754 = vpop.f32.mrb[0].mxu0
  %v1755 = vadd.f32 %v1654, %v1754
  %v1756 = vpop.f32.mrb[0].mxu0
  %v1757 = vadd.f32 %v1656, %v1756
  %v1758 = vpop.f32.mrb[0].mxu0
  %v1759 = vadd.f32 %v1658, %v1758
  %v1760 = vpop.f32.mrb[0].mxu0
  %v1761 = vadd.f32 %v1660, %v1760
  %1762 = vmatprep.mubr.bf16.mxu0 0
  %1763 = vmatmul.mubr.bf16.gmra.mrb[0].mxu0 %v482
  %v1764 = vpop.f32.mrb[0].mxu0
  %v1765 = vadd.f32 %v1664, %v1764
  %v1766 = vpop.f32.mrb[0].mxu0
  %v1767 = vadd.f32 %v1666, %v1766
  %v1768 = vpop.f32.mrb[0].mxu0
  %v1769 = vpop.f32.mrb[0].mxu0
  %1770 = vdwg.mxu0
  %v1771 = vmax.f32 %v1705, 0.0
  %v1772 = vmax.f32 %v1709, 0.0
  %v1773 = vmax.f32 %v1715, 0.0
  %v1774 = vmax.f32 %v1719, 0.0
  %v1775 = vmax.f32 %v1725, 0.0
  %v1776 = vmax.f32 %v1729, 0.0
  %v1777 = vmax.f32 %v1735, 0.0
  %v1778 = vmax.f32 %v1739, 0.0
  %v1779 = vmax.f32 %v1745, 0.0
  %v1780 = vmax.f32 %v1749, 0.0
  %v1781 = vmax.f32 %v1755, 0.0
  %v1782 = vmax.f32 %v1759, 0.0
  %v1783 = vmax.f32 %v1765, 0.0
  %v1784 = vpack.c.bf16 %v1772, %v1771
  %v1785 = vpack.c.bf16 %v1774, %v1773
  %v1786 = vpack.c.bf16 %v1776, %v1775
  %v1787 = vpack.c.bf16 %v1778, %v1777
  %v1788 = vpack.c.bf16 %v1780, %v1779
  %v1789 = vpack.c.bf16 %v1782, %v1781
  %v1790 = vpack.c.bf16 %v1783, %v1783
  %v1798 = vunpack.c.l.b16 %v1784
  %v1799 = vunpack.c.h.b16 %v1784
  %v1800 = vunpack.c.l.b16 %v1785
  %v1801 = vunpack.c.h.b16 %v1785
  %v1802 = vunpack.c.l.b16 %v1786
  %v1803 = vunpack.c.h.b16 %v1786
  %v1804 = vunpack.c.l.b16 %v1787
  %v1805 = vunpack.c.h.b16 %v1787
  %v1806 = vunpack.c.l.b16 %v1788
  %v1807 = vunpack.c.h.b16 %v1788
  %v1808 = vunpack.c.l.b16 %v1789
  %v1809 = vunpack.c.h.b16 %v1789
  %v1810 = vunpack.c.l.b16 %v1790
  %v1811 = vpack.c.b16 %v1798, %v1798
  %v1812 = vpack.c.b16 %v1799, %v1799
  %v1813 = vpack.c.b16 %v1800, %v1800
  %v1814 = vpack.c.b16 %v1801, %v1801
  %v1815 = vpack.c.b16 %v1802, %v1802
  %v1816 = vpack.c.b16 %v1803, %v1803
  %v1817 = vpack.c.b16 %v1804, %v1804
  %v1818 = vpack.c.b16 %v1805, %v1805
  %v1819 = vpack.c.b16 %v1806, %v1806
  %v1820 = vpack.c.b16 %v1807, %v1807
  %v1821 = vpack.c.b16 %v1808, %v1808
  %v1822 = vpack.c.b16 %v1809, %v1809
  %v1823 = vpack.c.b16 %v1810, %v1810
  %1837 = vst [vmem:[%s3] sm:$0xf] %v1811
  %1838 = vst [vmem:[%s3 + $0x4] sm:$0xf] %v1812
  %1839 = vst [vmem:[%s3 + $0x8] sm:$0xf] %v1813
  %1840 = vst [vmem:[%s3 + $0xc] sm:$0xf] %v1814
  %1841 = vst [vmem:[%s3 + $0x10] sm:$0xf] %v1815
  %1842 = vst [vmem:[%s3 + $0x14] sm:$0xf] %v1816
  %1843 = vst [vmem:[%s3 + $0x18] sm:$0xf] %v1817
  %1844 = vst [vmem:[%s3 + $0x1c] sm:$0xf] %v1818
  %1845 = vst [vmem:[%s3 + $0x20] sm:$0xf] %v1819
  %1846 = vst [vmem:[%s3 + $0x24] sm:$0xf] %v1820
  %1847 = vst [vmem:[%s3 + $0x28] sm:$0xf] %v1821
  %1848 = vst [vmem:[%s3 + $0x2c] sm:$0xf] %v1822
  %1849 = vst [vmem:[%s3 + $0x30] sm:$0x1] %v1823
  %v1850 = vpack.c.bf16 %v1711, %v1707
  %v1851 = vpack.c.bf16 %v1721, %v1717
  %v1852 = vpack.c.bf16 %v1731, %v1727
  %v1853 = vpack.c.bf16 %v1741, %v1737
  %v1854 = vpack.c.bf16 %v1751, %v1747
  %v1855 = vpack.c.bf16 %v1761, %v1757
  %v1856 = vpack.c.bf16 %v1767, %v1767
  %v1864 = vunpack.c.l.b16 %v1850
  %v1865 = vunpack.c.h.b16 %v1850
  %v1866 = vunpack.c.l.b16 %v1851
  %v1867 = vunpack.c.h.b16 %v1851
  %v1868 = vunpack.c.l.b16 %v1852
  %v1869 = vunpack.c.h.b16 %v1852
  %v1870 = vunpack.c.l.b16 %v1853
  %v1871 = vunpack.c.h.b16 %v1853
  %v1872 = vunpack.c.l.b16 %v1854
  %v1873 = vunpack.c.h.b16 %v1854
  %v1874 = vunpack.c.l.b16 %v1855
  %v1875 = vunpack.c.h.b16 %v1855
  %v1876 = vunpack.c.l.b16 %v1856
  %v1877 = vpack.c.b16 %v1864, %v1864
  %v1878 = vpack.c.b16 %v1865, %v1865
  %v1879 = vpack.c.b16 %v1866, %v1866
  %v1880 = vpack.c.b16 %v1867, %v1867
  %v1881 = vpack.c.b16 %v1868, %v1868
  %v1882 = vpack.c.b16 %v1869, %v1869
  %v1883 = vpack.c.b16 %v1870, %v1870
  %v1884 = vpack.c.b16 %v1871, %v1871
  %v1885 = vpack.c.b16 %v1872, %v1872
  %v1886 = vpack.c.b16 %v1873, %v1873
  %v1887 = vpack.c.b16 %v1874, %v1874
  %v1888 = vpack.c.b16 %v1875, %v1875
  %v1889 = vpack.c.b16 %v1876, %v1876
  %1903 = vst [vmem:[%s4] sm:$0xf] %v1877
  %1904 = vst [vmem:[%s4 + $0x4] sm:$0xf] %v1878
  %1905 = vst [vmem:[%s4 + $0x8] sm:$0xf] %v1879
  %1906 = vst [vmem:[%s4 + $0xc] sm:$0xf] %v1880
  %1907 = vst [vmem:[%s4 + $0x10] sm:$0xf] %v1881
  %1908 = vst [vmem:[%s4 + $0x14] sm:$0xf] %v1882
  %1909 = vst [vmem:[%s4 + $0x18] sm:$0xf] %v1883
  %1910 = vst [vmem:[%s4 + $0x1c] sm:$0xf] %v1884
  %1911 = vst [vmem:[%s4 + $0x20] sm:$0xf] %v1885
  %1912 = vst [vmem:[%s4 + $0x24] sm:$0xf] %v1886
  %1913 = vst [vmem:[%s4 + $0x28] sm:$0xf] %v1887
  %1914 = vst [vmem:[%s4 + $0x2c] sm:$0xf] %v1888
  %1915 = vst [vmem:[%s4 + $0x30] sm:$0x1] %v1889
  // Predicated region
  $region14: #{forward.7} parent=0 // pred_check
    _
  $region15: #{forward.7} parent=0 // pred_check_branch
    %1917 = sbr.rel (0) target = $region17
  $region16: #{forward.7} parent=0 // pred_region
    _
  $region17: #{forward.7} parent=0 // pred_fallthru
    _
  // Predicated region
  $region18: #{forward.7} parent=0 // pred_check
    _
  $region19: #{forward.7} parent=0 // pred_check_branch
    %1919 = sbr.rel (0) target = $region21
  $region20: #{forward.7} parent=0 // pred_region
    _
  $region21: #{forward.7} parent=0 // pred_fallthru
    _
  // Predicated region
  $region22: #{forward.7} parent=0 // pred_check
    _
  $region23: #{forward.7} parent=0 // pred_check_branch
    %1921 = sbr.rel (0) target = $region25
  $region24: #{forward.7} parent=0 // pred_region
    _
  $region25: #{forward.7} parent=0 // pred_fallthru
    _
  // Predicated region
  $region26: #{forward.7} parent=0 // pred_check
    _
  $region27: #{forward.7} parent=0 // pred_check_branch
    %1923 = sbr.rel (0) target = $region29
  $region28: #{forward.7} parent=0 // pred_region
    _
  $region29: #{forward.7} parent=0 // pred_fallthru
    _

// kernel: forward.8
$region0: #{forward.8}
  #allocation0 [shape = 'u32[]', space=smem, size = 0x4, offset = 0x4, fixed_abs, tag = 'smem constant byte address 0x4 - core index']
  #allocation1 [shape = 'u32[144,128]{1,0:T(1,128)}', space=vmem, size = 0x12000, scoped, tag = 'internal scratch']
  %s0 = inlined_call_operand.vmem [shape: bf16[98,1152], index: 0, kind: input, shape index: {}]
  %s1 = inlined_call_operand.vmem [shape: bf16[1152,128], index: 1, kind: input, shape index: {}]
  %s2 = inlined_call_operand.vmem [shape: f32[1,128], index: 2, kind: input, shape index: {}]
  %s3 = inlined_call_operand.vmem [shape: bf16[98,128], index: 3, kind: input, shape index: {}]
  %s4 = inlined_call_operand.vmem [shape: bf16[98,128], index: 4, kind: output, shape index: {}]
  %s5 = sld [smem:[#allocation0]]
  $region26: #{forward.8} parent=0
    _
  %s7 = ssub.s32 1, %s5
  %s8 = scalar_select 0, %s7, %s5
  // Predicated region
  $region2: #{forward.8} parent=0 // pred_check
    _
  $region3: #{forward.8} parent=0 // pred_check_branch
    %10 = sbr.rel (0) target = $region5
  $region4: #{forward.8} parent=0 // pred_region
    _
  $region5: #{forward.8} parent=0 // pred_fallthru
    _
  // Predicated region
  $region6: #{forward.8} parent=0 // pred_check
    _
  $region7: #{forward.8} parent=0 // pred_check_branch
    %12 = sbr.rel (0) target = $region9
  $region8: #{forward.8} parent=0 // pred_region
    _
  $region9: #{forward.8} parent=0 // pred_fallthru
    _
  // Predicated region
  $region10: #{forward.8} parent=0 // pred_check
    _
  $region11: #{forward.8} parent=0 // pred_check_branch
    %14 = sbr.rel (0) target = $region13
  $region12: #{forward.8} parent=0 // pred_region
    _
  $region13: #{forward.8} parent=0 // pred_fallthru
    _
  // Predicated region
  $region14: #{forward.8} parent=0 // pred_check
    _
  $region15: #{forward.8} parent=0 // pred_check_branch
    %16 = sbr.rel (0) target = $region17
  $region16: #{forward.8} parent=0 // pred_region
    _
  $region17: #{forward.8} parent=0 // pred_fallthru
    _
  %v18 = vld [vmem:[%s0] sm:$0xff]
  %v19 = vld [vmem:[%s0 + $0x8] sm:$0xff]
  %v20 = vld [vmem:[%s0 + $0x10] sm:$0xff]
  %v21 = vld [vmem:[%s0 + $0x18] sm:$0xff]
  %v22 = vld [vmem:[%s0 + $0x20] sm:$0xf]
  %v23 = vld [vmem:[%s0 + $0x24] sm:$0xff]
  %v24 = vld [vmem:[%s0 + $0x2c] sm:$0xff]
  %v25 = vld [vmem:[%s0 + $0x34] sm:$0xff]
  %v26 = vld [vmem:[%s0 + $0x3c] sm:$0xff]
  %v27 = vld [vmem:[%s0 + $0x44] sm:$0xf]
  %v28 = vld [vmem:[%s0 + $0x48] sm:$0xff]
  %v29 = vld [vmem:[%s0 + $0x50] sm:$0xff]
  %v30 = vld [vmem:[%s0 + $0x58] sm:$0xff]
  %v31 = vld [vmem:[%s0 + $0x60] sm:$0xff]
  %v32 = vld [vmem:[%s0 + $0x68] sm:$0xf]
  %v33 = vld [vmem:[%s0 + $0x6c] sm:$0xff]
  %v34 = vld [vmem:[%s0 + $0x74] sm:$0xff]
  %v35 = vld [vmem:[%s0 + $0x7c] sm:$0xff]
  %v36 = vld [vmem:[%s0 + $0x84] sm:$0xff]
  %v37 = vld [vmem:[%s0 + $0x8c] sm:$0xf]
  %v38 = vld [vmem:[%s0 + $0x90] sm:$0xff]
  %v39 = vld [vmem:[%s0 + $0x98] sm:$0xff]
  %v40 = vld [vmem:[%s0 + $0xa0] sm:$0xff]
  %v41 = vld [vmem:[%s0 + $0xa8] sm:$0xff]
  %v42 = vld [vmem:[%s0 + $0xb0] sm:$0xf]
  %v43 = vld [vmem:[%s0 + $0xb4] sm:$0xff]
  %v44 = vld [vmem:[%s0 + $0xbc] sm:$0xff]
  %v45 = vld [vmem:[%s0 + $0xc4] sm:$0xff]
  %v46 = vld [vmem:[%s0 + $0xcc] sm:$0xff]
  %v47 = vld [vmem:[%s0 + $0xd4] sm:$0xf]
  %v48 = vld [vmem:[%s0 + $0xd8] sm:$0xff]
  %v49 = vld [vmem:[%s0 + $0xe0] sm:$0xff]
  %v50 = vld [vmem:[%s0 + $0xe8] sm:$0xff]
  %v51 = vld [vmem:[%s0 + $0xf0] sm:$0xff]
  %v52 = vld [vmem:[%s0 + $0xf8] sm:$0xf]
  %v53 = vld [vmem:[%s0 + $0xfc] sm:$0xff]
  %v54 = vld [vmem:[%s0 + $0x104] sm:$0xff]
  %v55 = vld [vmem:[%s0 + $0x10c] sm:$0xff]
  %v56 = vld [vmem:[%s0 + $0x114] sm:$0xff]
  %v57 = vld [vmem:[%s0 + $0x11c] sm:$0xf]
  %v58 = vld [vmem:[%s0 + $0x120] sm:$0xff]
  %v59 = vld [vmem:[%s0 + $0x128] sm:$0xff]
  %v60 = vld [vmem:[%s0 + $0x130] sm:$0xff]
  %v61 = vld [vmem:[%s0 + $0x138] sm:$0xff]
  %v62 = vld [vmem:[%s0 + $0x140] sm:$0xf]
  %v63 = vld [vmem:[%s0 + $0x144] sm:$0xff]
  %v64 = vld [vmem:[%s0 + $0x14c] sm:$0xff]
  %v65 = vld [vmem:[%s0 + $0x154] sm:$0xff]
  %v66 = vld [vmem:[%s0 + $0x15c] sm:$0xff]
  %v67 = vld [vmem:[%s0 + $0x164] sm:$0xf]
  %v68 = vld [vmem:[%s0 + $0x168] sm:$0xff]
  %v69 = vld [vmem:[%s0 + $0x170] sm:$0xff]
  %v70 = vld [vmem:[%s0 + $0x178] sm:$0xff]
  %v71 = vld [vmem:[%s0 + $0x180] sm:$0xff]
  %v72 = vld [vmem:[%s0 + $0x188] sm:$0xf]
  %v73 = vld [vmem:[%s0 + $0x18c] sm:$0xff]
  %v74 = vld [vmem:[%s0 + $0x194] sm:$0xff]
  %v75 = vld [vmem:[%s0 + $0x19c] sm:$0xff]
  %v76 = vld [vmem:[%s0 + $0x1a4] sm:$0xff]
  %v77 = vld [vmem:[%s0 + $0x1ac] sm:$0xf]
  %v78 = vld [vmem:[%s0 + $0x1b0] sm:$0x11]
  %v79 = vld [vmem:[%s0 + $0x1b8] sm:$0x11]
  %v80 = vld [vmem:[%s0 + $0x1c0] sm:$0x11]
  %v81 = vld [vmem:[%s0 + $0x1c8] sm:$0x11]
  %v82 = vld [vmem:[%s0 + $0x1d0] sm:$0x1]
  %v83 = vld [vmem:[%s1] sm:$0xf]
  %v84 = vld [vmem:[%s1 + $0x4] sm:$0xf]
  %v85 = vld [vmem:[%s1 + $0x8] sm:$0xf]
  %v86 = vld [vmem:[%s1 + $0xc] sm:$0xf]
  %v87 = vld [vmem:[%s1 + $0x10] sm:$0xf]
  %v88 = vld [vmem:[%s1 + $0x14] sm:$0xf]
  %v89 = vld [vmem:[%s1 + $0x18] sm:$0xf]
  %v90 = vld [vmem:[%s1 + $0x1c] sm:$0xf]
  %v91 = vld [vmem:[%s1 + $0x20] sm:$0xf]
  %v92 = vld [vmem:[%s1 + $0x24] sm:$0xf]
  %v93 = vld [vmem:[%s1 + $0x28] sm:$0xf]
  %v94 = vld [vmem:[%s1 + $0x2c] sm:$0xf]
  %v95 = vld [vmem:[%s1 + $0x30] sm:$0xf]
  %v96 = vld [vmem:[%s1 + $0x34] sm:$0xf]
  %v97 = vld [vmem:[%s1 + $0x38] sm:$0xf]
  %v98 = vld [vmem:[%s1 + $0x3c] sm:$0xf]
  %v99 = vld [vmem:[%s1 + $0x40] sm:$0xf]
  %v100 = vld [vmem:[%s1 + $0x44] sm:$0xf]
  %v101 = vld [vmem:[%s1 + $0x48] sm:$0xf]
  %v102 = vld [vmem:[%s1 + $0x4c] sm:$0xf]
  %v103 = vld [vmem:[%s1 + $0x50] sm:$0xf]
  %v104 = vld [vmem:[%s1 + $0x54] sm:$0xf]
  %v105 = vld [vmem:[%s1 + $0x58] sm:$0xf]
  %v106 = vld [vmem:[%s1 + $0x5c] sm:$0xf]
  %v107 = vld [vmem:[%s1 + $0x60] sm:$0xf]
  %v108 = vld [vmem:[%s1 + $0x64] sm:$0xf]
  %v109 = vld [vmem:[%s1 + $0x68] sm:$0xf]
  %v110 = vld [vmem:[%s1 + $0x6c] sm:$0xf]
  %v111 = vld [vmem:[%s1 + $0x70] sm:$0xf]
  %v112 = vld [vmem:[%s1 + $0x74] sm:$0xf]
  %v113 = vld [vmem:[%s1 + $0x78] sm:$0xf]
  %v114 = vld [vmem:[%s1 + $0x7c] sm:$0xf]
  %v115 = vld [vmem:[%s1 + $0x80] sm:$0xf]
  %v116 = vld [vmem:[%s1 + $0x84] sm:$0xf]
  %v117 = vld [vmem:[%s1 + $0x88] sm:$0xf]
  %v118 = vld [vmem:[%s1 + $0x8c] sm:$0xf]
  %v119 = vld [vmem:[%s1 + $0x90] sm:$0xf]
  %v120 = vld [vmem:[%s1 + $0x94] sm:$0xf]
  %v121 = vld [vmem:[%s1 + $0x98] sm:$0xf]
  %v122 = vld [vmem:[%s1 + $0x9c] sm:$0xf]
  %v123 = vld [vmem:[%s1 + $0xa0] sm:$0xf]
  %v124 = vld [vmem:[%s1 + $0xa4] sm:$0xf]
  %v125 = vld [vmem:[%s1 + $0xa8] sm:$0xf]
  %v126 = vld [vmem:[%s1 + $0xac] sm:$0xf]
  %v127 = vld [vmem:[%s1 + $0xb0] sm:$0xf]
  %v128 = vld [vmem:[%s1 + $0xb4] sm:$0xf]
  %v129 = vld [vmem:[%s1 + $0xb8] sm:$0xf]
  %v130 = vld [vmem:[%s1 + $0xbc] sm:$0xf]
  %v131 = vld [vmem:[%s1 + $0xc0] sm:$0xf]
  %v132 = vld [vmem:[%s1 + $0xc4] sm:$0xf]
  %v133 = vld [vmem:[%s1 + $0xc8] sm:$0xf]
  %v134 = vld [vmem:[%s1 + $0xcc] sm:$0xf]
  %v135 = vld [vmem:[%s1 + $0xd0] sm:$0xf]
  %v136 = vld [vmem:[%s1 + $0xd4] sm:$0xf]
  %v137 = vld [vmem:[%s1 + $0xd8] sm:$0xf]
  %v138 = vld [vmem:[%s1 + $0xdc] sm:$0xf]
  %v139 = vld [vmem:[%s1 + $0xe0] sm:$0xf]
  %v140 = vld [vmem:[%s1 + $0xe4] sm:$0xf]
  %v141 = vld [vmem:[%s1 + $0xe8] sm:$0xf]
  %v142 = vld [vmem:[%s1 + $0xec] sm:$0xf]
  %v143 = vld [vmem:[%s1 + $0xf0] sm:$0xf]
  %v144 = vld [vmem:[%s1 + $0xf4] sm:$0xf]
  %v145 = vld [vmem:[%s1 + $0xf8] sm:$0xf]
  %v146 = vld [vmem:[%s1 + $0xfc] sm:$0xf]
  %v147 = vld [vmem:[%s1 + $0x100] sm:$0xf]
  %v148 = vld [vmem:[%s1 + $0x104] sm:$0xf]
  %v149 = vld [vmem:[%s1 + $0x108] sm:$0xf]
  %v150 = vld [vmem:[%s1 + $0x10c] sm:$0xf]
  %v151 = vld [vmem:[%s1 + $0x110] sm:$0xf]
  %v152 = vld [vmem:[%s1 + $0x114] sm:$0xf]
  %v153 = vld [vmem:[%s1 + $0x118] sm:$0xf]
  %v154 = vld [vmem:[%s1 + $0x11c] sm:$0xf]
  %v155 = vld [vmem:[%s1 + $0x120] sm:$0xf]
  %v156 = vld [vmem:[%s1 + $0x124] sm:$0xf]
  %v157 = vld [vmem:[%s1 + $0x128] sm:$0xf]
  %v158 = vld [vmem:[%s1 + $0x12c] sm:$0xf]
  %v159 = vld [vmem:[%s1 + $0x130] sm:$0xf]
  %v160 = vld [vmem:[%s1 + $0x134] sm:$0xf]
  %v161 = vld [vmem:[%s1 + $0x138] sm:$0xf]
  %v162 = vld [vmem:[%s1 + $0x13c] sm:$0xf]
  %v163 = vld [vmem:[%s1 + $0x140] sm:$0xf]
  %v164 = vld [vmem:[%s1 + $0x144] sm:$0xf]
  %v165 = vld [vmem:[%s1 + $0x148] sm:$0xf]
  %v166 = vld [vmem:[%s1 + $0x14c] sm:$0xf]
  %v167 = vld [vmem:[%s1 + $0x150] sm:$0xf]
  %v168 = vld [vmem:[%s1 + $0x154] sm:$0xf]
  %v169 = vld [vmem:[%s1 + $0x158] sm:$0xf]
  %v170 = vld [vmem:[%s1 + $0x15c] sm:$0xf]
  %v171 = vld [vmem:[%s1 + $0x160] sm:$0xf]
  %v172 = vld [vmem:[%s1 + $0x164] sm:$0xf]
  %v173 = vld [vmem:[%s1 + $0x168] sm:$0xf]
  %v174 = vld [vmem:[%s1 + $0x16c] sm:$0xf]
  %v175 = vld [vmem:[%s1 + $0x170] sm:$0xf]
  %v176 = vld [vmem:[%s1 + $0x174] sm:$0xf]
  %v177 = vld [vmem:[%s1 + $0x178] sm:$0xf]
  %v178 = vld [vmem:[%s1 + $0x17c] sm:$0xf]
  %v179 = vld [vmem:[%s1 + $0x180] sm:$0xf]
  %v180 = vld [vmem:[%s1 + $0x184] sm:$0xf]
  %v181 = vld [vmem:[%s1 + $0x188] sm:$0xf]
  %v182 = vld [vmem:[%s1 + $0x18c] sm:$0xf]
  %v183 = vld [vmem:[%s1 + $0x190] sm:$0xf]
  %v184 = vld [vmem:[%s1 + $0x194] sm:$0xf]
  %v185 = vld [vmem:[%s1 + $0x198] sm:$0xf]
  %v186 = vld [vmem:[%s1 + $0x19c] sm:$0xf]
  %v187 = vld [vmem:[%s1 + $0x1a0] sm:$0xf]
  %v188 = vld [vmem:[%s1 + $0x1a4] sm:$0xf]
  %v189 = vld [vmem:[%s1 + $0x1a8] sm:$0xf]
  %v190 = vld [vmem:[%s1 + $0x1ac] sm:$0xf]
  %v191 = vld [vmem:[%s1 + $0x1b0] sm:$0xf]
  %v192 = vld [vmem:[%s1 + $0x1b4] sm:$0xf]
  %v193 = vld [vmem:[%s1 + $0x1b8] sm:$0xf]
  %v194 = vld [vmem:[%s1 + $0x1bc] sm:$0xf]
  %v195 = vld [vmem:[%s1 + $0x1c0] sm:$0xf]
  %v196 = vld [vmem:[%s1 + $0x1c4] sm:$0xf]
  %v197 = vld [vmem:[%s1 + $0x1c8] sm:$0xf]
  %v198 = vld [vmem:[%s1 + $0x1cc] sm:$0xf]
  %v199 = vld [vmem:[%s1 + $0x1d0] sm:$0xf]
  %v200 = vld [vmem:[%s1 + $0x1d4] sm:$0xf]
  %v201 = vld [vmem:[%s1 + $0x1d8] sm:$0xf]
  %v202 = vld [vmem:[%s1 + $0x1dc] sm:$0xf]
  %v203 = vld [vmem:[%s1 + $0x1e0] sm:$0xf]
  %v204 = vld [vmem:[%s1 + $0x1e4] sm:$0xf]
  %v205 = vld [vmem:[%s1 + $0x1e8] sm:$0xf]
  %v206 = vld [vmem:[%s1 + $0x1ec] sm:$0xf]
  %v207 = vld [vmem:[%s1 + $0x1f0] sm:$0xf]
  %v208 = vld [vmem:[%s1 + $0x1f4] sm:$0xf]
  %v209 = vld [vmem:[%s1 + $0x1f8] sm:$0xf]
  %v210 = vld [vmem:[%s1 + $0x1fc] sm:$0xf]
  %v211 = vld [vmem:[%s1 + $0x200] sm:$0xf]
  %v212 = vld [vmem:[%s1 + $0x204] sm:$0xf]
  %v213 = vld [vmem:[%s1 + $0x208] sm:$0xf]
  %v214 = vld [vmem:[%s1 + $0x20c] sm:$0xf]
  %v215 = vld [vmem:[%s1 + $0x210] sm:$0xf]
  %v216 = vld [vmem:[%s1 + $0x214] sm:$0xf]
  %v217 = vld [vmem:[%s1 + $0x218] sm:$0xf]
  %v218 = vld [vmem:[%s1 + $0x21c] sm:$0xf]
  %v219 = vld [vmem:[%s1 + $0x220] sm:$0xf]
  %v220 = vld [vmem:[%s1 + $0x224] sm:$0xf]
  %v221 = vld [vmem:[%s1 + $0x228] sm:$0xf]
  %v222 = vld [vmem:[%s1 + $0x22c] sm:$0xf]
  %v223 = vld [vmem:[%s1 + $0x230] sm:$0xf]
  %v224 = vld [vmem:[%s1 + $0x234] sm:$0xf]
  %v225 = vld [vmem:[%s1 + $0x238] sm:$0xf]
  %v226 = vld [vmem:[%s1 + $0x23c] sm:$0xf]
  %v227 = vld [vmem:[%s2] sm:$0x1]
  %v229 = vlaneseq
  %v230 = vshrl.u32 %v229, 7
  %v231 = vsub.s32 0, %v230
  %v232 = vrot.slane %v227, %v231
  %v299 = vunpack.c.l.b16 %v18
  %v300 = vunpack.c.h.b16 %v18
  %v301 = vunpack.c.l.b16 %v19
  %v302 = vunpack.c.h.b16 %v19
  %v303 = vunpack.c.l.b16 %v20
  %v304 = vunpack.c.h.b16 %v20
  %v305 = vunpack.c.l.b16 %v21
  %v306 = vunpack.c.h.b16 %v21
  %v307 = vunpack.c.l.b16 %v22
  %v308 = vunpack.c.l.b16 %v23
  %v309 = vunpack.c.h.b16 %v23
  %v310 = vunpack.c.l.b16 %v24
  %v311 = vunpack.c.h.b16 %v24
  %v312 = vunpack.c.l.b16 %v25
  %v313 = vunpack.c.h.b16 %v25
  %v314 = vunpack.c.l.b16 %v26
  %v315 = vunpack.c.h.b16 %v26
  %v316 = vunpack.c.l.b16 %v27
  %v317 = vunpack.c.l.b16 %v28
  %v318 = vunpack.c.h.b16 %v28
  %v319 = vunpack.c.l.b16 %v29
  %v320 = vunpack.c.h.b16 %v29
  %v321 = vunpack.c.l.b16 %v30
  %v322 = vunpack.c.h.b16 %v30
  %v323 = vunpack.c.l.b16 %v31
  %v324 = vunpack.c.h.b16 %v31
  %v325 = vunpack.c.l.b16 %v32
  %v326 = vunpack.c.l.b16 %v33
  %v327 = vunpack.c.h.b16 %v33
  %v328 = vunpack.c.l.b16 %v34
  %v329 = vunpack.c.h.b16 %v34
  %v330 = vunpack.c.l.b16 %v35
  %v331 = vunpack.c.h.b16 %v35
  %v332 = vunpack.c.l.b16 %v36
  %v333 = vunpack.c.h.b16 %v36
  %v334 = vunpack.c.l.b16 %v37
  %v335 = vunpack.c.l.b16 %v38
  %v336 = vunpack.c.h.b16 %v38
  %v337 = vunpack.c.l.b16 %v39
  %v338 = vunpack.c.h.b16 %v39
  %v339 = vunpack.c.l.b16 %v40
  %v340 = vunpack.c.h.b16 %v40
  %v341 = vunpack.c.l.b16 %v41
  %v342 = vunpack.c.h.b16 %v41
  %v343 = vunpack.c.l.b16 %v42
  %v344 = vunpack.c.l.b16 %v43
  %v345 = vunpack.c.h.b16 %v43
  %v346 = vunpack.c.l.b16 %v44
  %v347 = vunpack.c.h.b16 %v44
  %v348 = vunpack.c.l.b16 %v45
  %v349 = vunpack.c.h.b16 %v45
  %v350 = vunpack.c.l.b16 %v46
  %v351 = vunpack.c.h.b16 %v46
  %v352 = vunpack.c.l.b16 %v47
  %v353 = vunpack.c.l.b16 %v48
  %v354 = vunpack.c.h.b16 %v48
  %v355 = vunpack.c.l.b16 %v49
  %v356 = vunpack.c.h.b16 %v49
  %v357 = vunpack.c.l.b16 %v50
  %v358 = vunpack.c.h.b16 %v50
  %v359 = vunpack.c.l.b16 %v51
  %v360 = vunpack.c.h.b16 %v51
  %v361 = vunpack.c.l.b16 %v52
  %v362 = vunpack.c.l.b16 %v53
  %v363 = vunpack.c.h.b16 %v53
  %v364 = vunpack.c.l.b16 %v54
  %v365 = vunpack.c.h.b16 %v54
  %v366 = vunpack.c.l.b16 %v55
  %v367 = vunpack.c.h.b16 %v55
  %v368 = vunpack.c.l.b16 %v56
  %v369 = vunpack.c.h.b16 %v56
  %v370 = vunpack.c.l.b16 %v57
  %v371 = vunpack.c.l.b16 %v58
  %v372 = vunpack.c.h.b16 %v58
  %v373 = vunpack.c.l.b16 %v59
  %v374 = vunpack.c.h.b16 %v59
  %v375 = vunpack.c.l.b16 %v60
  %v376 = vunpack.c.h.b16 %v60
  %v377 = vunpack.c.l.b16 %v61
  %v378 = vunpack.c.h.b16 %v61
  %v379 = vunpack.c.l.b16 %v62
  %v380 = vunpack.c.l.b16 %v63
  %v381 = vunpack.c.h.b16 %v63
  %v382 = vunpack.c.l.b16 %v64
  %v383 = vunpack.c.h.b16 %v64
  %v384 = vunpack.c.l.b16 %v65
  %v385 = vunpack.c.h.b16 %v65
  %v386 = vunpack.c.l.b16 %v66
  %v387 = vunpack.c.h.b16 %v66
  %v388 = vunpack.c.l.b16 %v67
  %v389 = vunpack.c.l.b16 %v68
  %v390 = vunpack.c.h.b16 %v68
  %v391 = vunpack.c.l.b16 %v69
  %v392 = vunpack.c.h.b16 %v69
  %v393 = vunpack.c.l.b16 %v70
  %v394 = vunpack.c.h.b16 %v70
  %v395 = vunpack.c.l.b16 %v71
  %v396 = vunpack.c.h.b16 %v71
  %v397 = vunpack.c.l.b16 %v72
  %v398 = vunpack.c.l.b16 %v73
  %v399 = vunpack.c.h.b16 %v73
  %v400 = vunpack.c.l.b16 %v74
  %v401 = vunpack.c.h.b16 %v74
  %v402 = vunpack.c.l.b16 %v75
  %v403 = vunpack.c.h.b16 %v75
  %v404 = vunpack.c.l.b16 %v76
  %v405 = vunpack.c.h.b16 %v76
  %v406 = vunpack.c.l.b16 %v77
  %v407 = vunpack.c.l.b16 %v78
  %v408 = vunpack.c.h.b16 %v78
  %v409 = vunpack.c.l.b16 %v79
  %v410 = vunpack.c.h.b16 %v79
  %v411 = vunpack.c.l.b16 %v80
  %v412 = vunpack.c.h.b16 %v80
  %v413 = vunpack.c.l.b16 %v81
  %v414 = vunpack.c.h.b16 %v81
  %v415 = vunpack.c.l.b16 %v82
  %v416 = vpack.c.b16 %v308, %v299
  %v417 = vpack.c.b16 %v309, %v300
  %v418 = vpack.c.b16 %v310, %v301
  %v419 = vpack.c.b16 %v311, %v302
  %v420 = vpack.c.b16 %v312, %v303
  %v421 = vpack.c.b16 %v313, %v304
  %v422 = vpack.c.b16 %v314, %v305
  %v423 = vpack.c.b16 %v315, %v306
  %v424 = vpack.c.b16 %v316, %v307
  %v425 = vpack.c.b16 %v326, %v317
  %v426 = vpack.c.b16 %v327, %v318
  %v427 = vpack.c.b16 %v328, %v319
  %v428 = vpack.c.b16 %v329, %v320
  %v429 = vpack.c.b16 %v330, %v321
  %v430 = vpack.c.b16 %v331, %v322
  %v431 = vpack.c.b16 %v332, %v323
  %v432 = vpack.c.b16 %v333, %v324
  %v433 = vpack.c.b16 %v334, %v325
  %v434 = vpack.c.b16 %v344, %v335
  %v435 = vpack.c.b16 %v345, %v336
  %v436 = vpack.c.b16 %v346, %v337
  %v437 = vpack.c.b16 %v347, %v338
  %v438 = vpack.c.b16 %v348, %v339
  %v439 = vpack.c.b16 %v349, %v340
  %v440 = vpack.c.b16 %v350, %v341
  %v441 = vpack.c.b16 %v351, %v342
  %v442 = vpack.c.b16 %v352, %v343
  %v443 = vpack.c.b16 %v362, %v353
  %v444 = vpack.c.b16 %v363, %v354
  %v445 = vpack.c.b16 %v364, %v355
  %v446 = vpack.c.b16 %v365, %v356
  %v447 = vpack.c.b16 %v366, %v357
  %v448 = vpack.c.b16 %v367, %v358
  %v449 = vpack.c.b16 %v368, %v359
  %v450 = vpack.c.b16 %v369, %v360
  %v451 = vpack.c.b16 %v370, %v361
  %v452 = vpack.c.b16 %v380, %v371
  %v453 = vpack.c.b16 %v381, %v372
  %v454 = vpack.c.b16 %v382, %v373
  %v455 = vpack.c.b16 %v383, %v374
  %v456 = vpack.c.b16 %v384, %v375
  %v457 = vpack.c.b16 %v385, %v376
  %v458 = vpack.c.b16 %v386, %v377
  %v459 = vpack.c.b16 %v387, %v378
  %v460 = vpack.c.b16 %v388, %v379
  %v461 = vpack.c.b16 %v398, %v389
  %v462 = vpack.c.b16 %v399, %v390
  %v463 = vpack.c.b16 %v400, %v391
  %v464 = vpack.c.b16 %v401, %v392
  %v465 = vpack.c.b16 %v402, %v393
  %v466 = vpack.c.b16 %v403, %v394
  %v467 = vpack.c.b16 %v404, %v395
  %v468 = vpack.c.b16 %v405, %v396
  %v469 = vpack.c.b16 %v406, %v397
  %v470 = vpack.c.b16 %v407, %v407
  %v471 = vpack.c.b16 %v408, %v408
  %v472 = vpack.c.b16 %v409, %v409
  %v473 = vpack.c.b16 %v410, %v410
  %v474 = vpack.c.b16 %v411, %v411
  %v475 = vpack.c.b16 %v412, %v412
  %v476 = vpack.c.b16 %v413, %v413
  %v477 = vpack.c.b16 %v414, %v414
  %v478 = vpack.c.b16 %v415, %v415
  %v686 = vunpack.c.l.b16 %v83
  %v687 = vunpack.c.l.b16 %v84
  %v688 = vunpack.c.l.b16 %v85
  %v689 = vunpack.c.l.b16 %v86
  %v690 = vunpack.c.l.b16 %v87
  %v691 = vunpack.c.l.b16 %v88
  %v692 = vunpack.c.l.b16 %v89
  %v693 = vunpack.c.l.b16 %v90
  %v694 = vunpack.c.l.b16 %v91
  %v695 = vunpack.c.l.b16 %v92
  %v696 = vunpack.c.l.b16 %v93
  %v697 = vunpack.c.l.b16 %v94
  %v698 = vunpack.c.l.b16 %v95
  %v699 = vunpack.c.l.b16 %v96
  %v700 = vunpack.c.l.b16 %v97
  %v701 = vunpack.c.l.b16 %v98
  %v702 = vunpack.c.l.b16 %v99
  %v703 = vunpack.c.l.b16 %v100
  %v704 = vunpack.c.l.b16 %v101
  %v705 = vunpack.c.l.b16 %v102
  %v706 = vunpack.c.l.b16 %v103
  %v707 = vunpack.c.l.b16 %v104
  %v708 = vunpack.c.l.b16 %v105
  %v709 = vunpack.c.l.b16 %v106
  %v710 = vunpack.c.l.b16 %v107
  %v711 = vunpack.c.l.b16 %v108
  %v712 = vunpack.c.l.b16 %v109
  %v713 = vunpack.c.l.b16 %v110
  %v714 = vunpack.c.l.b16 %v111
  %v715 = vunpack.c.l.b16 %v112
  %v716 = vunpack.c.l.b16 %v113
  %v717 = vunpack.c.l.b16 %v114
  %v718 = vunpack.c.l.b16 %v115
  %v719 = vunpack.c.l.b16 %v116
  %v720 = vunpack.c.l.b16 %v117
  %v721 = vunpack.c.l.b16 %v118
  %v722 = vunpack.c.l.b16 %v119
  %v723 = vunpack.c.l.b16 %v120
  %v724 = vunpack.c.l.b16 %v121
  %v725 = vunpack.c.l.b16 %v122
  %v726 = vunpack.c.l.b16 %v123
  %v727 = vunpack.c.l.b16 %v124
  %v728 = vunpack.c.l.b16 %v125
  %v729 = vunpack.c.l.b16 %v126
  %v730 = vunpack.c.l.b16 %v127
  %v731 = vunpack.c.l.b16 %v128
  %v732 = vunpack.c.l.b16 %v129
  %v733 = vunpack.c.l.b16 %v130
  %v734 = vunpack.c.l.b16 %v131
  %v735 = vunpack.c.l.b16 %v132
  %v736 = vunpack.c.l.b16 %v133
  %v737 = vunpack.c.l.b16 %v134
  %v738 = vunpack.c.l.b16 %v135
  %v739 = vunpack.c.l.b16 %v136
  %v740 = vunpack.c.l.b16 %v137
  %v741 = vunpack.c.l.b16 %v138
  %v742 = vunpack.c.l.b16 %v139
  %v743 = vunpack.c.l.b16 %v140
  %v744 = vunpack.c.l.b16 %v141
  %v745 = vunpack.c.l.b16 %v142
  %v746 = vunpack.c.l.b16 %v143
  %v747 = vunpack.c.l.b16 %v144
  %v748 = vunpack.c.l.b16 %v145
  %v749 = vunpack.c.l.b16 %v146
  %v750 = vunpack.c.l.b16 %v147
  %v751 = vunpack.c.l.b16 %v148
  %v752 = vunpack.c.l.b16 %v149
  %v753 = vunpack.c.l.b16 %v150
  %v754 = vunpack.c.l.b16 %v151
  %v755 = vunpack.c.l.b16 %v152
  %v756 = vunpack.c.l.b16 %v153
  %v757 = vunpack.c.l.b16 %v154
  %v758 = vunpack.c.l.b16 %v155
  %v759 = vunpack.c.l.b16 %v156
  %v760 = vunpack.c.l.b16 %v157
  %v761 = vunpack.c.l.b16 %v158
  %v762 = vunpack.c.l.b16 %v159
  %v763 = vunpack.c.l.b16 %v160
  %v764 = vunpack.c.l.b16 %v161
  %v765 = vunpack.c.l.b16 %v162
  %v766 = vunpack.c.l.b16 %v163
  %v767 = vunpack.c.l.b16 %v164
  %v768 = vunpack.c.l.b16 %v165
  %v769 = vunpack.c.l.b16 %v166
  %v770 = vunpack.c.l.b16 %v167
  %v771 = vunpack.c.l.b16 %v168
  %v772 = vunpack.c.l.b16 %v169
  %v773 = vunpack.c.l.b16 %v170
  %v774 = vunpack.c.l.b16 %v171
  %v775 = vunpack.c.l.b16 %v172
  %v776 = vunpack.c.l.b16 %v173
  %v777 = vunpack.c.l.b16 %v174
  %v778 = vunpack.c.l.b16 %v175
  %v779 = vunpack.c.l.b16 %v176
  %v780 = vunpack.c.l.b16 %v177
  %v781 = vunpack.c.l.b16 %v178
  %v782 = vunpack.c.l.b16 %v179
  %v783 = vunpack.c.l.b16 %v180
  %v784 = vunpack.c.l.b16 %v181
  %v785 = vunpack.c.l.b16 %v182
  %v786 = vunpack.c.l.b16 %v183
  %v787 = vunpack.c.l.b16 %v184
  %v788 = vunpack.c.l.b16 %v185
  %v789 = vunpack.c.l.b16 %v186
  %v790 = vunpack.c.l.b16 %v187
  %v791 = vunpack.c.l.b16 %v188
  %v792 = vunpack.c.l.b16 %v189
  %v793 = vunpack.c.l.b16 %v190
  %v794 = vunpack.c.l.b16 %v191
  %v795 = vunpack.c.l.b16 %v192
  %v796 = vunpack.c.l.b16 %v193
  %v797 = vunpack.c.l.b16 %v194
  %v798 = vunpack.c.l.b16 %v195
  %v799 = vunpack.c.l.b16 %v196
  %v800 = vunpack.c.l.b16 %v197
  %v801 = vunpack.c.l.b16 %v198
  %v802 = vunpack.c.l.b16 %v199
  %v803 = vunpack.c.l.b16 %v200
  %v804 = vunpack.c.l.b16 %v201
  %v805 = vunpack.c.l.b16 %v202
  %v806 = vunpack.c.l.b16 %v203
  %v807 = vunpack.c.l.b16 %v204
  %v808 = vunpack.c.l.b16 %v205
  %v809 = vunpack.c.l.b16 %v206
  %v810 = vunpack.c.l.b16 %v207
  %v811 = vunpack.c.l.b16 %v208
  %v812 = vunpack.c.l.b16 %v209
  %v813 = vunpack.c.l.b16 %v210
  %v814 = vunpack.c.l.b16 %v211
  %v815 = vunpack.c.l.b16 %v212
  %v816 = vunpack.c.l.b16 %v213
  %v817 = vunpack.c.l.b16 %v214
  %v818 = vunpack.c.l.b16 %v215
  %v819 = vunpack.c.l.b16 %v216
  %v820 = vunpack.c.l.b16 %v217
  %v821 = vunpack.c.l.b16 %v218
  %v822 = vunpack.c.l.b16 %v219
  %v823 = vunpack.c.l.b16 %v220
  %v824 = vunpack.c.l.b16 %v221
  %v825 = vunpack.c.l.b16 %v222
  %v826 = vunpack.c.l.b16 %v223
  %v827 = vunpack.c.l.b16 %v224
  %v828 = vunpack.c.l.b16 %v225
  %v829 = vunpack.c.l.b16 %v226
  %v830 = vpack.c.b16 %v687, %v686
  %v831 = vpack.c.b16 %v689, %v688
  %v832 = vpack.c.b16 %v691, %v690
  %v833 = vpack.c.b16 %v693, %v692
  %v834 = vpack.c.b16 %v695, %v694
  %v835 = vpack.c.b16 %v697, %v696
  %v836 = vpack.c.b16 %v699, %v698
  %v837 = vpack.c.b16 %v701, %v700
  %v838 = vpack.c.b16 %v703, %v702
  %v839 = vpack.c.b16 %v705, %v704
  %v840 = vpack.c.b16 %v707, %v706
  %v841 = vpack.c.b16 %v709, %v708
  %v842 = vpack.c.b16 %v711, %v710
  %v843 = vpack.c.b16 %v713, %v712
  %v844 = vpack.c.b16 %v715, %v714
  %v845 = vpack.c.b16 %v717, %v716
  %v846 = vpack.c.b16 %v719, %v718
  %v847 = vpack.c.b16 %v721, %v720
  %v848 = vpack.c.b16 %v723, %v722
  %v849 = vpack.c.b16 %v725, %v724
  %v850 = vpack.c.b16 %v727, %v726
  %v851 = vpack.c.b16 %v729, %v728
  %v852 = vpack.c.b16 %v731, %v730
  %v853 = vpack.c.b16 %v733, %v732
  %v854 = vpack.c.b16 %v735, %v734
  %v855 = vpack.c.b16 %v737, %v736
  %v856 = vpack.c.b16 %v739, %v738
  %v857 = vpack.c.b16 %v741, %v740
  %v858 = vpack.c.b16 %v743, %v742
  %v859 = vpack.c.b16 %v745, %v744
  %v860 = vpack.c.b16 %v747, %v746
  %v861 = vpack.c.b16 %v749, %v748
  %v862 = vpack.c.b16 %v751, %v750
  %v863 = vpack.c.b16 %v753, %v752
  %v864 = vpack.c.b16 %v755, %v754
  %v865 = vpack.c.b16 %v757, %v756
  %v866 = vpack.c.b16 %v759, %v758
  %v867 = vpack.c.b16 %v761, %v760
  %v868 = vpack.c.b16 %v763, %v762
  %v869 = vpack.c.b16 %v765, %v764
  %v870 = vpack.c.b16 %v767, %v766
  %v871 = vpack.c.b16 %v769, %v768
  %v872 = vpack.c.b16 %v771, %v770
  %v873 = vpack.c.b16 %v773, %v772
  %v874 = vpack.c.b16 %v775, %v774
  %v875 = vpack.c.b16 %v777, %v776
  %v876 = vpack.c.b16 %v779, %v778
  %v877 = vpack.c.b16 %v781, %v780
  %v878 = vpack.c.b16 %v783, %v782
  %v879 = vpack.c.b16 %v785, %v784
  %v880 = vpack.c.b16 %v787, %v786
  %v881 = vpack.c.b16 %v789, %v788
  %v882 = vpack.c.b16 %v791, %v790
  %v883 = vpack.c.b16 %v793, %v792
  %v884 = vpack.c.b16 %v795, %v794
  %v885 = vpack.c.b16 %v797, %v796
  %v886 = vpack.c.b16 %v799, %v798
  %v887 = vpack.c.b16 %v801, %v800
  %v888 = vpack.c.b16 %v803, %v802
  %v889 = vpack.c.b16 %v805, %v804
  %v890 = vpack.c.b16 %v807, %v806
  %v891 = vpack.c.b16 %v809, %v808
  %v892 = vpack.c.b16 %v811, %v810
  %v893 = vpack.c.b16 %v813, %v812
  %v894 = vpack.c.b16 %v815, %v814
  %v895 = vpack.c.b16 %v817, %v816
  %v896 = vpack.c.b16 %v819, %v818
  %v897 = vpack.c.b16 %v821, %v820
  %v898 = vpack.c.b16 %v823, %v822
  %v899 = vpack.c.b16 %v825, %v824
  %v900 = vpack.c.b16 %v827, %v826
  %v901 = vpack.c.b16 %v829, %v828
  %974 = vmatprep.subr.bf16.mxu0 0
  %975 = vmatpush1.bf16.msra.mxu0 %v830
  %976 = vmatprep.subr.bf16.mxu0 0
  %977 = vmatpush1.bf16.msra.mxu0 %v831
  %978 = vmatprep.subr.bf16.mxu0 0
  %979 = vmatpush1.bf16.msra.mxu0 %v832
  %980 = vmatprep.subr.bf16.mxu0 0
  %981 = vmatpush1.bf16.msra.mxu0 %v833
  %982 = vmatprep.subr.bf16.mxu0 0
  %983 = vmatpush1.bf16.msra.mxu0 %v834
  %984 = vmatprep.subr.bf16.mxu0 0
  %985 = vmatpush1.bf16.msra.mxu0 %v835
  %986 = vmatprep.subr.bf16.mxu0 0
  %987 = vmatpush1.bf16.msra.mxu0 %v836
  %988 = vmatprep.subr.bf16.mxu0 0
  %989 = vmatpush1.bf16.msra.mxu0 %v837
  %990 = vmatprep.subr.bf16.mxu0 0
  %991 = vmatpush1.bf16.msra.mxu0 %v838
  %992 = vmatprep.subr.bf16.mxu0 0
  %993 = vmatpush1.bf16.msra.mxu0 %v839
  %994 = vmatprep.subr.bf16.mxu0 0
  %995 = vmatpush1.bf16.msra.mxu0 %v840
  %996 = vmatprep.subr.bf16.mxu0 0
  %997 = vmatpush1.bf16.msra.mxu0 %v841
  %998 = vmatprep.subr.bf16.mxu0 0
  %999 = vmatpush1.bf16.msra.mxu0 %v842
  %1000 = vmatprep.subr.bf16.mxu0 0
  %1001 = vmatpush1.bf16.msra.mxu0 %v843
  %1002 = vmatprep.subr.bf16.mxu0 0
  %1003 = vmatpush1.bf16.msra.mxu0 %v844
  %1004 = vmatprep.subr.bf16.mxu0 0
  %1005 = vmatpush1.bf16.msra.mxu0 %v845
  %1006 = vmatprep.mubr.bf16.mxu0 %v417
  %1007 = vmatmul.mubr.bf16.gmra.mrb[0].mxu0 %v416
  %v1008 = vpop.f32.mrb[0].mxu0
  %v1009 = vadd.f32 %v232, %v1008
  %v1010 = vpop.f32.mrb[0].mxu0
  %v1011 = vpop.f32.mrb[0].mxu0
  %v1012 = vadd.f32 %v232, %v1011
  %v1013 = vpop.f32.mrb[0].mxu0
  %1014 = vmatprep.mubr.bf16.mxu0 %v426
  %1015 = vmatmul.mubr.bf16.gmra.mrb[0].mxu0 %v425
  %v1016 = vpop.f32.mrb[0].mxu0
  %v1017 = vadd.f32 %v232, %v1016
  %v1018 = vpop.f32.mrb[0].mxu0
  %v1019 = vpop.f32.mrb[0].mxu0
  %v1020 = vadd.f32 %v232, %v1019
  %v1021 = vpop.f32.mrb[0].mxu0
  %1022 = vmatprep.mubr.bf16.mxu0 %v435
  %1023 = vmatmul.mubr.bf16.gmra.mrb[0].mxu0 %v434
  %v1024 = vpop.f32.mrb[0].mxu0
  %v1025 = vadd.f32 %v232, %v1024
  %v1026 = vpop.f32.mrb[0].mxu0
  %v1027 = vpop.f32.mrb[0].mxu0
  %v1028 = vadd.f32 %v232, %v1027
  %v1029 = vpop.f32.mrb[0].mxu0
  %1030 = vmatprep.mubr.bf16.mxu0 %v444
  %1031 = vmatmul.mubr.bf16.gmra.mrb[0].mxu0 %v443
  %v1032 = vpop.f32.mrb[0].mxu0
  %v1033 = vadd.f32 %v232, %v1032
  %v1034 = vpop.f32.mrb[0].mxu0
  %v1035 = vpop.f32.mrb[0].mxu0
  %v1036 = vadd.f32 %v232, %v1035
  %v1037 = vpop.f32.mrb[0].mxu0
  %1038 = vmatprep.mubr.bf16.mxu0 %v453
  %1039 = vmatmul.mubr.bf16.gmra.mrb[0].mxu0 %v452
  %v1040 = vpop.f32.mrb[0].mxu0
  %v1041 = vadd.f32 %v232, %v1040
  %v1042 = vpop.f32.mrb[0].mxu0
  %v1043 = vpop.f32.mrb[0].mxu0
  %v1044 = vadd.f32 %v232, %v1043
  %v1045 = vpop.f32.mrb[0].mxu0
  %1046 = vmatprep.mubr.bf16.mxu0 %v462
  %1047 = vmatmul.mubr.bf16.gmra.mrb[0].mxu0 %v461
  %v1048 = vpop.f32.mrb[0].mxu0
  %v1049 = vadd.f32 %v232, %v1048
  %v1050 = vpop.f32.mrb[0].mxu0
  %v1051 = vpop.f32.mrb[0].mxu0
  %v1052 = vadd.f32 %v232, %v1051
  %v1053 = vpop.f32.mrb[0].mxu0
  %1054 = vmatprep.mubr.bf16.mxu0 %v471
  %1055 = vmatmul.mubr.bf16.gmra.mrb[0].mxu0 %v470
  %v1056 = vpop.f32.mrb[0].mxu0
  %v1057 = vadd.f32 %v232, %v1056
  %v1058 = vpop.f32.mrb[0].mxu0
  %v1059 = vpop.f32.mrb[0].mxu0
  %v1060 = vpop.f32.mrb[0].mxu0
  %1061 = vdwg.mxu0
  %1062 = vmatprep.subr.bf16.mxu0 0
  %1063 = vmatpush1.bf16.msra.mxu0 %v846
  %1064 = vmatprep.subr.bf16.mxu0 0
  %1065 = vmatpush1.bf16.msra.mxu0 %v847
  %1066 = vmatprep.subr.bf16.mxu0 0
  %1067 = vmatpush1.bf16.msra.mxu0 %v848
  %1068 = vmatprep.subr.bf16.mxu0 0
  %1069 = vmatpush1.bf16.msra.mxu0 %v849
  %1070 = vmatprep.subr.bf16.mxu0 0
  %1071 = vmatpush1.bf16.msra.mxu0 %v850
  %1072 = vmatprep.subr.bf16.mxu0 0
  %1073 = vmatpush1.bf16.msra.mxu0 %v851
  %1074 = vmatprep.subr.bf16.mxu0 0
  %1075 = vmatpush1.bf16.msra.mxu0 %v852
  %1076 = vmatprep.subr.bf16.mxu0 0
  %1077 = vmatpush1.bf16.msra.mxu0 %v853
  %1078 = vmatprep.subr.bf16.mxu0 0
  %1079 = vmatpush1.bf16.msra.mxu0 %v854
  %1080 = vmatprep.subr.bf16.mxu0 0
  %1081 = vmatpush1.bf16.msra.mxu0 %v855
  %1082 = vmatprep.subr.bf16.mxu0 0
  %1083 = vmatpush1.bf16.msra.mxu0 %v856
  %1084 = vmatprep.subr.bf16.mxu0 0
  %1085 = vmatpush1.bf16.msra.mxu0 %v857
  %1086 = vmatprep.subr.bf16.mxu0 0
  %1087 = vmatpush1.bf16.msra.mxu0 %v858
  %1088 = vmatprep.subr.bf16.mxu0 0
  %1089 = vmatpush1.bf16.msra.mxu0 %v859
  %1090 = vmatprep.subr.bf16.mxu0 0
  %1091 = vmatpush1.bf16.msra.mxu0 %v860
  %1092 = vmatprep.subr.bf16.mxu0 0
  %1093 = vmatpush1.bf16.msra.mxu0 %v861
  %1094 = vmatprep.mubr.bf16.mxu0 %v419
  %1095 = vmatmul.mubr.bf16.gmra.mrb[0].mxu0 %v418
  %v1096 = vpop.f32.mrb[0].mxu0
  %v1097 = vadd.f32 %v1009, %v1096
  %v1098 = vpop.f32.mrb[0].mxu0
  %v1099 = vpop.f32.mrb[0].mxu0
  %v1100 = vadd.f32 %v1012, %v1099
  %v1101 = vpop.f32.mrb[0].mxu0
  %1102 = vmatprep.mubr.bf16.mxu0 %v428
  %1103 = vmatmul.mubr.bf16.gmra.mrb[0].mxu0 %v427
  %v1104 = vpop.f32.mrb[0].mxu0
  %v1105 = vadd.f32 %v1017, %v1104
  %v1106 = vpop.f32.mrb[0].mxu0
  %v1107 = vpop.f32.mrb[0].mxu0
  %v1108 = vadd.f32 %v1020, %v1107
  %v1109 = vpop.f32.mrb[0].mxu0
  %1110 = vmatprep.mubr.bf16.mxu0 %v437
  %1111 = vmatmul.mubr.bf16.gmra.mrb[0].mxu0 %v436
  %v1112 = vpop.f32.mrb[0].mxu0
  %v1113 = vadd.f32 %v1025, %v1112
  %v1114 = vpop.f32.mrb[0].mxu0
  %v1115 = vpop.f32.mrb[0].mxu0
  %v1116 = vadd.f32 %v1028, %v1115
  %v1117 = vpop.f32.mrb[0].mxu0
  %1118 = vmatprep.mubr.bf16.mxu0 %v446
  %1119 = vmatmul.mubr.bf16.gmra.mrb[0].mxu0 %v445
  %v1120 = vpop.f32.mrb[0].mxu0
  %v1121 = vadd.f32 %v1033, %v1120
  %v1122 = vpop.f32.mrb[0].mxu0
  %v1123 = vpop.f32.mrb[0].mxu0
  %v1124 = vadd.f32 %v1036, %v1123
  %v1125 = vpop.f32.mrb[0].mxu0
  %1126 = vmatprep.mubr.bf16.mxu0 %v455
  %1127 = vmatmul.mubr.bf16.gmra.mrb[0].mxu0 %v454
  %v1128 = vpop.f32.mrb[0].mxu0
  %v1129 = vadd.f32 %v1041, %v1128
  %v1130 = vpop.f32.mrb[0].mxu0
  %v1131 = vpop.f32.mrb[0].mxu0
  %v1132 = vadd.f32 %v1044, %v1131
  %v1133 = vpop.f32.mrb[0].mxu0
  %1134 = vmatprep.mubr.bf16.mxu0 %v464
  %1135 = vmatmul.mubr.bf16.gmra.mrb[0].mxu0 %v463
  %v1136 = vpop.f32.mrb[0].mxu0
  %v1137 = vadd.f32 %v1049, %v1136
  %v1138 = vpop.f32.mrb[0].mxu0
  %v1139 = vpop.f32.mrb[0].mxu0
  %v1140 = vadd.f32 %v1052, %v1139
  %v1141 = vpop.f32.mrb[0].mxu0
  %1142 = vmatprep.mubr.bf16.mxu0 %v473
  %1143 = vmatmul.mubr.bf16.gmra.mrb[0].mxu0 %v472
  %v1144 = vpop.f32.mrb[0].mxu0
  %v1145 = vadd.f32 %v1057, %v1144
  %v1146 = vpop.f32.mrb[0].mxu0
  %v1147 = vpop.f32.mrb[0].mxu0
  %v1148 = vpop.f32.mrb[0].mxu0
  %1149 = vdwg.mxu0
  %1150 = vmatprep.subr.bf16.mxu0 0
  %1151 = vmatpush1.bf16.msra.mxu0 %v862
  %1152 = vmatprep.subr.bf16.mxu0 0
  %1153 = vmatpush1.bf16.msra.mxu0 %v863
  %1154 = vmatprep.subr.bf16.mxu0 0
  %1155 = vmatpush1.bf16.msra.mxu0 %v864
  %1156 = vmatprep.subr.bf16.mxu0 0
  %1157 = vmatpush1.bf16.msra.mxu0 %v865
  %1158 = vmatprep.subr.bf16.mxu0 0
  %1159 = vmatpush1.bf16.msra.mxu0 %v866
  %1160 = vmatprep.subr.bf16.mxu0 0
  %1161 = vmatpush1.bf16.msra.mxu0 %v867
  %1162 = vmatprep.subr.bf16.mxu0 0
  %1163 = vmatpush1.bf16.msra.mxu0 %v868
  %1164 = vmatprep.subr.bf16.mxu0 0
  %1165 = vmatpush1.bf16.msra.mxu0 %v869
  %1166 = vmatprep.subr.bf16.mxu0 0
  %1167 = vmatpush1.bf16.msra.mxu0 %v870
  %1168 = vmatprep.subr.bf16.mxu0 0
  %1169 = vmatpush1.bf16.msra.mxu0 %v871
  %1170 = vmatprep.subr.bf16.mxu0 0
  %1171 = vmatpush1.bf16.msra.mxu0 %v872
  %1172 = vmatprep.subr.bf16.mxu0 0
  %1173 = vmatpush1.bf16.msra.mxu0 %v873
  %1174 = vmatprep.subr.bf16.mxu0 0
  %1175 = vmatpush1.bf16.msra.mxu0 %v874
  %1176 = vmatprep.subr.bf16.mxu0 0
  %1177 = vmatpush1.bf16.msra.mxu0 %v875
  %1178 = vmatprep.subr.bf16.mxu0 0
  %1179 = vmatpush1.bf16.msra.mxu0 %v876
  %1180 = vmatprep.subr.bf16.mxu0 0
  %1181 = vmatpush1.bf16.msra.mxu0 %v877
  %1182 = vmatprep.mubr.bf16.mxu0 %v421
  %1183 = vmatmul.mubr.bf16.gmra.mrb[0].mxu0 %v420
  %v1184 = vpop.f32.mrb[0].mxu0
  %v1185 = vadd.f32 %v1097, %v1184
  %v1186 = vpop.f32.mrb[0].mxu0
  %v1187 = vpop.f32.mrb[0].mxu0
  %v1188 = vadd.f32 %v1100, %v1187
  %v1189 = vpop.f32.mrb[0].mxu0
  %1190 = vmatprep.mubr.bf16.mxu0 %v430
  %1191 = vmatmul.mubr.bf16.gmra.mrb[0].mxu0 %v429
  %v1192 = vpop.f32.mrb[0].mxu0
  %v1193 = vadd.f32 %v1105, %v1192
  %v1194 = vpop.f32.mrb[0].mxu0
  %v1195 = vpop.f32.mrb[0].mxu0
  %v1196 = vadd.f32 %v1108, %v1195
  %v1197 = vpop.f32.mrb[0].mxu0
  %1198 = vmatprep.mubr.bf16.mxu0 %v439
  %1199 = vmatmul.mubr.bf16.gmra.mrb[0].mxu0 %v438
  %v1200 = vpop.f32.mrb[0].mxu0
  %v1201 = vadd.f32 %v1113, %v1200
  %v1202 = vpop.f32.mrb[0].mxu0
  %v1203 = vpop.f32.mrb[0].mxu0
  %v1204 = vadd.f32 %v1116, %v1203
  %v1205 = vpop.f32.mrb[0].mxu0
  %1206 = vmatprep.mubr.bf16.mxu0 %v448
  %1207 = vmatmul.mubr.bf16.gmra.mrb[0].mxu0 %v447
  %v1208 = vpop.f32.mrb[0].mxu0
  %v1209 = vadd.f32 %v1121, %v1208
  %v1210 = vpop.f32.mrb[0].mxu0
  %v1211 = vpop.f32.mrb[0].mxu0
  %v1212 = vadd.f32 %v1124, %v1211
  %v1213 = vpop.f32.mrb[0].mxu0
  %1214 = vmatprep.mubr.bf16.mxu0 %v457
  %1215 = vmatmul.mubr.bf16.gmra.mrb[0].mxu0 %v456
  %v1216 = vpop.f32.mrb[0].mxu0
  %v1217 = vadd.f32 %v1129, %v1216
  %v1218 = vpop.f32.mrb[0].mxu0
  %v1219 = vpop.f32.mrb[0].mxu0
  %v1220 = vadd.f32 %v1132, %v1219
  %v1221 = vpop.f32.mrb[0].mxu0
  %1222 = vmatprep.mubr.bf16.mxu0 %v466
  %1223 = vmatmul.mubr.bf16.gmra.mrb[0].mxu0 %v465
  %v1224 = vpop.f32.mrb[0].mxu0
  %v1225 = vadd.f32 %v1137, %v1224
  %v1226 = vpop.f32.mrb[0].mxu0
  %v1227 = vpop.f32.mrb[0].mxu0
  %v1228 = vadd.f32 %v1140, %v1227
  %v1229 = vpop.f32.mrb[0].mxu0
  %1230 = vmatprep.mubr.bf16.mxu0 %v475
  %1231 = vmatmul.mubr.bf16.gmra.mrb[0].mxu0 %v474
  %v1232 = vpop.f32.mrb[0].mxu0
  %v1233 = vadd.f32 %v1145, %v1232
  %v1234 = vpop.f32.mrb[0].mxu0
  %v1235 = vpop.f32.mrb[0].mxu0
  %v1236 = vpop.f32.mrb[0].mxu0
  %1237 = vdwg.mxu0
  %1238 = vmatprep.subr.bf16.mxu0 0
  %1239 = vmatpush1.bf16.msra.mxu0 %v878
  %1240 = vmatprep.subr.bf16.mxu0 0
  %1241 = vmatpush1.bf16.msra.mxu0 %v879
  %1242 = vmatprep.subr.bf16.mxu0 0
  %1243 = vmatpush1.bf16.msra.mxu0 %v880
  %1244 = vmatprep.subr.bf16.mxu0 0
  %1245 = vmatpush1.bf16.msra.mxu0 %v881
  %1246 = vmatprep.subr.bf16.mxu0 0
  %1247 = vmatpush1.bf16.msra.mxu0 %v882
  %1248 = vmatprep.subr.bf16.mxu0 0
  %1249 = vmatpush1.bf16.msra.mxu0 %v883
  %1250 = vmatprep.subr.bf16.mxu0 0
  %1251 = vmatpush1.bf16.msra.mxu0 %v884
  %1252 = vmatprep.subr.bf16.mxu0 0
  %1253 = vmatpush1.bf16.msra.mxu0 %v885
  %1254 = vmatprep.subr.bf16.mxu0 0
  %1255 = vmatpush1.bf16.msra.mxu0 %v886
  %1256 = vmatprep.subr.bf16.mxu0 0
  %1257 = vmatpush1.bf16.msra.mxu0 %v887
  %1258 = vmatprep.subr.bf16.mxu0 0
  %1259 = vmatpush1.bf16.msra.mxu0 %v888
  %1260 = vmatprep.subr.bf16.mxu0 0
  %1261 = vmatpush1.bf16.msra.mxu0 %v889
  %1262 = vmatprep.subr.bf16.mxu0 0
  %1263 = vmatpush1.bf16.msra.mxu0 %v890
  %1264 = vmatprep.subr.bf16.mxu0 0
  %1265 = vmatpush1.bf16.msra.mxu0 %v891
  %1266 = vmatprep.subr.bf16.mxu0 0
  %1267 = vmatpush1.bf16.msra.mxu0 %v892
  %1268 = vmatprep.subr.bf16.mxu0 0
  %1269 = vmatpush1.bf16.msra.mxu0 %v893
  %1270 = vmatprep.mubr.bf16.mxu0 %v423
  %1271 = vmatmul.mubr.bf16.gmra.mrb[0].mxu0 %v422
  %v1272 = vpop.f32.mrb[0].mxu0
  %v1273 = vadd.f32 %v1185, %v1272
  %v1274 = vpop.f32.mrb[0].mxu0
  %v1275 = vpop.f32.mrb[0].mxu0
  %v1276 = vadd.f32 %v1188, %v1275
  %v1277 = vpop.f32.mrb[0].mxu0
  %1278 = vmatprep.mubr.bf16.mxu0 %v432
  %1279 = vmatmul.mubr.bf16.gmra.mrb[0].mxu0 %v431
  %v1280 = vpop.f32.mrb[0].mxu0
  %v1281 = vadd.f32 %v1193, %v1280
  %v1282 = vpop.f32.mrb[0].mxu0
  %v1283 = vpop.f32.mrb[0].mxu0
  %v1284 = vadd.f32 %v1196, %v1283
  %v1285 = vpop.f32.mrb[0].mxu0
  %1286 = vmatprep.mubr.bf16.mxu0 %v441
  %1287 = vmatmul.mubr.bf16.gmra.mrb[0].mxu0 %v440
  %v1288 = vpop.f32.mrb[0].mxu0
  %v1289 = vadd.f32 %v1201, %v1288
  %v1290 = vpop.f32.mrb[0].mxu0
  %v1291 = vpop.f32.mrb[0].mxu0
  %v1292 = vadd.f32 %v1204, %v1291
  %v1293 = vpop.f32.mrb[0].mxu0
  %1294 = vmatprep.mubr.bf16.mxu0 %v450
  %1295 = vmatmul.mubr.bf16.gmra.mrb[0].mxu0 %v449
  %v1296 = vpop.f32.mrb[0].mxu0
  %v1297 = vadd.f32 %v1209, %v1296
  %v1298 = vpop.f32.mrb[0].mxu0
  %v1299 = vpop.f32.mrb[0].mxu0
  %v1300 = vadd.f32 %v1212, %v1299
  %v1301 = vpop.f32.mrb[0].mxu0
  %1302 = vmatprep.mubr.bf16.mxu0 %v459
  %1303 = vmatmul.mubr.bf16.gmra.mrb[0].mxu0 %v458
  %v1304 = vpop.f32.mrb[0].mxu0
  %v1305 = vadd.f32 %v1217, %v1304
  %v1306 = vpop.f32.mrb[0].mxu0
  %v1307 = vpop.f32.mrb[0].mxu0
  %v1308 = vadd.f32 %v1220, %v1307
  %v1309 = vpop.f32.mrb[0].mxu0
  %1310 = vmatprep.mubr.bf16.mxu0 %v468
  %1311 = vmatmul.mubr.bf16.gmra.mrb[0].mxu0 %v467
  %v1312 = vpop.f32.mrb[0].mxu0
  %v1313 = vadd.f32 %v1225, %v1312
  %v1314 = vpop.f32.mrb[0].mxu0
  %v1315 = vpop.f32.mrb[0].mxu0
  %v1316 = vadd.f32 %v1228, %v1315
  %v1317 = vpop.f32.mrb[0].mxu0
  %1318 = vmatprep.mubr.bf16.mxu0 %v477
  %1319 = vmatmul.mubr.bf16.gmra.mrb[0].mxu0 %v476
  %v1320 = vpop.f32.mrb[0].mxu0
  %v1321 = vadd.f32 %v1233, %v1320
  %v1322 = vpop.f32.mrb[0].mxu0
  %v1323 = vpop.f32.mrb[0].mxu0
  %v1324 = vpop.f32.mrb[0].mxu0
  %1325 = vdwg.mxu0
  %1326 = vmatprep.subr.bf16.mxu0 0
  %1327 = vmatpush1.bf16.msra.mxu0 %v894
  %1328 = vmatprep.subr.bf16.mxu0 0
  %1329 = vmatpush1.bf16.msra.mxu0 %v895
  %1330 = vmatprep.subr.bf16.mxu0 0
  %1331 = vmatpush1.bf16.msra.mxu0 %v896
  %1332 = vmatprep.subr.bf16.mxu0 0
  %1333 = vmatpush1.bf16.msra.mxu0 %v897
  %1334 = vmatprep.subr.bf16.mxu0 0
  %1335 = vmatpush1.bf16.msra.mxu0 %v898
  %1336 = vmatprep.subr.bf16.mxu0 0
  %1337 = vmatpush1.bf16.msra.mxu0 %v899
  %1338 = vmatprep.subr.bf16.mxu0 0
  %1339 = vmatpush1.bf16.msra.mxu0 %v900
  %1340 = vmatprep.subr.bf16.mxu0 0
  %1341 = vmatpush1.bf16.msra.mxu0 %v901
  %1342 = vmatprep.subr.bf16.mxu0 0
  %1343 = vmatpush1.bf16.msra.mxu0 0
  %1344 = vmatprep.subr.bf16.mxu0 0
  %1345 = vmatpush1.bf16.msra.mxu0 0
  %1346 = vmatprep.subr.bf16.mxu0 0
  %1347 = vmatpush1.bf16.msra.mxu0 0
  %1348 = vmatprep.subr.bf16.mxu0 0
  %1349 = vmatpush1.bf16.msra.mxu0 0
  %1350 = vmatprep.subr.bf16.mxu0 0
  %1351 = vmatpush1.bf16.msra.mxu0 0
  %1352 = vmatprep.subr.bf16.mxu0 0
  %1353 = vmatpush1.bf16.msra.mxu0 0
  %1354 = vmatprep.subr.bf16.mxu0 0
  %1355 = vmatpush1.bf16.msra.mxu0 0
  %1356 = vmatprep.subr.bf16.mxu0 0
  %1357 = vmatpush1.bf16.msra.mxu0 0
  %1358 = vmatprep.mubr.bf16.mxu0 0
  %1359 = vmatmul.mubr.bf16.gmra.mrb[0].mxu0 %v424
  %v1360 = vpop.f32.mrb[0].mxu0
  %v1361 = vadd.f32 %v1273, %v1360
  %v1362 = vpop.f32.mrb[0].mxu0
  %v1363 = vpop.f32.mrb[0].mxu0
  %v1364 = vadd.f32 %v1276, %v1363
  %v1365 = vpop.f32.mrb[0].mxu0
  %1366 = vmatprep.mubr.bf16.mxu0 0
  %1367 = vmatmul.mubr.bf16.gmra.mrb[0].mxu0 %v433
  %v1368 = vpop.f32.mrb[0].mxu0
  %v1369 = vadd.f32 %v1281, %v1368
  %v1370 = vpop.f32.mrb[0].mxu0
  %v1371 = vpop.f32.mrb[0].mxu0
  %v1372 = vadd.f32 %v1284, %v1371
  %v1373 = vpop.f32.mrb[0].mxu0
  %1374 = vmatprep.mubr.bf16.mxu0 0
  %1375 = vmatmul.mubr.bf16.gmra.mrb[0].mxu0 %v442
  %v1376 = vpop.f32.mrb[0].mxu0
  %v1377 = vadd.f32 %v1289, %v1376
  %v1378 = vpop.f32.mrb[0].mxu0
  %v1379 = vpop.f32.mrb[0].mxu0
  %v1380 = vadd.f32 %v1292, %v1379
  %v1381 = vpop.f32.mrb[0].mxu0
  %1382 = vmatprep.mubr.bf16.mxu0 0
  %1383 = vmatmul.mubr.bf16.gmra.mrb[0].mxu0 %v451
  %v1384 = vpop.f32.mrb[0].mxu0
  %v1385 = vadd.f32 %v1297, %v1384
  %v1386 = vpop.f32.mrb[0].mxu0
  %v1387 = vpop.f32.mrb[0].mxu0
  %v1388 = vadd.f32 %v1300, %v1387
  %v1389 = vpop.f32.mrb[0].mxu0
  %1390 = vmatprep.mubr.bf16.mxu0 0
  %1391 = vmatmul.mubr.bf16.gmra.mrb[0].mxu0 %v460
  %v1392 = vpop.f32.mrb[0].mxu0
  %v1393 = vadd.f32 %v1305, %v1392
  %v1394 = vpop.f32.mrb[0].mxu0
  %v1395 = vpop.f32.mrb[0].mxu0
  %v1396 = vadd.f32 %v1308, %v1395
  %v1397 = vpop.f32.mrb[0].mxu0
  %1398 = vmatprep.mubr.bf16.mxu0 0
  %1399 = vmatmul.mubr.bf16.gmra.mrb[0].mxu0 %v469
  %v1400 = vpop.f32.mrb[0].mxu0
  %v1401 = vadd.f32 %v1313, %v1400
  %v1402 = vpop.f32.mrb[0].mxu0
  %v1403 = vpop.f32.mrb[0].mxu0
  %v1404 = vadd.f32 %v1316, %v1403
  %v1405 = vpop.f32.mrb[0].mxu0
  %1406 = vmatprep.mubr.bf16.mxu0 0
  %1407 = vmatmul.mubr.bf16.gmra.mrb[0].mxu0 %v478
  %v1408 = vpop.f32.mrb[0].mxu0
  %v1409 = vadd.f32 %v1321, %v1408
  %v1410 = vpop.f32.mrb[0].mxu0
  %v1411 = vpop.f32.mrb[0].mxu0
  %v1412 = vpop.f32.mrb[0].mxu0
  %1413 = vdwg.mxu0
  %v1414 = vld [vmem:[%s3] sm:$0xf]
  %v1415 = vld [vmem:[%s3 + $0x4] sm:$0xf]
  %v1416 = vld [vmem:[%s3 + $0x8] sm:$0xf]
  %v1417 = vld [vmem:[%s3 + $0xc] sm:$0xf]
  %v1418 = vld [vmem:[%s3 + $0x10] sm:$0xf]
  %v1419 = vld [vmem:[%s3 + $0x14] sm:$0xf]
  %v1420 = vld [vmem:[%s3 + $0x18] sm:$0xf]
  %v1421 = vld [vmem:[%s3 + $0x1c] sm:$0xf]
  %v1422 = vld [vmem:[%s3 + $0x20] sm:$0xf]
  %v1423 = vld [vmem:[%s3 + $0x24] sm:$0xf]
  %v1424 = vld [vmem:[%s3 + $0x28] sm:$0xf]
  %v1425 = vld [vmem:[%s3 + $0x2c] sm:$0xf]
  %v1426 = vld [vmem:[%s3 + $0x30] sm:$0x1]
  %v1427 = vunpack.c.l.bf16 %v1414
  %v1428 = vunpack.c.l.bf16 %v1415
  %v1429 = vunpack.c.l.bf16 %v1416
  %v1430 = vunpack.c.l.bf16 %v1417
  %v1431 = vunpack.c.l.bf16 %v1418
  %v1432 = vunpack.c.l.bf16 %v1419
  %v1433 = vunpack.c.l.bf16 %v1420
  %v1434 = vunpack.c.l.bf16 %v1421
  %v1435 = vunpack.c.l.bf16 %v1422
  %v1436 = vunpack.c.l.bf16 %v1423
  %v1437 = vunpack.c.l.bf16 %v1424
  %v1438 = vunpack.c.l.bf16 %v1425
  %v1439 = vunpack.c.l.bf16 %v1426
  %v1440 = vadd.f32 %v1361, %v1427
  %v1441 = vadd.f32 %v1364, %v1428
  %v1442 = vadd.f32 %v1369, %v1429
  %v1443 = vadd.f32 %v1372, %v1430
  %v1444 = vadd.f32 %v1377, %v1431
  %v1445 = vadd.f32 %v1380, %v1432
  %v1446 = vadd.f32 %v1385, %v1433
  %v1447 = vadd.f32 %v1388, %v1434
  %v1448 = vadd.f32 %v1393, %v1435
  %v1449 = vadd.f32 %v1396, %v1436
  %v1450 = vadd.f32 %v1401, %v1437
  %v1451 = vadd.f32 %v1404, %v1438
  %v1452 = vadd.f32 %v1409, %v1439
  %v1453 = vmax.f32 %v1440, 0.0
  %v1454 = vmax.f32 %v1441, 0.0
  %v1455 = vmax.f32 %v1442, 0.0
  %v1456 = vmax.f32 %v1443, 0.0
  %v1457 = vmax.f32 %v1444, 0.0
  %v1458 = vmax.f32 %v1445, 0.0
  %v1459 = vmax.f32 %v1446, 0.0
  %v1460 = vmax.f32 %v1447, 0.0
  %v1461 = vmax.f32 %v1448, 0.0
  %v1462 = vmax.f32 %v1449, 0.0
  %v1463 = vmax.f32 %v1450, 0.0
  %v1464 = vmax.f32 %v1451, 0.0
  %v1465 = vmax.f32 %v1452, 0.0
  %v1466 = vpack.c.bf16 %v1454, %v1453
  %v1467 = vpack.c.bf16 %v1456, %v1455
  %v1468 = vpack.c.bf16 %v1458, %v1457
  %v1469 = vpack.c.bf16 %v1460, %v1459
  %v1470 = vpack.c.bf16 %v1462, %v1461
  %v1471 = vpack.c.bf16 %v1464, %v1463
  %v1472 = vpack.c.bf16 %v1465, %v1465
  %v1480 = vunpack.c.l.b16 %v1466
  %v1481 = vunpack.c.h.b16 %v1466
  %v1482 = vunpack.c.l.b16 %v1467
  %v1483 = vunpack.c.h.b16 %v1467
  %v1484 = vunpack.c.l.b16 %v1468
  %v1485 = vunpack.c.h.b16 %v1468
  %v1486 = vunpack.c.l.b16 %v1469
  %v1487 = vunpack.c.h.b16 %v1469
  %v1488 = vunpack.c.l.b16 %v1470
  %v1489 = vunpack.c.h.b16 %v1470
  %v1490 = vunpack.c.l.b16 %v1471
  %v1491 = vunpack.c.h.b16 %v1471
  %v1492 = vunpack.c.l.b16 %v1472
  %v1493 = vpack.c.b16 %v1480, %v1480
  %v1494 = vpack.c.b16 %v1481, %v1481
  %v1495 = vpack.c.b16 %v1482, %v1482
  %v1496 = vpack.c.b16 %v1483, %v1483
  %v1497 = vpack.c.b16 %v1484, %v1484
  %v1498 = vpack.c.b16 %v1485, %v1485
  %v1499 = vpack.c.b16 %v1486, %v1486
  %v1500 = vpack.c.b16 %v1487, %v1487
  %v1501 = vpack.c.b16 %v1488, %v1488
  %v1502 = vpack.c.b16 %v1489, %v1489
  %v1503 = vpack.c.b16 %v1490, %v1490
  %v1504 = vpack.c.b16 %v1491, %v1491
  %v1505 = vpack.c.b16 %v1492, %v1492
  %1519 = vst [vmem:[%s4] sm:$0xf] %v1493
  %1520 = vst [vmem:[%s4 + $0x4] sm:$0xf] %v1494
  %1521 = vst [vmem:[%s4 + $0x8] sm:$0xf] %v1495
  %1522 = vst [vmem:[%s4 + $0xc] sm:$0xf] %v1496
  %1523 = vst [vmem:[%s4 + $0x10] sm:$0xf] %v1497
  %1524 = vst [vmem:[%s4 + $0x14] sm:$0xf] %v1498
  %1525 = vst [vmem:[%s4 + $0x18] sm:$0xf] %v1499
  %1526 = vst [vmem:[%s4 + $0x1c] sm:$0xf] %v1500
  %1527 = vst [vmem:[%s4 + $0x20] sm:$0xf] %v1501
  %1528 = vst [vmem:[%s4 + $0x24] sm:$0xf] %v1502
  %1529 = vst [vmem:[%s4 + $0x28] sm:$0xf] %v1503
  %1530 = vst [vmem:[%s4 + $0x2c] sm:$0xf] %v1504
  %1531 = vst [vmem:[%s4 + $0x30] sm:$0x1] %v1505
  // Predicated region
  $region18: #{forward.8} parent=0 // pred_check
    _
  $region19: #{forward.8} parent=0 // pred_check_branch
    %1533 = sbr.rel (0) target = $region21
  $region20: #{forward.8} parent=0 // pred_region
    _
  $region21: #{forward.8} parent=0 // pred_fallthru
    _
  // Predicated region
  $region22: #{forward.8} parent=0 // pred_check
    _
  $region23: #{forward.8} parent=0 // pred_check_branch
    %1535 = sbr.rel (0) target = $region25
  $region24: #{forward.8} parent=0 // pred_region
    _
  $region25: #{forward.8} parent=0 // pred_fallthru
    _

// kernel: forward.9
$region0: #{forward.9}
  #allocation0 [shape = 'u32[]', space=smem, size = 0x4, offset = 0x4, fixed_abs, tag = 'smem constant byte address 0x4 - core index']
  #allocation1 [shape = 'u32[144,128]{1,0:T(1,128)}', space=vmem, size = 0x12000, scoped, tag = 'internal scratch']
  %s0 = inlined_call_operand.vmem [shape: bf16[2,1024], index: 0, kind: input, shape index: {}]
  %s1 = inlined_call_operand.vmem [shape: bf16[1024,128], index: 1, kind: input, shape index: {}]
  %s2 = inlined_call_operand.vmem [shape: f32[1,128], index: 2, kind: input, shape index: {}]
  %s3 = inlined_call_operand.vmem [shape: f32[2,128], index: 3, kind: input, shape index: {}]
  %s4 = inlined_call_operand.vmem [shape: f32[128,128], index: 4, kind: input, shape index: {}]
  %s5 = inlined_call_operand.vmem [shape: f32[128,128], index: 5, kind: input, shape index: {}]
  %s6 = inlined_call_operand.vmem [shape: f32[1,128], index: 6, kind: input, shape index: {}]
  %s7 = inlined_call_operand.vmem [shape: f32[2,128], index: 7, kind: output, shape index: {}]
  %s8 = sld [smem:[#allocation0]]
  $region38: #{forward.9} parent=0
    _
  %s10 = ssub.s32 1, %s8
  %s11 = scalar_select 0, %s10, %s8
  // Predicated region
  $region2: #{forward.9} parent=0 // pred_check
    _
  $region3: #{forward.9} parent=0 // pred_check_branch
    %13 = sbr.rel (0) target = $region5
  $region4: #{forward.9} parent=0 // pred_region
    _
  $region5: #{forward.9} parent=0 // pred_fallthru
    _
  // Predicated region
  $region6: #{forward.9} parent=0 // pred_check
    _
  $region7: #{forward.9} parent=0 // pred_check_branch
    %15 = sbr.rel (0) target = $region9
  $region8: #{forward.9} parent=0 // pred_region
    _
  $region9: #{forward.9} parent=0 // pred_fallthru
    _
  // Predicated region
  $region10: #{forward.9} parent=0 // pred_check
    _
  $region11: #{forward.9} parent=0 // pred_check_branch
    %17 = sbr.rel (0) target = $region13
  $region12: #{forward.9} parent=0 // pred_region
    _
  $region13: #{forward.9} parent=0 // pred_fallthru
    _
  // Predicated region
  $region14: #{forward.9} parent=0 // pred_check
    _
  $region15: #{forward.9} parent=0 // pred_check_branch
    %19 = sbr.rel (0) target = $region17
  $region16: #{forward.9} parent=0 // pred_region
    _
  $region17: #{forward.9} parent=0 // pred_fallthru
    _
  // Predicated region
  $region18: #{forward.9} parent=0 // pred_check
    _
  $region19: #{forward.9} parent=0 // pred_check_branch
    %21 = sbr.rel (0) target = $region21
  $region20: #{forward.9} parent=0 // pred_region
    _
  $region21: #{forward.9} parent=0 // pred_fallthru
    _
  // Predicated region
  $region22: #{forward.9} parent=0 // pred_check
    _
  $region23: #{forward.9} parent=0 // pred_check_branch
    %23 = sbr.rel (0) target = $region25
  $region24: #{forward.9} parent=0 // pred_region
    _
  $region25: #{forward.9} parent=0 // pred_fallthru
    _
  // Predicated region
  $region26: #{forward.9} parent=0 // pred_check
    _
  $region27: #{forward.9} parent=0 // pred_check_branch
    %25 = sbr.rel (0) target = $region29
  $region28: #{forward.9} parent=0 // pred_region
    _
  $region29: #{forward.9} parent=0 // pred_fallthru
    _
  %v27 = vld [vmem:[%s0] sm:$0xff]
  %v28 = vld [vmem:[%s1] sm:$0xf]
  %v29 = vld [vmem:[%s1 + $0x4] sm:$0xf]
  %v30 = vld [vmem:[%s1 + $0x8] sm:$0xf]
  %v31 = vld [vmem:[%s1 + $0xc] sm:$0xf]
  %v32 = vld [vmem:[%s1 + $0x10] sm:$0xf]
  %v33 = vld [vmem:[%s1 + $0x14] sm:$0xf]
  %v34 = vld [vmem:[%s1 + $0x18] sm:$0xf]
  %v35 = vld [vmem:[%s1 + $0x1c] sm:$0xf]
  %v36 = vld [vmem:[%s1 + $0x20] sm:$0xf]
  %v37 = vld [vmem:[%s1 + $0x24] sm:$0xf]
  %v38 = vld [vmem:[%s1 + $0x28] sm:$0xf]
  %v39 = vld [vmem:[%s1 + $0x2c] sm:$0xf]
  %v40 = vld [vmem:[%s1 + $0x30] sm:$0xf]
  %v41 = vld [vmem:[%s1 + $0x34] sm:$0xf]
  %v42 = vld [vmem:[%s1 + $0x38] sm:$0xf]
  %v43 = vld [vmem:[%s1 + $0x3c] sm:$0xf]
  %v44 = vld [vmem:[%s1 + $0x40] sm:$0xf]
  %v45 = vld [vmem:[%s1 + $0x44] sm:$0xf]
  %v46 = vld [vmem:[%s1 + $0x48] sm:$0xf]
  %v47 = vld [vmem:[%s1 + $0x4c] sm:$0xf]
  %v48 = vld [vmem:[%s1 + $0x50] sm:$0xf]
  %v49 = vld [vmem:[%s1 + $0x54] sm:$0xf]
  %v50 = vld [vmem:[%s1 + $0x58] sm:$0xf]
  %v51 = vld [vmem:[%s1 + $0x5c] sm:$0xf]
  %v52 = vld [vmem:[%s1 + $0x60] sm:$0xf]
  %v53 = vld [vmem:[%s1 + $0x64] sm:$0xf]
  %v54 = vld [vmem:[%s1 + $0x68] sm:$0xf]
  %v55 = vld [vmem:[%s1 + $0x6c] sm:$0xf]
  %v56 = vld [vmem:[%s1 + $0x70] sm:$0xf]
  %v57 = vld [vmem:[%s1 + $0x74] sm:$0xf]
  %v58 = vld [vmem:[%s1 + $0x78] sm:$0xf]
  %v59 = vld [vmem:[%s1 + $0x7c] sm:$0xf]
  %v60 = vld [vmem:[%s1 + $0x80] sm:$0xf]
  %v61 = vld [vmem:[%s1 + $0x84] sm:$0xf]
  %v62 = vld [vmem:[%s1 + $0x88] sm:$0xf]
  %v63 = vld [vmem:[%s1 + $0x8c] sm:$0xf]
  %v64 = vld [vmem:[%s1 + $0x90] sm:$0xf]
  %v65 = vld [vmem:[%s1 + $0x94] sm:$0xf]
  %v66 = vld [vmem:[%s1 + $0x98] sm:$0xf]
  %v67 = vld [vmem:[%s1 + $0x9c] sm:$0xf]
  %v68 = vld [vmem:[%s1 + $0xa0] sm:$0xf]
  %v69 = vld [vmem:[%s1 + $0xa4] sm:$0xf]
  %v70 = vld [vmem:[%s1 + $0xa8] sm:$0xf]
  %v71 = vld [vmem:[%s1 + $0xac] sm:$0xf]
  %v72 = vld [vmem:[%s1 + $0xb0] sm:$0xf]
  %v73 = vld [vmem:[%s1 + $0xb4] sm:$0xf]
  %v74 = vld [vmem:[%s1 + $0xb8] sm:$0xf]
  %v75 = vld [vmem:[%s1 + $0xbc] sm:$0xf]
  %v76 = vld [vmem:[%s1 + $0xc0] sm:$0xf]
  %v77 = vld [vmem:[%s1 + $0xc4] sm:$0xf]
  %v78 = vld [vmem:[%s1 + $0xc8] sm:$0xf]
  %v79 = vld [vmem:[%s1 + $0xcc] sm:$0xf]
  %v80 = vld [vmem:[%s1 + $0xd0] sm:$0xf]
  %v81 = vld [vmem:[%s1 + $0xd4] sm:$0xf]
  %v82 = vld [vmem:[%s1 + $0xd8] sm:$0xf]
  %v83 = vld [vmem:[%s1 + $0xdc] sm:$0xf]
  %v84 = vld [vmem:[%s1 + $0xe0] sm:$0xf]
  %v85 = vld [vmem:[%s1 + $0xe4] sm:$0xf]
  %v86 = vld [vmem:[%s1 + $0xe8] sm:$0xf]
  %v87 = vld [vmem:[%s1 + $0xec] sm:$0xf]
  %v88 = vld [vmem:[%s1 + $0xf0] sm:$0xf]
  %v89 = vld [vmem:[%s1 + $0xf4] sm:$0xf]
  %v90 = vld [vmem:[%s1 + $0xf8] sm:$0xf]
  %v91 = vld [vmem:[%s1 + $0xfc] sm:$0xf]
  %v92 = vld [vmem:[%s1 + $0x100] sm:$0xf]
  %v93 = vld [vmem:[%s1 + $0x104] sm:$0xf]
  %v94 = vld [vmem:[%s1 + $0x108] sm:$0xf]
  %v95 = vld [vmem:[%s1 + $0x10c] sm:$0xf]
  %v96 = vld [vmem:[%s1 + $0x110] sm:$0xf]
  %v97 = vld [vmem:[%s1 + $0x114] sm:$0xf]
  %v98 = vld [vmem:[%s1 + $0x118] sm:$0xf]
  %v99 = vld [vmem:[%s1 + $0x11c] sm:$0xf]
  %v100 = vld [vmem:[%s1 + $0x120] sm:$0xf]
  %v101 = vld [vmem:[%s1 + $0x124] sm:$0xf]
  %v102 = vld [vmem:[%s1 + $0x128] sm:$0xf]
  %v103 = vld [vmem:[%s1 + $0x12c] sm:$0xf]
  %v104 = vld [vmem:[%s1 + $0x130] sm:$0xf]
  %v105 = vld [vmem:[%s1 + $0x134] sm:$0xf]
  %v106 = vld [vmem:[%s1 + $0x138] sm:$0xf]
  %v107 = vld [vmem:[%s1 + $0x13c] sm:$0xf]
  %v108 = vld [vmem:[%s1 + $0x140] sm:$0xf]
  %v109 = vld [vmem:[%s1 + $0x144] sm:$0xf]
  %v110 = vld [vmem:[%s1 + $0x148] sm:$0xf]
  %v111 = vld [vmem:[%s1 + $0x14c] sm:$0xf]
  %v112 = vld [vmem:[%s1 + $0x150] sm:$0xf]
  %v113 = vld [vmem:[%s1 + $0x154] sm:$0xf]
  %v114 = vld [vmem:[%s1 + $0x158] sm:$0xf]
  %v115 = vld [vmem:[%s1 + $0x15c] sm:$0xf]
  %v116 = vld [vmem:[%s1 + $0x160] sm:$0xf]
  %v117 = vld [vmem:[%s1 + $0x164] sm:$0xf]
  %v118 = vld [vmem:[%s1 + $0x168] sm:$0xf]
  %v119 = vld [vmem:[%s1 + $0x16c] sm:$0xf]
  %v120 = vld [vmem:[%s1 + $0x170] sm:$0xf]
  %v121 = vld [vmem:[%s1 + $0x174] sm:$0xf]
  %v122 = vld [vmem:[%s1 + $0x178] sm:$0xf]
  %v123 = vld [vmem:[%s1 + $0x17c] sm:$0xf]
  %v124 = vld [vmem:[%s1 + $0x180] sm:$0xf]
  %v125 = vld [vmem:[%s1 + $0x184] sm:$0xf]
  %v126 = vld [vmem:[%s1 + $0x188] sm:$0xf]
  %v127 = vld [vmem:[%s1 + $0x18c] sm:$0xf]
  %v128 = vld [vmem:[%s1 + $0x190] sm:$0xf]
  %v129 = vld [vmem:[%s1 + $0x194] sm:$0xf]
  %v130 = vld [vmem:[%s1 + $0x198] sm:$0xf]
  %v131 = vld [vmem:[%s1 + $0x19c] sm:$0xf]
  %v132 = vld [vmem:[%s1 + $0x1a0] sm:$0xf]
  %v133 = vld [vmem:[%s1 + $0x1a4] sm:$0xf]
  %v134 = vld [vmem:[%s1 + $0x1a8] sm:$0xf]
  %v135 = vld [vmem:[%s1 + $0x1ac] sm:$0xf]
  %v136 = vld [vmem:[%s1 + $0x1b0] sm:$0xf]
  %v137 = vld [vmem:[%s1 + $0x1b4] sm:$0xf]
  %v138 = vld [vmem:[%s1 + $0x1b8] sm:$0xf]
  %v139 = vld [vmem:[%s1 + $0x1bc] sm:$0xf]
  %v140 = vld [vmem:[%s1 + $0x1c0] sm:$0xf]
  %v141 = vld [vmem:[%s1 + $0x1c4] sm:$0xf]
  %v142 = vld [vmem:[%s1 + $0x1c8] sm:$0xf]
  %v143 = vld [vmem:[%s1 + $0x1cc] sm:$0xf]
  %v144 = vld [vmem:[%s1 + $0x1d0] sm:$0xf]
  %v145 = vld [vmem:[%s1 + $0x1d4] sm:$0xf]
  %v146 = vld [vmem:[%s1 + $0x1d8] sm:$0xf]
  %v147 = vld [vmem:[%s1 + $0x1dc] sm:$0xf]
  %v148 = vld [vmem:[%s1 + $0x1e0] sm:$0xf]
  %v149 = vld [vmem:[%s1 + $0x1e4] sm:$0xf]
  %v150 = vld [vmem:[%s1 + $0x1e8] sm:$0xf]
  %v151 = vld [vmem:[%s1 + $0x1ec] sm:$0xf]
  %v152 = vld [vmem:[%s1 + $0x1f0] sm:$0xf]
  %v153 = vld [vmem:[%s1 + $0x1f4] sm:$0xf]
  %v154 = vld [vmem:[%s1 + $0x1f8] sm:$0xf]
  %v155 = vld [vmem:[%s1 + $0x1fc] sm:$0xf]
  %v156 = vld [vmem:[%s2] sm:$0x1]
  %v158 = vlaneseq
  %v159 = vshrl.u32 %v158, 7
  %v160 = vsub.s32 0, %v159
  %v161 = vrot.slane %v156, %v160
  %v164 = vcombine.high %v27, %v27
  %v166 = vunpack.c.l.s4 1966171168
  %v167 = vunpack.c.0.s8 %v166
  %v168 = vlaneseq
  %v169 = vshrl.u32 %v168, 7
  %v170 = vsub.s32 %v167, %v169
  %v171 = vrot.slane %v27, %v170
  %v173 = vunpack.c.l.s4 1966171168
  %v174 = vunpack.c.0.s8 %v173
  %v175 = vlaneseq
  %v176 = vshrl.u32 %v175, 7
  %v177 = vsub.s32 %v174, %v176
  %v178 = vrot.slane %v164, %v177
  %v179 = vcombine.high %v171, %v171
  %v180 = vcombine.high %v178, %v178
  %v182 = vunpack.c.l.s4 1966171168
  %v183 = vunpack.c.0.s8 %v182
  %v184 = vlaneseq
  %v185 = vshrl.u32 %v184, 7
  %v186 = vsub.s32 %v183, %v185
  %v187 = vrot.slane %v171, %v186
  %v189 = vunpack.c.l.s4 1966171168
  %v190 = vunpack.c.0.s8 %v189
  %v191 = vlaneseq
  %v192 = vshrl.u32 %v191, 7
  %v193 = vsub.s32 %v190, %v192
  %v194 = vrot.slane %v178, %v193
  %v196 = vunpack.c.l.s4 1966171168
  %v197 = vunpack.c.0.s8 %v196
  %v198 = vlaneseq
  %v199 = vshrl.u32 %v198, 7
  %v200 = vsub.s32 %v197, %v199
  %v201 = vrot.slane %v179, %v200
  %v203 = vunpack.c.l.s4 1966171168
  %v204 = vunpack.c.0.s8 %v203
  %v205 = vlaneseq
  %v206 = vshrl.u32 %v205, 7
  %v207 = vsub.s32 %v204, %v206
  %v208 = vrot.slane %v180, %v207
  %v209 = vcombine.high %v187, %v187
  %v210 = vcombine.high %v194, %v194
  %v211 = vcombine.high %v201, %v201
  %v212 = vcombine.high %v208, %v208
  %v349 = vunpack.c.l.b16 %v28
  %v350 = vunpack.c.l.b16 %v29
  %v351 = vunpack.c.l.b16 %v30
  %v352 = vunpack.c.l.b16 %v31
  %v353 = vunpack.c.l.b16 %v32
  %v354 = vunpack.c.l.b16 %v33
  %v355 = vunpack.c.l.b16 %v34
  %v356 = vunpack.c.l.b16 %v35
  %v357 = vunpack.c.l.b16 %v36
  %v358 = vunpack.c.l.b16 %v37
  %v359 = vunpack.c.l.b16 %v38
  %v360 = vunpack.c.l.b16 %v39
  %v361 = vunpack.c.l.b16 %v40
  %v362 = vunpack.c.l.b16 %v41
  %v363 = vunpack.c.l.b16 %v42
  %v364 = vunpack.c.l.b16 %v43
  %v365 = vunpack.c.l.b16 %v44
  %v366 = vunpack.c.l.b16 %v45
  %v367 = vunpack.c.l.b16 %v46
  %v368 = vunpack.c.l.b16 %v47
  %v369 = vunpack.c.l.b16 %v48
  %v370 = vunpack.c.l.b16 %v49
  %v371 = vunpack.c.l.b16 %v50
  %v372 = vunpack.c.l.b16 %v51
  %v373 = vunpack.c.l.b16 %v52
  %v374 = vunpack.c.l.b16 %v53
  %v375 = vunpack.c.l.b16 %v54
  %v376 = vunpack.c.l.b16 %v55
  %v377 = vunpack.c.l.b16 %v56
  %v378 = vunpack.c.l.b16 %v57
  %v379 = vunpack.c.l.b16 %v58
  %v380 = vunpack.c.l.b16 %v59
  %v381 = vunpack.c.l.b16 %v60
  %v382 = vunpack.c.l.b16 %v61
  %v383 = vunpack.c.l.b16 %v62
  %v384 = vunpack.c.l.b16 %v63
  %v385 = vunpack.c.l.b16 %v64
  %v386 = vunpack.c.l.b16 %v65
  %v387 = vunpack.c.l.b16 %v66
  %v388 = vunpack.c.l.b16 %v67
  %v389 = vunpack.c.l.b16 %v68
  %v390 = vunpack.c.l.b16 %v69
  %v391 = vunpack.c.l.b16 %v70
  %v392 = vunpack.c.l.b16 %v71
  %v393 = vunpack.c.l.b16 %v72
  %v394 = vunpack.c.l.b16 %v73
  %v395 = vunpack.c.l.b16 %v74
  %v396 = vunpack.c.l.b16 %v75
  %v397 = vunpack.c.l.b16 %v76
  %v398 = vunpack.c.l.b16 %v77
  %v399 = vunpack.c.l.b16 %v78
  %v400 = vunpack.c.l.b16 %v79
  %v401 = vunpack.c.l.b16 %v80
  %v402 = vunpack.c.l.b16 %v81
  %v403 = vunpack.c.l.b16 %v82
  %v404 = vunpack.c.l.b16 %v83
  %v405 = vunpack.c.l.b16 %v84
  %v406 = vunpack.c.l.b16 %v85
  %v407 = vunpack.c.l.b16 %v86
  %v408 = vunpack.c.l.b16 %v87
  %v409 = vunpack.c.l.b16 %v88
  %v410 = vunpack.c.l.b16 %v89
  %v411 = vunpack.c.l.b16 %v90
  %v412 = vunpack.c.l.b16 %v91
  %v413 = vunpack.c.l.b16 %v92
  %v414 = vunpack.c.l.b16 %v93
  %v415 = vunpack.c.l.b16 %v94
  %v416 = vunpack.c.l.b16 %v95
  %v417 = vunpack.c.l.b16 %v96
  %v418 = vunpack.c.l.b16 %v97
  %v419 = vunpack.c.l.b16 %v98
  %v420 = vunpack.c.l.b16 %v99
  %v421 = vunpack.c.l.b16 %v100
  %v422 = vunpack.c.l.b16 %v101
  %v423 = vunpack.c.l.b16 %v102
  %v424 = vunpack.c.l.b16 %v103
  %v425 = vunpack.c.l.b16 %v104
  %v426 = vunpack.c.l.b16 %v105
  %v427 = vunpack.c.l.b16 %v106
  %v428 = vunpack.c.l.b16 %v107
  %v429 = vunpack.c.l.b16 %v108
  %v430 = vunpack.c.l.b16 %v109
  %v431 = vunpack.c.l.b16 %v110
  %v432 = vunpack.c.l.b16 %v111
  %v433 = vunpack.c.l.b16 %v112
  %v434 = vunpack.c.l.b16 %v113
  %v435 = vunpack.c.l.b16 %v114
  %v436 = vunpack.c.l.b16 %v115
  %v437 = vunpack.c.l.b16 %v116
  %v438 = vunpack.c.l.b16 %v117
  %v439 = vunpack.c.l.b16 %v118
  %v440 = vunpack.c.l.b16 %v119
  %v441 = vunpack.c.l.b16 %v120
  %v442 = vunpack.c.l.b16 %v121
  %v443 = vunpack.c.l.b16 %v122
  %v444 = vunpack.c.l.b16 %v123
  %v445 = vunpack.c.l.b16 %v124
  %v446 = vunpack.c.l.b16 %v125
  %v447 = vunpack.c.l.b16 %v126
  %v448 = vunpack.c.l.b16 %v127
  %v449 = vunpack.c.l.b16 %v128
  %v450 = vunpack.c.l.b16 %v129
  %v451 = vunpack.c.l.b16 %v130
  %v452 = vunpack.c.l.b16 %v131
  %v453 = vunpack.c.l.b16 %v132
  %v454 = vunpack.c.l.b16 %v133
  %v455 = vunpack.c.l.b16 %v134
  %v456 = vunpack.c.l.b16 %v135
  %v457 = vunpack.c.l.b16 %v136
  %v458 = vunpack.c.l.b16 %v137
  %v459 = vunpack.c.l.b16 %v138
  %v460 = vunpack.c.l.b16 %v139
  %v461 = vunpack.c.l.b16 %v140
  %v462 = vunpack.c.l.b16 %v141
  %v463 = vunpack.c.l.b16 %v142
  %v464 = vunpack.c.l.b16 %v143
  %v465 = vunpack.c.l.b16 %v144
  %v466 = vunpack.c.l.b16 %v145
  %v467 = vunpack.c.l.b16 %v146
  %v468 = vunpack.c.l.b16 %v147
  %v469 = vunpack.c.l.b16 %v148
  %v470 = vunpack.c.l.b16 %v149
  %v471 = vunpack.c.l.b16 %v150
  %v472 = vunpack.c.l.b16 %v151
  %v473 = vunpack.c.l.b16 %v152
  %v474 = vunpack.c.l.b16 %v153
  %v475 = vunpack.c.l.b16 %v154
  %v476 = vunpack.c.l.b16 %v155
  %v477 = vpack.c.b16 %v350, %v349
  %v478 = vpack.c.b16 %v352, %v351
  %v479 = vpack.c.b16 %v354, %v353
  %v480 = vpack.c.b16 %v356, %v355
  %v481 = vpack.c.b16 %v358, %v357
  %v482 = vpack.c.b16 %v360, %v359
  %v483 = vpack.c.b16 %v362, %v361
  %v484 = vpack.c.b16 %v364, %v363
  %v485 = vpack.c.b16 %v366, %v365
  %v486 = vpack.c.b16 %v368, %v367
  %v487 = vpack.c.b16 %v370, %v369
  %v488 = vpack.c.b16 %v372, %v371
  %v489 = vpack.c.b16 %v374, %v373
  %v490 = vpack.c.b16 %v376, %v375
  %v491 = vpack.c.b16 %v378, %v377
  %v492 = vpack.c.b16 %v380, %v379
  %v493 = vpack.c.b16 %v382, %v381
  %v494 = vpack.c.b16 %v384, %v383
  %v495 = vpack.c.b16 %v386, %v385
  %v496 = vpack.c.b16 %v388, %v387
  %v497 = vpack.c.b16 %v390, %v389
  %v498 = vpack.c.b16 %v392, %v391
  %v499 = vpack.c.b16 %v394, %v393
  %v500 = vpack.c.b16 %v396, %v395
  %v501 = vpack.c.b16 %v398, %v397
  %v502 = vpack.c.b16 %v400, %v399
  %v503 = vpack.c.b16 %v402, %v401
  %v504 = vpack.c.b16 %v404, %v403
  %v505 = vpack.c.b16 %v406, %v405
  %v506 = vpack.c.b16 %v408, %v407
  %v507 = vpack.c.b16 %v410, %v409
  %v508 = vpack.c.b16 %v412, %v411
  %v509 = vpack.c.b16 %v414, %v413
  %v510 = vpack.c.b16 %v416, %v415
  %v511 = vpack.c.b16 %v418, %v417
  %v512 = vpack.c.b16 %v420, %v419
  %v513 = vpack.c.b16 %v422, %v421
  %v514 = vpack.c.b16 %v424, %v423
  %v515 = vpack.c.b16 %v426, %v425
  %v516 = vpack.c.b16 %v428, %v427
  %v517 = vpack.c.b16 %v430, %v429
  %v518 = vpack.c.b16 %v432, %v431
  %v519 = vpack.c.b16 %v434, %v433
  %v520 = vpack.c.b16 %v436, %v435
  %v521 = vpack.c.b16 %v438, %v437
  %v522 = vpack.c.b16 %v440, %v439
  %v523 = vpack.c.b16 %v442, %v441
  %v524 = vpack.c.b16 %v444, %v443
  %v525 = vpack.c.b16 %v446, %v445
  %v526 = vpack.c.b16 %v448, %v447
  %v527 = vpack.c.b16 %v450, %v449
  %v528 = vpack.c.b16 %v452, %v451
  %v529 = vpack.c.b16 %v454, %v453
  %v530 = vpack.c.b16 %v456, %v455
  %v531 = vpack.c.b16 %v458, %v457
  %v532 = vpack.c.b16 %v460, %v459
  %v533 = vpack.c.b16 %v462, %v461
  %v534 = vpack.c.b16 %v464, %v463
  %v535 = vpack.c.b16 %v466, %v465
  %v536 = vpack.c.b16 %v468, %v467
  %v537 = vpack.c.b16 %v470, %v469
  %v538 = vpack.c.b16 %v472, %v471
  %v539 = vpack.c.b16 %v474, %v473
  %v540 = vpack.c.b16 %v476, %v475
  %605 = vmatprep.subr.bf16.mxu0 0
  %606 = vmatpush1.bf16.msra.mxu0 %v477
  %607 = vmatprep.subr.bf16.mxu0 0
  %608 = vmatpush1.bf16.msra.mxu0 %v478
  %609 = vmatprep.subr.bf16.mxu0 0
  %610 = vmatpush1.bf16.msra.mxu0 %v479
  %611 = vmatprep.subr.bf16.mxu0 0
  %612 = vmatpush1.bf16.msra.mxu0 %v480
  %613 = vmatprep.subr.bf16.mxu0 0
  %614 = vmatpush1.bf16.msra.mxu0 %v481
  %615 = vmatprep.subr.bf16.mxu0 0
  %616 = vmatpush1.bf16.msra.mxu0 %v482
  %617 = vmatprep.subr.bf16.mxu0 0
  %618 = vmatpush1.bf16.msra.mxu0 %v483
  %619 = vmatprep.subr.bf16.mxu0 0
  %620 = vmatpush1.bf16.msra.mxu0 %v484
  %621 = vmatprep.subr.bf16.mxu0 0
  %622 = vmatpush1.bf16.msra.mxu0 %v485
  %623 = vmatprep.subr.bf16.mxu0 0
  %624 = vmatpush1.bf16.msra.mxu0 %v486
  %625 = vmatprep.subr.bf16.mxu0 0
  %626 = vmatpush1.bf16.msra.mxu0 %v487
  %627 = vmatprep.subr.bf16.mxu0 0
  %628 = vmatpush1.bf16.msra.mxu0 %v488
  %629 = vmatprep.subr.bf16.mxu0 0
  %630 = vmatpush1.bf16.msra.mxu0 %v489
  %631 = vmatprep.subr.bf16.mxu0 0
  %632 = vmatpush1.bf16.msra.mxu0 %v490
  %633 = vmatprep.subr.bf16.mxu0 0
  %634 = vmatpush1.bf16.msra.mxu0 %v491
  %635 = vmatprep.subr.bf16.mxu0 0
  %636 = vmatpush1.bf16.msra.mxu0 %v492
  %637 = vmatprep.mubr.bf16.mxu0 %v201
  %638 = vmatmul.mubr.bf16.gmra.mrb[0].mxu0 %v187
  %v639 = vpop.f32.mrb[0].mxu0
  %v640 = vadd.f32 %v161, %v639
  %v641 = vpop.f32.mrb[0].mxu0
  %v642 = vpop.f32.mrb[0].mxu0
  %v643 = vpop.f32.mrb[0].mxu0
  %644 = vdwg.mxu0
  %645 = vmatprep.subr.bf16.mxu0 0
  %646 = vmatpush1.bf16.msra.mxu0 %v493
  %647 = vmatprep.subr.bf16.mxu0 0
  %648 = vmatpush1.bf16.msra.mxu0 %v494
  %649 = vmatprep.subr.bf16.mxu0 0
  %650 = vmatpush1.bf16.msra.mxu0 %v495
  %651 = vmatprep.subr.bf16.mxu0 0
  %652 = vmatpush1.bf16.msra.mxu0 %v496
  %653 = vmatprep.subr.bf16.mxu0 0
  %654 = vmatpush1.bf16.msra.mxu0 %v497
  %655 = vmatprep.subr.bf16.mxu0 0
  %656 = vmatpush1.bf16.msra.mxu0 %v498
  %657 = vmatprep.subr.bf16.mxu0 0
  %658 = vmatpush1.bf16.msra.mxu0 %v499
  %659 = vmatprep.subr.bf16.mxu0 0
  %660 = vmatpush1.bf16.msra.mxu0 %v500
  %661 = vmatprep.subr.bf16.mxu0 0
  %662 = vmatpush1.bf16.msra.mxu0 %v501
  %663 = vmatprep.subr.bf16.mxu0 0
  %664 = vmatpush1.bf16.msra.mxu0 %v502
  %665 = vmatprep.subr.bf16.mxu0 0
  %666 = vmatpush1.bf16.msra.mxu0 %v503
  %667 = vmatprep.subr.bf16.mxu0 0
  %668 = vmatpush1.bf16.msra.mxu0 %v504
  %669 = vmatprep.subr.bf16.mxu0 0
  %670 = vmatpush1.bf16.msra.mxu0 %v505
  %671 = vmatprep.subr.bf16.mxu0 0
  %672 = vmatpush1.bf16.msra.mxu0 %v506
  %673 = vmatprep.subr.bf16.mxu0 0
  %674 = vmatpush1.bf16.msra.mxu0 %v507
  %675 = vmatprep.subr.bf16.mxu0 0
  %676 = vmatpush1.bf16.msra.mxu0 %v508
  %677 = vmatprep.mubr.bf16.mxu0 %v211
  %678 = vmatmul.mubr.bf16.gmra.mrb[0].mxu0 %v209
  %v679 = vpop.f32.mrb[0].mxu0
  %v680 = vadd.f32 %v640, %v679
  %v681 = vpop.f32.mrb[0].mxu0
  %v682 = vpop.f32.mrb[0].mxu0
  %v683 = vpop.f32.mrb[0].mxu0
  %684 = vdwg.mxu0
  %685 = vmatprep.subr.bf16.mxu0 0
  %686 = vmatpush1.bf16.msra.mxu0 %v509
  %687 = vmatprep.subr.bf16.mxu0 0
  %688 = vmatpush1.bf16.msra.mxu0 %v510
  %689 = vmatprep.subr.bf16.mxu0 0
  %690 = vmatpush1.bf16.msra.mxu0 %v511
  %691 = vmatprep.subr.bf16.mxu0 0
  %692 = vmatpush1.bf16.msra.mxu0 %v512
  %693 = vmatprep.subr.bf16.mxu0 0
  %694 = vmatpush1.bf16.msra.mxu0 %v513
  %695 = vmatprep.subr.bf16.mxu0 0
  %696 = vmatpush1.bf16.msra.mxu0 %v514
  %697 = vmatprep.subr.bf16.mxu0 0
  %698 = vmatpush1.bf16.msra.mxu0 %v515
  %699 = vmatprep.subr.bf16.mxu0 0
  %700 = vmatpush1.bf16.msra.mxu0 %v516
  %701 = vmatprep.subr.bf16.mxu0 0
  %702 = vmatpush1.bf16.msra.mxu0 %v517
  %703 = vmatprep.subr.bf16.mxu0 0
  %704 = vmatpush1.bf16.msra.mxu0 %v518
  %705 = vmatprep.subr.bf16.mxu0 0
  %706 = vmatpush1.bf16.msra.mxu0 %v519
  %707 = vmatprep.subr.bf16.mxu0 0
  %708 = vmatpush1.bf16.msra.mxu0 %v520
  %709 = vmatprep.subr.bf16.mxu0 0
  %710 = vmatpush1.bf16.msra.mxu0 %v521
  %711 = vmatprep.subr.bf16.mxu0 0
  %712 = vmatpush1.bf16.msra.mxu0 %v522
  %713 = vmatprep.subr.bf16.mxu0 0
  %714 = vmatpush1.bf16.msra.mxu0 %v523
  %715 = vmatprep.subr.bf16.mxu0 0
  %716 = vmatpush1.bf16.msra.mxu0 %v524
  %717 = vmatprep.mubr.bf16.mxu0 %v208
  %718 = vmatmul.mubr.bf16.gmra.mrb[0].mxu0 %v194
  %v719 = vpop.f32.mrb[0].mxu0
  %v720 = vadd.f32 %v680, %v719
  %v721 = vpop.f32.mrb[0].mxu0
  %v722 = vpop.f32.mrb[0].mxu0
  %v723 = vpop.f32.mrb[0].mxu0
  %724 = vdwg.mxu0
  %725 = vmatprep.subr.bf16.mxu0 0
  %726 = vmatpush1.bf16.msra.mxu0 %v525
  %727 = vmatprep.subr.bf16.mxu0 0
  %728 = vmatpush1.bf16.msra.mxu0 %v526
  %729 = vmatprep.subr.bf16.mxu0 0
  %730 = vmatpush1.bf16.msra.mxu0 %v527
  %731 = vmatprep.subr.bf16.mxu0 0
  %732 = vmatpush1.bf16.msra.mxu0 %v528
  %733 = vmatprep.subr.bf16.mxu0 0
  %734 = vmatpush1.bf16.msra.mxu0 %v529
  %735 = vmatprep.subr.bf16.mxu0 0
  %736 = vmatpush1.bf16.msra.mxu0 %v530
  %737 = vmatprep.subr.bf16.mxu0 0
  %738 = vmatpush1.bf16.msra.mxu0 %v531
  %739 = vmatprep.subr.bf16.mxu0 0
  %740 = vmatpush1.bf16.msra.mxu0 %v532
  %741 = vmatprep.subr.bf16.mxu0 0
  %742 = vmatpush1.bf16.msra.mxu0 %v533
  %743 = vmatprep.subr.bf16.mxu0 0
  %744 = vmatpush1.bf16.msra.mxu0 %v534
  %745 = vmatprep.subr.bf16.mxu0 0
  %746 = vmatpush1.bf16.msra.mxu0 %v535
  %747 = vmatprep.subr.bf16.mxu0 0
  %748 = vmatpush1.bf16.msra.mxu0 %v536
  %749 = vmatprep.subr.bf16.mxu0 0
  %750 = vmatpush1.bf16.msra.mxu0 %v537
  %751 = vmatprep.subr.bf16.mxu0 0
  %752 = vmatpush1.bf16.msra.mxu0 %v538
  %753 = vmatprep.subr.bf16.mxu0 0
  %754 = vmatpush1.bf16.msra.mxu0 %v539
  %755 = vmatprep.subr.bf16.mxu0 0
  %756 = vmatpush1.bf16.msra.mxu0 %v540
  %757 = vmatprep.mubr.bf16.mxu0 %v212
  %758 = vmatmul.mubr.bf16.gmra.mrb[0].mxu0 %v210
  %v759 = vpop.f32.mrb[0].mxu0
  %v760 = vadd.f32 %v720, %v759
  %v761 = vpop.f32.mrb[0].mxu0
  %v762 = vpop.f32.mrb[0].mxu0
  %v763 = vpop.f32.mrb[0].mxu0
  %764 = vdwg.mxu0
  %v765 = vmax.f32 %v760, 0.0
  %v766 = vld [vmem:[%s4] sm:$0xff]
  %v767 = vld [vmem:[%s4 + $0x8] sm:$0xff]
  %v768 = vld [vmem:[%s4 + $0x10] sm:$0xff]
  %v769 = vld [vmem:[%s4 + $0x18] sm:$0xff]
  %v770 = vld [vmem:[%s4 + $0x20] sm:$0xff]
  %v771 = vld [vmem:[%s4 + $0x28] sm:$0xff]
  %v772 = vld [vmem:[%s4 + $0x30] sm:$0xff]
  %v773 = vld [vmem:[%s4 + $0x38] sm:$0xff]
  %v774 = vld [vmem:[%s4 + $0x40] sm:$0xff]
  %v775 = vld [vmem:[%s4 + $0x48] sm:$0xff]
  %v776 = vld [vmem:[%s4 + $0x50] sm:$0xff]
  %v777 = vld [vmem:[%s4 + $0x58] sm:$0xff]
  %v778 = vld [vmem:[%s4 + $0x60] sm:$0xff]
  %v779 = vld [vmem:[%s4 + $0x68] sm:$0xff]
  %v780 = vld [vmem:[%s4 + $0x70] sm:$0xff]
  %v781 = vld [vmem:[%s4 + $0x78] sm:$0xff]
  %v782 = vld [vmem:[%s3] sm:$0x3]
  %v783 = vld [vmem:[%s5] sm:$0xff]
  %v784 = vld [vmem:[%s5 + $0x8] sm:$0xff]
  %v785 = vld [vmem:[%s5 + $0x10] sm:$0xff]
  %v786 = vld [vmem:[%s5 + $0x18] sm:$0xff]
  %v787 = vld [vmem:[%s5 + $0x20] sm:$0xff]
  %v788 = vld [vmem:[%s5 + $0x28] sm:$0xff]
  %v789 = vld [vmem:[%s5 + $0x30] sm:$0xff]
  %v790 = vld [vmem:[%s5 + $0x38] sm:$0xff]
  %v791 = vld [vmem:[%s5 + $0x40] sm:$0xff]
  %v792 = vld [vmem:[%s5 + $0x48] sm:$0xff]
  %v793 = vld [vmem:[%s5 + $0x50] sm:$0xff]
  %v794 = vld [vmem:[%s5 + $0x58] sm:$0xff]
  %v795 = vld [vmem:[%s5 + $0x60] sm:$0xff]
  %v796 = vld [vmem:[%s5 + $0x68] sm:$0xff]
  %v797 = vld [vmem:[%s5 + $0x70] sm:$0xff]
  %v798 = vld [vmem:[%s5 + $0x78] sm:$0xff]
  %799 = vmatprep.subr.mxu0 0.0
  %800 = vmatpush1.msra.mxu0 %v783
  %801 = vmatprep.subr.mxu0 0.0
  %802 = vmatpush1.msra.mxu0 %v784
  %803 = vmatprep.subr.mxu0 0.0
  %804 = vmatpush1.msra.mxu0 %v785
  %805 = vmatprep.subr.mxu0 0.0
  %806 = vmatpush1.msra.mxu0 %v786
  %807 = vmatprep.subr.mxu0 0.0
  %808 = vmatpush1.msra.mxu0 %v787
  %809 = vmatprep.subr.mxu0 0.0
  %810 = vmatpush1.msra.mxu0 %v788
  %811 = vmatprep.subr.mxu0 0.0
  %812 = vmatpush1.msra.mxu0 %v789
  %813 = vmatprep.subr.mxu0 0.0
  %814 = vmatpush1.msra.mxu0 %v790
  %815 = vmatprep.subr.mxu0 0.0
  %816 = vmatpush1.msra.mxu0 %v791
  %817 = vmatprep.subr.mxu0 0.0
  %818 = vmatpush1.msra.mxu0 %v792
  %819 = vmatprep.subr.mxu0 0.0
  %820 = vmatpush1.msra.mxu0 %v793
  %821 = vmatprep.subr.mxu0 0.0
  %822 = vmatpush1.msra.mxu0 %v794
  %823 = vmatprep.subr.mxu0 0.0
  %824 = vmatpush1.msra.mxu0 %v795
  %825 = vmatprep.subr.mxu0 0.0
  %826 = vmatpush1.msra.mxu0 %v796
  %827 = vmatprep.subr.mxu0 0.0
  %828 = vmatpush1.msra.mxu0 %v797
  %829 = vmatprep.subr.mxu0 0.0
  %830 = vmatpush1.msra.mxu0 %v798
  %831 = vmatprep.subr.mxu0 0.0
  %832 = vmatpush1.msra.mxu0 0.0
  %833 = vmatprep.subr.mxu0 0.0
  %834 = vmatpush1.msra.mxu0 0.0
  %835 = vmatprep.subr.mxu0 0.0
  %836 = vmatpush1.msra.mxu0 0.0
  %837 = vmatprep.subr.mxu0 0.0
  %838 = vmatpush1.msra.mxu0 0.0
  %839 = vmatprep.subr.mxu0 0.0
  %840 = vmatpush1.msra.mxu0 0.0
  %841 = vmatprep.subr.mxu0 0.0
  %842 = vmatpush1.msra.mxu0 0.0
  %843 = vmatprep.subr.mxu0 0.0
  %844 = vmatpush1.msra.mxu0 0.0
  %845 = vmatprep.subr.mxu0 0.0
  %846 = vmatpush1.msra.mxu0 0.0
  %847 = vmatprep.subr.mxu0 0.0
  %848 = vmatpush1.msra.mxu0 0.0
  %849 = vmatprep.subr.mxu0 0.0
  %850 = vmatpush1.msra.mxu0 0.0
  %851 = vmatprep.subr.mxu0 0.0
  %852 = vmatpush1.msra.mxu0 0.0
  %853 = vmatprep.subr.mxu0 0.0
  %854 = vmatpush1.msra.mxu0 0.0
  %855 = vmatprep.subr.mxu0 0.0
  %856 = vmatpush1.msra.mxu0 0.0
  %857 = vmatprep.subr.mxu0 0.0
  %858 = vmatpush1.msra.mxu0 0.0
  %859 = vmatprep.subr.mxu0 0.0
  %860 = vmatpush1.msra.mxu0 0.0
  %861 = vmatprep.subr.mxu0 0.0
  %862 = vmatpush1.msra.mxu0 0.0
  %863 = vmatprep.mubr.f32.mxu0 0.0
  %864 = vmatmul.mubr.f32.gmra.mrb[0].mxu0 %v782
  %v865 = vpop.f32.mrb[0].mxu0
  %v866 = vadd.f32 0.0, %v865
  %v867 = vpop.f32.mrb[0].mxu0
  %868 = vdwg.mxu0
  %869 = vmatprep.subr.mxu0 0.0
  %870 = vmatpush1.msra.mxu0 %v766
  %871 = vmatprep.subr.mxu0 0.0
  %872 = vmatpush1.msra.mxu0 %v767
  %873 = vmatprep.subr.mxu0 0.0
  %874 = vmatpush1.msra.mxu0 %v768
  %875 = vmatprep.subr.mxu0 0.0
  %876 = vmatpush1.msra.mxu0 %v769
  %877 = vmatprep.subr.mxu0 0.0
  %878 = vmatpush1.msra.mxu0 %v770
  %879 = vmatprep.subr.mxu0 0.0
  %880 = vmatpush1.msra.mxu0 %v771
  %881 = vmatprep.subr.mxu0 0.0
  %882 = vmatpush1.msra.mxu0 %v772
  %883 = vmatprep.subr.mxu0 0.0
  %884 = vmatpush1.msra.mxu0 %v773
  %885 = vmatprep.subr.mxu0 0.0
  %886 = vmatpush1.msra.mxu0 %v774
  %887 = vmatprep.subr.mxu0 0.0
  %888 = vmatpush1.msra.mxu0 %v775
  %889 = vmatprep.subr.mxu0 0.0
  %890 = vmatpush1.msra.mxu0 %v776
  %891 = vmatprep.subr.mxu0 0.0
  %892 = vmatpush1.msra.mxu0 %v777
  %893 = vmatprep.subr.mxu0 0.0
  %894 = vmatpush1.msra.mxu0 %v778
  %895 = vmatprep.subr.mxu0 0.0
  %896 = vmatpush1.msra.mxu0 %v779
  %897 = vmatprep.subr.mxu0 0.0
  %898 = vmatpush1.msra.mxu0 %v780
  %899 = vmatprep.subr.mxu0 0.0
  %900 = vmatpush1.msra.mxu0 %v781
  %901 = vmatprep.subr.mxu0 0.0
  %902 = vmatpush1.msra.mxu0 0.0
  %903 = vmatprep.subr.mxu0 0.0
  %904 = vmatpush1.msra.mxu0 0.0
  %905 = vmatprep.subr.mxu0 0.0
  %906 = vmatpush1.msra.mxu0 0.0
  %907 = vmatprep.subr.mxu0 0.0
  %908 = vmatpush1.msra.mxu0 0.0
  %909 = vmatprep.subr.mxu0 0.0
  %910 = vmatpush1.msra.mxu0 0.0
  %911 = vmatprep.subr.mxu0 0.0
  %912 = vmatpush1.msra.mxu0 0.0
  %913 = vmatprep.subr.mxu0 0.0
  %914 = vmatpush1.msra.mxu0 0.0
  %915 = vmatprep.subr.mxu0 0.0
  %916 = vmatpush1.msra.mxu0 0.0
  %917 = vmatprep.subr.mxu0 0.0
  %918 = vmatpush1.msra.mxu0 0.0
  %919 = vmatprep.subr.mxu0 0.0
  %920 = vmatpush1.msra.mxu0 0.0
  %921 = vmatprep.subr.mxu0 0.0
  %922 = vmatpush1.msra.mxu0 0.0
  %923 = vmatprep.subr.mxu0 0.0
  %924 = vmatpush1.msra.mxu0 0.0
  %925 = vmatprep.subr.mxu0 0.0
  %926 = vmatpush1.msra.mxu0 0.0
  %927 = vmatprep.subr.mxu0 0.0
  %928 = vmatpush1.msra.mxu0 0.0
  %929 = vmatprep.subr.mxu0 0.0
  %930 = vmatpush1.msra.mxu0 0.0
  %931 = vmatprep.subr.mxu0 0.0
  %932 = vmatpush1.msra.mxu0 0.0
  %933 = vmatprep.mubr.f32.mxu0 0.0
  %934 = vmatmul.mubr.f32.gmra.mrb[0].mxu0 %v765
  %v935 = vpop.f32.mrb[0].mxu0
  %v936 = vadd.f32 %v866, %v935
  %v937 = vpop.f32.mrb[0].mxu0
  %938 = vdwg.mxu0
  %v939 = vld [vmem:[%s6] sm:$0x1]
  %v941 = vlaneseq
  %v942 = vshrl.u32 %v941, 7
  %v943 = vsub.s32 0, %v942
  %v944 = vrot.slane %v939, %v943
  %v946 = vadd.f32 %v936, %v944
  %v947 = vxor.u32 %v946, 2147483648
  %v948 = vmul.f32 %v947, 1.442695
  %v949 = vpow.pop %v948
  %v950 = vadd.f32 %v949, 1.0
  %v951 = vrcp.pop %v950
  %v952 = vmul.f32 1.0, %v951
  %953 = vst [vmem:[%s7] sm:$0x3] %v952
  // Predicated region
  $region30: #{forward.9} parent=0 // pred_check
    _
  $region31: #{forward.9} parent=0 // pred_check_branch
    %955 = sbr.rel (0) target = $region33
  $region32: #{forward.9} parent=0 // pred_region
    _
  $region33: #{forward.9} parent=0 // pred_fallthru
    _
  // Predicated region
  $region34: #{forward.9} parent=0 // pred_check
    _
  $region35: #{forward.9} parent=0 // pred_check_branch
    %957 = sbr.rel (0) target = $region37
  $region36: #{forward.9} parent=0 // pred_region
    _
  $region37: #{forward.9} parent=0 // pred_fallthru
    _

</llo_original>
